<compile_context>
chip_gen: v6e
topology: v6e:2x2x1
jax: 0.10.0
libtpu: 0.0.40
codegen_flags: <defaults>
</compile_context>

<pallas_src>
import functools

import jax
import jax.numpy as jnp
import numpy as np
from jax.experimental import pallas as pl
from jax.experimental.pallas import tpu as pltpu

# ---- small config consistent with VisionTS.__init__ (args.*) ----
B = 2            # batch
N = 4            # args.ndim
M = 3            # args.npatch
L_IN = 8         # time points per patch
TE_DIM = 8       # args.te_dim
HID = 32         # args.hid_dim
C = HID - 1      # ttcn_dim
D = 1 + TE_DIM   # Filter_Generators input_dim
L_OUT = 8        # len(tp_to_predict)
DEC_DIM = 24     # vision_model.decoder_dim (surrogate)
PRED_PATCHES = M
F = TE_DIM + DEC_DIM  # predictor feature dim


def init_params(key):
    ks = jax.random.split(key, 16)
    s = lambda k, shape, scale: (scale * jax.random.normal(k, shape)).astype(jnp.float32)
    p = {}
    p['te_w_s'] = s(ks[0], (1, 1), 0.5)
    p['te_b_s'] = s(ks[1], (1, 1), 0.5)
    p['te_w_p'] = s(ks[2], (1, TE_DIM - 1), 0.5)
    p['te_b_p'] = s(ks[3], (1, TE_DIM - 1), 0.5)
    p['fg_w1'] = s(ks[4], (D, C), 0.3)
    p['fg_b1'] = s(ks[5], (1, C), 0.1)
    p['fg_w2'] = s(ks[6], (C, C), 0.2)
    p['fg_b2'] = s(ks[7], (1, C), 0.1)
    # W3 layout: [d, k, c] corresponds to torch Linear output flat index c*D + d
    # (the torch code .view(N, L, ttcn_dim, -1) splits the last dim as (C, D)).
    p['fg_w3'] = s(ks[8], (D, C, C), 0.2)
    p['fg_b3'] = s(ks[9], (D, 1, C), 0.1)
    p['t_bias'] = s(ks[10], (1, C), 0.1)
    p['channel_embed'] = s(ks[11], (N, C), 0.3)
    # TODO(synk): the MAE ViT backbone (models_mae + GCN channel interaction + LoRA +
    # checkpoint load) is external code not shown in this module; it is replaced by a
    # deterministic per-patch linear projection to decoder-dim tokens (pred_patches == M).
    p['vm_w'] = s(ks[12], (HID, DEC_DIM), 0.2)
    p['vm_b'] = s(ks[13], (1, DEC_DIM), 0.1)
    p['pr_w1'] = s(ks[14], (F, F), 0.2)
    p['pr_b1'] = jnp.zeros((1, F), jnp.float32)
    p['pr_w2'] = s(ks[15], (F, 1), 0.2)
    p['pr_b2'] = jnp.zeros((1, 1), jnp.float32)
    return p


def _ceil_to(x, m):
    return ((x + m - 1) // m) * m


# ---------------- fused Pallas kernel: full VisionTS forward ----------------
def _fused_kernel(xi_ref, m_ref, ce_ref, te_ref, g_ref,
                  w1_ref, b1_ref, w2_ref, b2_ref, w3_ref, b3_ref,
                  ee_ref, sel_ref, tb_ref,
                  vmh_ref, vmm_ref, vmb_ref,
                  p1a_ref, p1b_ref, pb1_ref, p2_ref, pb2_ref,
                  scat_ref, o_ref, *, rpad, l, dc):
    # ---- Filter_Generators MLP on (rows*time, D) ----
    xib = xi_ref[...]                                                      # (rpad*l, D)
    h1 = jnp.maximum(
        jnp.dot(xib, w1_ref[...], preferred_element_type=jnp.float32) + b1_ref[...], 0.0)
    h2 = jnp.maximum(
        jnp.dot(h1, w2_ref[...], preferred_element_type=jnp.float32) + b2_ref[...], 0.0)
    filt = jnp.dot(h2, w3_ref[...], preferred_element_type=jnp.float32) + b3_ref[...]   # (rpad*l, dc)
    # xi broadcast across the c-lanes of each d-block via an exact 0/1 matmul (no gathers)
    xie = jnp.dot(xib, ee_ref[...], preferred_element_type=jnp.float32)                 # (rpad*l, dc)

    # Regroup rows for the per-patch softmax over time (layout-preserving: l == 8).
    filt3 = filt.reshape(rpad, l, dc)
    xie3 = xie.reshape(rpad, l, dc)
    m3 = m_ref[...].reshape(rpad, l, 1)

    # ---- masked softmax over time + weighted sum (TTCN) ----
    fm = jnp.where(m3 != 0.0, filt3, -1e8)
    mx = jnp.max(fm, axis=1, keepdims=True)
    e = jnp.exp(fm - mx)
    p = e * pl.reciprocal(jnp.sum(e, axis=1, keepdims=True), approx=True)
    wsum = jnp.sum(xie3 * p, axis=1)                                        # (rpad, dc)
    ttcn = jnp.dot(wsum, sel_ref[...], preferred_element_type=jnp.float32)  # (rpad, C)

    h_t = jnp.maximum(ttcn + tb_ref[...], 0.0) + ce_ref[...]                # (rpad, C)
    mp = (jnp.sum(m3, axis=1) > 0.0).astype(jnp.float32)                    # (rpad, 1)

    # ---- surrogate vision-decoder projection: x_patch @ vm_w + vm_b, with the
    #      [h_t + ce, mask_patch] lane concat folded into a weight split ----
    y_dec = (jnp.dot(h_t, vmh_ref[...], preferred_element_type=jnp.float32)
             + mp * vmm_ref[...] + vmb_ref[...])                            # (rpad, DEC)

    # ---- pred-patch gather as an exact one-hot matmul ----
    latent = jnp.dot(g_ref[...], y_dec, preferred_element_type=jnp.float32)  # (r2pad, DEC)

    # ---- predictor head, [te_pred, latent_pred] lane concat folded into a weight split ----
    hp = jnp.maximum(
        jnp.dot(te_ref[...], p1a_ref[...], preferred_element_type=jnp.float32)
        + jnp.dot(latent, p1b_ref[...], preferred_element_type=jnp.float32)
        + pb1_ref[...], 0.0)                                                 # (r2pad, F)
    yv = jnp.dot(hp, p2_ref[...], preferred_element_type=jnp.float32) + pb2_ref[...]    # (r2pad, 1)

    # ---- lane-dense output: scatter (b,n,l)-ordered rows into one (1, B*L_out*N) slab
    #      via an exact 0/1 permutation mask + sublane reduce (single full store) ----
    o_ref[...] = jnp.sum(yv * scat_ref[...], axis=0, keepdims=True)


def visionts_forward(params, x, tt, tt_mask, tp_to_predict, pred_patch_index):
    Bq, Mq, Lq, Nq = x.shape
    # f32 sublane tile is 8: keeps the in-kernel (rows, L, .) reshapes layout-preserving.
    assert Lq % 8 == 0, "L must be a multiple of 8 (f32 sublane tile)"

    D_ = params['fg_w1'].shape[0]
    C_ = params['fg_w1'].shape[1]
    TE = D_ - 1
    DEC = params['vm_w'].shape[1]
    Fd = TE + DEC
    DC = D_ * C_
    L_out = tp_to_predict.shape[1]
    R = Bq * Nq * Mq
    R2 = Bq * Nq * L_out
    OUTW = Bq * L_out * Nq          # == R2

    # ---------- JAX glue (fused by XLA into a few tiny ops before the single kernel) ----------
    perm = lambda a: jnp.transpose(a, (0, 3, 1, 2)).reshape(-1, Lq, 1)
    x_rows, tt_rows, m_rows = perm(x), perm(tt), perm(tt_mask)

    # LearnableTE for the history timestamps (cheap; avoids an in-kernel lane concat).
    te1 = tt_rows * params['te_w_s'] + params['te_b_s']
    te2 = jnp.sin(tt_rows * params['te_w_p'] + params['te_b_p'])
    xi = jnp.concatenate([x_rows, te1, te2], axis=-1)                       # (R, L, D)

    # Literal semantics of torch's positional add of einops.repeat(channel_embed,
    # 'n d -> (b m n) d') onto rows ordered (b, n, m): row r gets channel_embed[r % N],
    # exactly as the original module computes it.
    ce_rows = params['channel_embed'][jnp.arange(R) % Nq]                   # (R, C)

    # LearnableTE for the prediction timestamps, rows ordered (b, n, l).
    tp = tp_to_predict[..., None]                                           # (B, L_out, 1)
    t1 = tp * params['te_w_s'] + params['te_b_s']
    t2 = jnp.sin(tp * params['te_w_p'] + params['te_b_p'])
    te_pred = jnp.concatenate([t1, t2], axis=-1)                            # (B, L_out, TE)
    te_rows = jnp.broadcast_to(te_pred[:, None], (Bq, Nq, L_out, TE)).reshape(R2, TE)

    # One-hot gather matrix for torch's .gather(dim=2) over pred patches:
    # gsel[(b,n,l), (b',n',m)] = 1 iff b==b', n==n', m == pred_patch_index[b, l].
    row_bn = jnp.asarray(np.arange(R2) // L_out)                            # constants
    col_bn = jnp.asarray(np.arange(R) // Mq)
    col_m = jnp.asarray(np.arange(R) % Mq)
    ppi = jnp.broadcast_to(pred_patch_index[:, None, :].astype(jnp.int32),
                           (Bq, Nq, L_out)).reshape(R2)
    gsel = ((row_bn[:, None] == col_bn[None, :]) &
            (ppi[:, None] == col_m[None, :])).astype(jnp.float32)           # (R2, R)

    # Permutation scatter: (b,n,l)-ordered rows -> flat (b, l, n) output positions.
    r2 = np.arange(R2)
    b_i = r2 // (Nq * L_out)
    n_i = (r2 // L_out) % Nq
    l_i = r2 % L_out
    pscat_np = np.zeros((R2, OUTW), np.float32)
    pscat_np[r2, b_i * (L_out * Nq) + l_i * Nq + n_i] = 1.0
    pscat = jnp.asarray(pscat_np)                                           # compile-time constant

    # Constant helper matrices for the flattened third FG layer (no in-kernel lane gathers):
    # w3f[k, d*C + c] = fg_w3[d, k, c];  eexp replicates xi[:, d] across the c-lanes of
    # block d;  selm sums the d blocks back down to C output channels.
    w3f = jnp.transpose(params['fg_w3'], (1, 0, 2)).reshape(C_, DC)
    b3f = params['fg_b3'][:, 0, :].reshape(1, DC)
    eexp = jnp.repeat(jnp.eye(D_, dtype=jnp.float32), C_, axis=1)           # (D, D*C)
    selm = jnp.tile(jnp.eye(C_, dtype=jnp.float32), (D_, 1))                # (D*C, C)

    # Weight splits that replace the lane concats.
    vm_wh, vm_wm = params['vm_w'][:C_], params['vm_w'][C_:]                 # (C, DEC), (1, DEC)
    pr_w1a, pr_w1b = params['pr_w1'][:TE], params['pr_w1'][TE:]             # (TE, F), (DEC, F)

    # Generic sublane padding (no-op for the default config: R=24, R2=64).
    R_pad = _ceil_to(R, 8)
    R2_pad = _ceil_to(R2, 8)
    if R_pad != R:
        xi = jnp.pad(xi, ((0, R_pad - R), (0, 0), (0, 0)))
        m_rows = jnp.pad(m_rows, ((0, R_pad - R), (0, 0), (0, 0)))
        ce_rows = jnp.pad(ce_rows, ((0, R_pad - R), (0, 0)))
        gsel = jnp.pad(gsel, ((0, 0), (0, R_pad - R)))
    if R2_pad != R2:
        te_rows = jnp.pad(te_rows, ((0, R2_pad - R2), (0, 0)))
        gsel = jnp.pad(gsel, ((0, R2_pad - R2), (0, 0)))
        pscat = jnp.pad(pscat, ((0, R2_pad - R2), (0, 0)))

    xi2 = xi.reshape(R_pad * Lq, D_)     # rows*time on sublanes (layout-preserving, L==8)
    m2 = m_rows.reshape(R_pad * Lq, 1)

    operands = (xi2, m2, ce_rows, te_rows, gsel,
                params['fg_w1'], params['fg_b1'], params['fg_w2'], params['fg_b2'],
                w3f, b3f, eexp, selm, params['t_bias'],
                vm_wh, vm_wm, params['vm_b'],
                pr_w1a, pr_w1b, params['pr_b1'], params['pr_w2'], params['pr_b2'],
                pscat)
    in_specs = [pl.BlockSpec(op.shape, lambda i: (0, 0)) for op in operands]

    out = pl.pallas_call(
        functools.partial(_fused_kernel, rpad=R_pad, l=Lq, dc=DC),
        out_shape=jax.ShapeDtypeStruct((1, OUTW), jnp.float32),
        grid=(1,),
        in_specs=in_specs,
        out_specs=pl.BlockSpec((1, OUTW), lambda i: (0, 0)),
        # Single-step grid: "parallel" buys nothing (and would idle a v7x TC anyway).
        compiler_params=pltpu.CompilerParams(dimension_semantics=("arbitrary",)),
    )(*operands)

    # (1, B*L_out*N) -> (B, L_out, N): contiguous, free reshape (no transpose).
    return out.reshape(Bq, L_out, Nq)


# ---------------- pure-JAX reference for validation ----------------
def reference_forward(params, x, tt, tt_mask, tp_to_predict, pred_patch_index):
    hi = jax.lax.Precision.HIGHEST
    Bq, Mq, Lq, Nq = x.shape
    perm = lambda a: jnp.transpose(a, (0, 3, 1, 2)).reshape(-1, Lq, 1)
    x_rows, tt_rows, m_rows = perm(x), perm(tt), perm(tt_mask)
    R = Bq * Nq * Mq
    te1 = tt_rows * params['te_w_s'] + params['te_b_s']
    te2 = jnp.sin(tt_rows * params['te_w_p'] + params['te_b_p'])
    xi = jnp.concatenate([x_rows, te1, te2], axis=-1)                 # (R, L, D)
    mask_patch = (m_rows.sum(axis=1) > 0).astype(jnp.float32)         # (R, 1)
    h1 = jax.nn.relu(jnp.einsum('rld,dc->rlc', xi, params['fg_w1'], precision=hi) + params['fg_b1'])
    h2 = jax.nn.relu(jnp.einsum('rlc,ck->rlk', h1, params['fg_w2'], precision=hi) + params['fg_b2'])
    filt = jnp.einsum('rlk,dkc->rlcd', h2, params['fg_w3'], precision=hi) \
        + jnp.transpose(params['fg_b3'][:, 0, :], (1, 0))[None, None]
    m4 = m_rows[:, :, :, None]
    fm = filt * m4 + (1.0 - m4) * (-1e8)
    p = jax.nn.softmax(fm, axis=1)
    ttcn_out = jnp.einsum('rlcd,rld->rc', p, xi, precision=hi)
    h_t = jax.nn.relu(ttcn_out + params['t_bias'])
    ce_rows = params['channel_embed'][jnp.arange(R) % Nq]
    x_patch = jnp.concatenate([h_t + ce_rows, mask_patch], axis=-1)
    x_tok = x_patch.reshape(Bq, Nq, Mq, HID).reshape(Bq * Nq, Mq, HID)
    y_pred = jnp.einsum('rmh,hd->rmd', x_tok, params['vm_w'], precision=hi) + params['vm_b']
    yp = y_pred.reshape(Bq, Nq, PRED_PATCHES, DEC_DIM)
    L_out = tp_to_predict.shape[1]
    tp = tp_to_predict[..., None]
    t1 = tp * params['te_w_s'] + params['te_b_s']
    t2 = jnp.sin(tp * params['te_w_p'] + params['te_b_p'])
    te_pred = jnp.broadcast_to(jnp.concatenate([t1, t2], -1)[:, None], (Bq, Nq, L_out, TE_DIM))
    idx = jnp.broadcast_to(pred_patch_index[:, None, :, None].astype(jnp.int32),
                           (Bq, Nq, L_out, DEC_DIM))
    latent_pred = jnp.take_along_axis(yp, idx, axis=2)
    ld = jnp.concatenate([te_pred, latent_pred], -1).reshape(Bq * Nq * L_out, F)
    hh = jax.nn.relu(jnp.dot(ld, params['pr_w1'], precision=hi) + params['pr_b1'])
    y = jnp.dot(hh, params['pr_w2'], precision=hi) + params['pr_b2']
    return jnp.transpose(y.reshape(Bq, Nq, L_out), (0, 2, 1))


if __name__ == "__main__":
    key = jax.random.PRNGKey(0)
    pkey, k1, k2, k3, k4, k5 = jax.random.split(key, 6)
    params = init_params(pkey)

    x = jax.random.normal(k1, (B, M, L_IN, N), jnp.float32)
    tt = jax.random.uniform(k2, (B, M, L_IN, N), dtype=jnp.float32)
    tt_mask = (jax.random.uniform(k3, (B, M, L_IN, N)) < 0.7).astype(jnp.float32)
    tp_to_predict = jax.random.uniform(k4, (B, L_OUT), dtype=jnp.float32)
    pred_patch_index = jax.random.randint(k5, (B, L_OUT), 0, PRED_PATCHES)

    fwd = jax.jit(visionts_forward)
    out = jax.block_until_ready(fwd(params, x, tt, tt_mask, tp_to_predict, pred_patch_index))
    assert out.shape == (B, L_OUT, N)

    ref = reference_forward(params, x, tt, tt_mask, tp_to_predict, pred_patch_index)
    np.testing.assert_allclose(np.asarray(out), np.asarray(ref), rtol=5e-3, atol=5e-3)
    print("KERNEL_OK")
</pallas_src>

<mosaic_0001>
module attributes {stable_mosaic.version = 11 : i64} {
  func.func @_fused_kernel(%arg0: i32, %arg1: memref<192x9xf32, #tpu.memory_space<vmem>>, %arg2: memref<192x1xf32, #tpu.memory_space<vmem>>, %arg3: memref<24x31xf32, #tpu.memory_space<vmem>>, %arg4: memref<64x8xf32, #tpu.memory_space<vmem>>, %arg5: memref<64x24xf32, #tpu.memory_space<vmem>>, %arg6: memref<9x31xf32, #tpu.memory_space<vmem>>, %arg7: memref<1x31xf32, #tpu.memory_space<vmem>>, %arg8: memref<31x31xf32, #tpu.memory_space<vmem>>, %arg9: memref<1x31xf32, #tpu.memory_space<vmem>>, %arg10: memref<31x279xf32, #tpu.memory_space<vmem>>, %arg11: memref<1x279xf32, #tpu.memory_space<vmem>>, %arg12: memref<9x279xf32, #tpu.memory_space<vmem>>, %arg13: memref<279x31xf32, #tpu.memory_space<vmem>>, %arg14: memref<1x31xf32, #tpu.memory_space<vmem>>, %arg15: memref<31x24xf32, #tpu.memory_space<vmem>>, %arg16: memref<1x24xf32, #tpu.memory_space<vmem>>, %arg17: memref<1x24xf32, #tpu.memory_space<vmem>>, %arg18: memref<8x32xf32, #tpu.memory_space<vmem>>, %arg19: memref<24x32xf32, #tpu.memory_space<vmem>>, %arg20: memref<1x32xf32, #tpu.memory_space<vmem>>, %arg21: memref<32x1xf32, #tpu.memory_space<vmem>>, %arg22: memref<1x1xf32, #tpu.memory_space<vmem>>, %arg23: memref<64x64xf32, #tpu.memory_space<vmem>>, %arg24: memref<1x64xf32, #tpu.memory_space<vmem>>) attributes {dimension_semantics = [#tpu.dimension_semantics<arbitrary>], iteration_bounds = array<i64: 1>, scalar_prefetch = 0 : i64, scratch_operands = 0 : i64, tpu.core_type = #tpu.core_type<tc>, window_params = [{pipeline_mode = #tpu.pipeline_mode<synchronous>, transform_indices = @transform_0, window_bounds = array<i64: 192, 9>}, {pipeline_mode = #tpu.pipeline_mode<synchronous>, transform_indices = @transform_1, window_bounds = array<i64: 192, 1>}, {pipeline_mode = #tpu.pipeline_mode<synchronous>, transform_indices = @transform_2, window_bounds = array<i64: 24, 31>}, {pipeline_mode = #tpu.pipeline_mode<synchronous>, transform_indices = @transform_3, window_bounds = array<i64: 64, 8>}, {pipeline_mode = #tpu.pipeline_mode<synchronous>, transform_indices = @transform_4, window_bounds = array<i64: 64, 24>}, {pipeline_mode = #tpu.pipeline_mode<synchronous>, transform_indices = @transform_5, window_bounds = array<i64: 9, 31>}, {pipeline_mode = #tpu.pipeline_mode<synchronous>, transform_indices = @transform_6, window_bounds = array<i64: 1, 31>}, {pipeline_mode = #tpu.pipeline_mode<synchronous>, transform_indices = @transform_7, window_bounds = array<i64: 31, 31>}, {pipeline_mode = #tpu.pipeline_mode<synchronous>, transform_indices = @transform_8, window_bounds = array<i64: 1, 31>}, {pipeline_mode = #tpu.pipeline_mode<synchronous>, transform_indices = @transform_9, window_bounds = array<i64: 31, 279>}, {pipeline_mode = #tpu.pipeline_mode<synchronous>, transform_indices = @transform_10, window_bounds = array<i64: 1, 279>}, {pipeline_mode = #tpu.pipeline_mode<synchronous>, transform_indices = @transform_11, window_bounds = array<i64: 9, 279>}, {pipeline_mode = #tpu.pipeline_mode<synchronous>, transform_indices = @transform_12, window_bounds = array<i64: 279, 31>}, {pipeline_mode = #tpu.pipeline_mode<synchronous>, transform_indices = @transform_13, window_bounds = array<i64: 1, 31>}, {pipeline_mode = #tpu.pipeline_mode<synchronous>, transform_indices = @transform_14, window_bounds = array<i64: 31, 24>}, {pipeline_mode = #tpu.pipeline_mode<synchronous>, transform_indices = @transform_15, window_bounds = array<i64: 1, 24>}, {pipeline_mode = #tpu.pipeline_mode<synchronous>, transform_indices = @transform_16, window_bounds = array<i64: 1, 24>}, {pipeline_mode = #tpu.pipeline_mode<synchronous>, transform_indices = @transform_17, window_bounds = array<i64: 8, 32>}, {pipeline_mode = #tpu.pipeline_mode<synchronous>, transform_indices = @transform_18, window_bounds = array<i64: 24, 32>}, {pipeline_mode = #tpu.pipeline_mode<synchronous>, transform_indices = @transform_19, window_bounds = array<i64: 1, 32>}, {pipeline_mode = #tpu.pipeline_mode<synchronous>, transform_indices = @transform_20, window_bounds = array<i64: 32, 1>}, {pipeline_mode = #tpu.pipeline_mode<synchronous>, transform_indices = @transform_21, window_bounds = array<i64: 1, 1>}, {pipeline_mode = #tpu.pipeline_mode<synchronous>, transform_indices = @transform_22, window_bounds = array<i64: 64, 64>}, {pipeline_mode = #tpu.pipeline_mode<synchronous>, transform_indices = @transform_23, window_bounds = array<i64: 1, 64>}]} {
    %c0 = arith.constant 0 : index
    %c0_0 = arith.constant 0 : index
    %0 = vector.load %arg1[%c0, %c0_0] : memref<192x9xf32, #tpu.memory_space<vmem>>, vector<192x9xf32>
    %c0_1 = arith.constant 0 : index
    %c0_2 = arith.constant 0 : index
    %1 = vector.load %arg6[%c0_1, %c0_2] : memref<9x31xf32, #tpu.memory_space<vmem>>, vector<9x31xf32>
    %cst = arith.constant dense<0.000000e+00> : vector<192x31xf32>
    %2 = tpu.matmul %0, %1, %cst {dimension_numbers = #tpu.dot_dimension_numbers<[1], [0], [0], [1], [0, 0, 1, 1], [], []>} : vector<192x9xf32>, vector<9x31xf32>, vector<192x31xf32> -> vector<192x31xf32>
    %c0_3 = arith.constant 0 : index
    %c0_4 = arith.constant 0 : index
    %3 = vector.load %arg7[%c0_3, %c0_4] : memref<1x31xf32, #tpu.memory_space<vmem>>, vector<1x31xf32>
    %4 = vector.broadcast %3 : vector<1x31xf32> to vector<192x31xf32>
    %5 = arith.addf %2, %4 : vector<192x31xf32>
    %cst_5 = arith.constant 0.000000e+00 : f32
    %6 = vector.broadcast %cst_5 : f32 to vector<192x31xf32>
    %7 = arith.maximumf %5, %6 : vector<192x31xf32>
    %c0_6 = arith.constant 0 : index
    %c0_7 = arith.constant 0 : index
    %8 = vector.load %arg8[%c0_6, %c0_7] : memref<31x31xf32, #tpu.memory_space<vmem>>, vector<31x31xf32>
    %cst_8 = arith.constant dense<0.000000e+00> : vector<192x31xf32>
    %9 = tpu.matmul %7, %8, %cst_8 {dimension_numbers = #tpu.dot_dimension_numbers<[1], [0], [0], [1], [0, 0, 1, 1], [], []>} : vector<192x31xf32>, vector<31x31xf32>, vector<192x31xf32> -> vector<192x31xf32>
    %c0_9 = arith.constant 0 : index
    %c0_10 = arith.constant 0 : index
    %10 = vector.load %arg9[%c0_9, %c0_10] : memref<1x31xf32, #tpu.memory_space<vmem>>, vector<1x31xf32>
    %11 = vector.broadcast %10 : vector<1x31xf32> to vector<192x31xf32>
    %12 = arith.addf %9, %11 : vector<192x31xf32>
    %cst_11 = arith.constant 0.000000e+00 : f32
    %13 = vector.broadcast %cst_11 : f32 to vector<192x31xf32>
    %14 = arith.maximumf %12, %13 : vector<192x31xf32>
    %c0_12 = arith.constant 0 : index
    %c0_13 = arith.constant 0 : index
    %15 = vector.load %arg10[%c0_12, %c0_13] : memref<31x279xf32, #tpu.memory_space<vmem>>, vector<31x279xf32>
    %cst_14 = arith.constant dense<0.000000e+00> : vector<192x279xf32>
    %16 = tpu.matmul %14, %15, %cst_14 {dimension_numbers = #tpu.dot_dimension_numbers<[1], [0], [0], [1], [0, 0, 1, 1], [], []>} : vector<192x31xf32>, vector<31x279xf32>, vector<192x279xf32> -> vector<192x279xf32>
    %c0_15 = arith.constant 0 : index
    %c0_16 = arith.constant 0 : index
    %17 = vector.load %arg11[%c0_15, %c0_16] : memref<1x279xf32, #tpu.memory_space<vmem>>, vector<1x279xf32>
    %18 = vector.broadcast %17 : vector<1x279xf32> to vector<192x279xf32>
    %19 = arith.addf %16, %18 : vector<192x279xf32>
    %c0_17 = arith.constant 0 : index
    %c0_18 = arith.constant 0 : index
    %20 = vector.load %arg12[%c0_17, %c0_18] : memref<9x279xf32, #tpu.memory_space<vmem>>, vector<9x279xf32>
    %cst_19 = arith.constant dense<0.000000e+00> : vector<192x279xf32>
    %21 = tpu.matmul %0, %20, %cst_19 {dimension_numbers = #tpu.dot_dimension_numbers<[1], [0], [0], [1], [0, 0, 1, 1], [], []>} : vector<192x9xf32>, vector<9x279xf32>, vector<192x279xf32> -> vector<192x279xf32>
    %22 = vector.shape_cast %19 : vector<192x279xf32> to vector<24x8x279xf32>
    %23 = vector.shape_cast %21 : vector<192x279xf32> to vector<24x8x279xf32>
    %c0_20 = arith.constant 0 : index
    %c0_21 = arith.constant 0 : index
    %24 = vector.load %arg2[%c0_20, %c0_21] : memref<192x1xf32, #tpu.memory_space<vmem>>, vector<192x1xf32>
    %25 = vector.shape_cast %24 : vector<192x1xf32> to vector<24x8x1xf32>
    %cst_22 = arith.constant 0.000000e+00 : f32
    %26 = vector.broadcast %cst_22 : f32 to vector<24x8x1xf32>
    %27 = arith.cmpf one, %25, %26 : vector<24x8x1xf32>
    %cst_23 = arith.constant -1.000000e+08 : f32
    %28 = vector.shape_cast %27 : vector<24x8x1xi1> to vector<24x8x1xi1>
    %29 = vector.broadcast %28 : vector<24x8x1xi1> to vector<24x8x279xi1>
    %30 = vector.broadcast %cst_23 : f32 to vector<24x8x279xf32>
    %31 = arith.select %29, %22, %30 : vector<24x8x279xi1>, vector<24x8x279xf32>
    %cst_24 = arith.constant dense<0xFF800000> : vector<24x279xf32>
    %32 = vector.multi_reduction <maximumf>, %31, %cst_24 [1] : vector<24x8x279xf32> to vector<24x279xf32>
    %33 = vector.shape_cast %32 : vector<24x279xf32> to vector<24x1x279xf32>
    %34 = vector.broadcast %33 : vector<24x1x279xf32> to vector<24x8x279xf32>
    %35 = arith.subf %31, %34 : vector<24x8x279xf32>
    %36 = math.exp %35 : vector<24x8x279xf32>
    %cst_25 = arith.constant dense<0.000000e+00> : vector<24x279xf32>
    %37 = vector.multi_reduction <add>, %36, %cst_25 [1] : vector<24x8x279xf32> to vector<24x279xf32>
    %38 = vector.shape_cast %37 : vector<24x279xf32> to vector<24x1x279xf32>
    %39 = tpu.reciprocal %38 {approx = true} : vector<24x1x279xf32> -> vector<24x1x279xf32>
    %40 = vector.broadcast %39 : vector<24x1x279xf32> to vector<24x8x279xf32>
    %41 = arith.mulf %36, %40 : vector<24x8x279xf32>
    %42 = arith.mulf %23, %41 : vector<24x8x279xf32>
    %cst_26 = arith.constant dense<0.000000e+00> : vector<24x279xf32>
    %43 = vector.multi_reduction <add>, %42, %cst_26 [1] : vector<24x8x279xf32> to vector<24x279xf32>
    %c0_27 = arith.constant 0 : index
    %c0_28 = arith.constant 0 : index
    %44 = vector.load %arg13[%c0_27, %c0_28] : memref<279x31xf32, #tpu.memory_space<vmem>>, vector<279x31xf32>
    %cst_29 = arith.constant dense<0.000000e+00> : vector<24x31xf32>
    %45 = tpu.matmul %43, %44, %cst_29 {dimension_numbers = #tpu.dot_dimension_numbers<[1], [0], [0], [1], [0, 0, 1, 1], [], []>} : vector<24x279xf32>, vector<279x31xf32>, vector<24x31xf32> -> vector<24x31xf32>
    %c0_30 = arith.constant 0 : index
    %c0_31 = arith.constant 0 : index
    %46 = vector.load %arg14[%c0_30, %c0_31] : memref<1x31xf32, #tpu.memory_space<vmem>>, vector<1x31xf32>
    %47 = vector.broadcast %46 : vector<1x31xf32> to vector<24x31xf32>
    %48 = arith.addf %45, %47 : vector<24x31xf32>
    %cst_32 = arith.constant 0.000000e+00 : f32
    %49 = vector.broadcast %cst_32 : f32 to vector<24x31xf32>
    %50 = arith.maximumf %48, %49 : vector<24x31xf32>
    %c0_33 = arith.constant 0 : index
    %c0_34 = arith.constant 0 : index
    %51 = vector.load %arg3[%c0_33, %c0_34] : memref<24x31xf32, #tpu.memory_space<vmem>>, vector<24x31xf32>
    %52 = arith.addf %50, %51 : vector<24x31xf32>
    %cst_35 = arith.constant dense<0.000000e+00> : vector<24x1xf32>
    %53 = vector.multi_reduction <add>, %25, %cst_35 [1] : vector<24x8x1xf32> to vector<24x1xf32>
    %cst_36 = arith.constant 0.000000e+00 : f32
    %54 = vector.broadcast %cst_36 : f32 to vector<24x1xf32>
    %55 = arith.cmpf ogt, %53, %54 : vector<24x1xf32>
    %56 = arith.extui %55 : vector<24x1xi1> to vector<24x1xi32>
    %57 = arith.sitofp %56 : vector<24x1xi32> to vector<24x1xf32>
    %c0_37 = arith.constant 0 : index
    %c0_38 = arith.constant 0 : index
    %58 = vector.load %arg15[%c0_37, %c0_38] : memref<31x24xf32, #tpu.memory_space<vmem>>, vector<31x24xf32>
    %cst_39 = arith.constant dense<0.000000e+00> : vector<24x24xf32>
    %59 = tpu.matmul %52, %58, %cst_39 {dimension_numbers = #tpu.dot_dimension_numbers<[1], [0], [0], [1], [0, 0, 1, 1], [], []>} : vector<24x31xf32>, vector<31x24xf32>, vector<24x24xf32> -> vector<24x24xf32>
    %c0_40 = arith.constant 0 : index
    %c0_41 = arith.constant 0 : index
    %60 = vector.load %arg16[%c0_40, %c0_41] : memref<1x24xf32, #tpu.memory_space<vmem>>, vector<1x24xf32>
    %61 = vector.broadcast %57 : vector<24x1xf32> to vector<24x24xf32>
    %62 = vector.broadcast %60 : vector<1x24xf32> to vector<24x24xf32>
    %63 = arith.mulf %61, %62 : vector<24x24xf32>
    %64 = arith.addf %59, %63 : vector<24x24xf32>
    %c0_42 = arith.constant 0 : index
    %c0_43 = arith.constant 0 : index
    %65 = vector.load %arg17[%c0_42, %c0_43] : memref<1x24xf32, #tpu.memory_space<vmem>>, vector<1x24xf32>
    %66 = vector.broadcast %65 : vector<1x24xf32> to vector<24x24xf32>
    %67 = arith.addf %64, %66 : vector<24x24xf32>
    %c0_44 = arith.constant 0 : index
    %c0_45 = arith.constant 0 : index
    %68 = vector.load %arg5[%c0_44, %c0_45] : memref<64x24xf32, #tpu.memory_space<vmem>>, vector<64x24xf32>
    %cst_46 = arith.constant dense<0.000000e+00> : vector<64x24xf32>
    %69 = tpu.matmul %68, %67, %cst_46 {dimension_numbers = #tpu.dot_dimension_numbers<[1], [0], [0], [1], [0, 0, 1, 1], [], []>} : vector<64x24xf32>, vector<24x24xf32>, vector<64x24xf32> -> vector<64x24xf32>
    %c0_47 = arith.constant 0 : index
    %c0_48 = arith.constant 0 : index
    %70 = vector.load %arg4[%c0_47, %c0_48] : memref<64x8xf32, #tpu.memory_space<vmem>>, vector<64x8xf32>
    %c0_49 = arith.constant 0 : index
    %c0_50 = arith.constant 0 : index
    %71 = vector.load %arg18[%c0_49, %c0_50] : memref<8x32xf32, #tpu.memory_space<vmem>>, vector<8x32xf32>
    %cst_51 = arith.constant dense<0.000000e+00> : vector<64x32xf32>
    %72 = tpu.matmul %70, %71, %cst_51 {dimension_numbers = #tpu.dot_dimension_numbers<[1], [0], [0], [1], [0, 0, 1, 1], [], []>} : vector<64x8xf32>, vector<8x32xf32>, vector<64x32xf32> -> vector<64x32xf32>
    %c0_52 = arith.constant 0 : index
    %c0_53 = arith.constant 0 : index
    %73 = vector.load %arg19[%c0_52, %c0_53] : memref<24x32xf32, #tpu.memory_space<vmem>>, vector<24x32xf32>
    %cst_54 = arith.constant dense<0.000000e+00> : vector<64x32xf32>
    %74 = tpu.matmul %69, %73, %cst_54 {dimension_numbers = #tpu.dot_dimension_numbers<[1], [0], [0], [1], [0, 0, 1, 1], [], []>} : vector<64x24xf32>, vector<24x32xf32>, vector<64x32xf32> -> vector<64x32xf32>
    %75 = arith.addf %72, %74 : vector<64x32xf32>
    %c0_55 = arith.constant 0 : index
    %c0_56 = arith.constant 0 : index
    %76 = vector.load %arg20[%c0_55, %c0_56] : memref<1x32xf32, #tpu.memory_space<vmem>>, vector<1x32xf32>
    %77 = vector.broadcast %76 : vector<1x32xf32> to vector<64x32xf32>
    %78 = arith.addf %75, %77 : vector<64x32xf32>
    %cst_57 = arith.constant 0.000000e+00 : f32
    %79 = vector.broadcast %cst_57 : f32 to vector<64x32xf32>
    %80 = arith.maximumf %78, %79 : vector<64x32xf32>
    %c0_58 = arith.constant 0 : index
    %c0_59 = arith.constant 0 : index
    %81 = vector.load %arg21[%c0_58, %c0_59] : memref<32x1xf32, #tpu.memory_space<vmem>>, vector<32x1xf32>
    %cst_60 = arith.constant dense<0.000000e+00> : vector<64x1xf32>
    %82 = tpu.matmul %80, %81, %cst_60 {dimension_numbers = #tpu.dot_dimension_numbers<[1], [0], [0], [1], [0, 0, 1, 1], [], []>} : vector<64x32xf32>, vector<32x1xf32>, vector<64x1xf32> -> vector<64x1xf32>
    %c0_61 = arith.constant 0 : index
    %c0_62 = arith.constant 0 : index
    %83 = vector.load %arg22[%c0_61, %c0_62] : memref<1x1xf32, #tpu.memory_space<vmem>>, vector<1x1xf32>
    %84 = vector.broadcast %83 : vector<1x1xf32> to vector<64x1xf32>
    %85 = arith.addf %82, %84 : vector<64x1xf32>
    %c0_63 = arith.constant 0 : index
    %c0_64 = arith.constant 0 : index
    %86 = vector.load %arg23[%c0_63, %c0_64] : memref<64x64xf32, #tpu.memory_space<vmem>>, vector<64x64xf32>
    %87 = vector.broadcast %85 : vector<64x1xf32> to vector<64x64xf32>
    %88 = arith.mulf %87, %86 : vector<64x64xf32>
    %cst_65 = arith.constant dense<0.000000e+00> : vector<64xf32>
    %89 = vector.multi_reduction <add>, %88, %cst_65 [0] : vector<64x64xf32> to vector<64xf32>
    %90 = vector.shape_cast %89 : vector<64xf32> to vector<1x64xf32>
    %c0_66 = arith.constant 0 : index
    %c0_67 = arith.constant 0 : index
    %91 = vector.load %arg24[%c0_66, %c0_67] : memref<1x64xf32, #tpu.memory_space<vmem>>, vector<1x64xf32>
    tpu.vector_store %arg24[%c0_66, %c0_67], %90 {strides = array<i32>} : memref<1x64xf32, #tpu.memory_space<vmem>>, vector<1x64xf32>,
    return
  }
  func.func @transform_0(%arg0: i32) -> (i32, i32) {
    %c0_i32 = arith.constant 0 : i32
    %c0_i32_0 = arith.constant 0 : i32
    %c0_i32_1 = arith.constant 0 : i32
    return %c0_i32, %c0_i32_0 : i32, i32
  }
  func.func @transform_1(%arg0: i32) -> (i32, i32) {
    %c0_i32 = arith.constant 0 : i32
    %c0_i32_0 = arith.constant 0 : i32
    %c0_i32_1 = arith.constant 0 : i32
    return %c0_i32, %c0_i32_0 : i32, i32
  }
  func.func @transform_2(%arg0: i32) -> (i32, i32) {
    %c0_i32 = arith.constant 0 : i32
    %c0_i32_0 = arith.constant 0 : i32
    %c0_i32_1 = arith.constant 0 : i32
    return %c0_i32, %c0_i32_0 : i32, i32
  }
  func.func @transform_3(%arg0: i32) -> (i32, i32) {
    %c0_i32 = arith.constant 0 : i32
    %c0_i32_0 = arith.constant 0 : i32
    %c0_i32_1 = arith.constant 0 : i32
    return %c0_i32, %c0_i32_0 : i32, i32
  }
  func.func @transform_4(%arg0: i32) -> (i32, i32) {
    %c0_i32 = arith.constant 0 : i32
    %c0_i32_0 = arith.constant 0 : i32
    %c0_i32_1 = arith.constant 0 : i32
    return %c0_i32, %c0_i32_0 : i32, i32
  }
  func.func @transform_5(%arg0: i32) -> (i32, i32) {
    %c0_i32 = arith.constant 0 : i32
    %c0_i32_0 = arith.constant 0 : i32
    %c0_i32_1 = arith.constant 0 : i32
    return %c0_i32, %c0_i32_0 : i32, i32
  }
  func.func @transform_6(%arg0: i32) -> (i32, i32) {
    %c0_i32 = arith.constant 0 : i32
    %c0_i32_0 = arith.constant 0 : i32
    %c0_i32_1 = arith.constant 0 : i32
    return %c0_i32, %c0_i32_0 : i32, i32
  }
  func.func @transform_7(%arg0: i32) -> (i32, i32) {
    %c0_i32 = arith.constant 0 : i32
    %c0_i32_0 = arith.constant 0 : i32
    %c0_i32_1 = arith.constant 0 : i32
    return %c0_i32, %c0_i32_0 : i32, i32
  }
  func.func @transform_8(%arg0: i32) -> (i32, i32) {
    %c0_i32 = arith.constant 0 : i32
    %c0_i32_0 = arith.constant 0 : i32
    %c0_i32_1 = arith.constant 0 : i32
    return %c0_i32, %c0_i32_0 : i32, i32
  }
  func.func @transform_9(%arg0: i32) -> (i32, i32) {
    %c0_i32 = arith.constant 0 : i32
    %c0_i32_0 = arith.constant 0 : i32
    %c0_i32_1 = arith.constant 0 : i32
    return %c0_i32, %c0_i32_0 : i32, i32
  }
  func.func @transform_10(%arg0: i32) -> (i32, i32) {
    %c0_i32 = arith.constant 0 : i32
    %c0_i32_0 = arith.constant 0 : i32
    %c0_i32_1 = arith.constant 0 : i32
    return %c0_i32, %c0_i32_0 : i32, i32
  }
  func.func @transform_11(%arg0: i32) -> (i32, i32) {
    %c0_i32 = arith.constant 0 : i32
    %c0_i32_0 = arith.constant 0 : i32
    %c0_i32_1 = arith.constant 0 : i32
    return %c0_i32, %c0_i32_0 : i32, i32
  }
  func.func @transform_12(%arg0: i32) -> (i32, i32) {
    %c0_i32 = arith.constant 0 : i32
    %c0_i32_0 = arith.constant 0 : i32
    %c0_i32_1 = arith.constant 0 : i32
    return %c0_i32, %c0_i32_0 : i32, i32
  }
  func.func @transform_13(%arg0: i32) -> (i32, i32) {
    %c0_i32 = arith.constant 0 : i32
    %c0_i32_0 = arith.constant 0 : i32
    %c0_i32_1 = arith.constant 0 : i32
    return %c0_i32, %c0_i32_0 : i32, i32
  }
  func.func @transform_14(%arg0: i32) -> (i32, i32) {
    %c0_i32 = arith.constant 0 : i32
    %c0_i32_0 = arith.constant 0 : i32
    %c0_i32_1 = arith.constant 0 : i32
    return %c0_i32, %c0_i32_0 : i32, i32
  }
  func.func @transform_15(%arg0: i32) -> (i32, i32) {
    %c0_i32 = arith.constant 0 : i32
    %c0_i32_0 = arith.constant 0 : i32
    %c0_i32_1 = arith.constant 0 : i32
    return %c0_i32, %c0_i32_0 : i32, i32
  }
  func.func @transform_16(%arg0: i32) -> (i32, i32) {
    %c0_i32 = arith.constant 0 : i32
    %c0_i32_0 = arith.constant 0 : i32
    %c0_i32_1 = arith.constant 0 : i32
    return %c0_i32, %c0_i32_0 : i32, i32
  }
  func.func @transform_17(%arg0: i32) -> (i32, i32) {
    %c0_i32 = arith.constant 0 : i32
    %c0_i32_0 = arith.constant 0 : i32
    %c0_i32_1 = arith.constant 0 : i32
    return %c0_i32, %c0_i32_0 : i32, i32
  }
  func.func @transform_18(%arg0: i32) -> (i32, i32) {
    %c0_i32 = arith.constant 0 : i32
    %c0_i32_0 = arith.constant 0 : i32
    %c0_i32_1 = arith.constant 0 : i32
    return %c0_i32, %c0_i32_0 : i32, i32
  }
  func.func @transform_19(%arg0: i32) -> (i32, i32) {
    %c0_i32 = arith.constant 0 : i32
    %c0_i32_0 = arith.constant 0 : i32
    %c0_i32_1 = arith.constant 0 : i32
    return %c0_i32, %c0_i32_0 : i32, i32
  }
  func.func @transform_20(%arg0: i32) -> (i32, i32) {
    %c0_i32 = arith.constant 0 : i32
    %c0_i32_0 = arith.constant 0 : i32
    %c0_i32_1 = arith.constant 0 : i32
    return %c0_i32, %c0_i32_0 : i32, i32
  }
  func.func @transform_21(%arg0: i32) -> (i32, i32) {
    %c0_i32 = arith.constant 0 : i32
    %c0_i32_0 = arith.constant 0 : i32
    %c0_i32_1 = arith.constant 0 : i32
    return %c0_i32, %c0_i32_0 : i32, i32
  }
  func.func @transform_22(%arg0: i32) -> (i32, i32) {
    %c0_i32 = arith.constant 0 : i32
    %c0_i32_0 = arith.constant 0 : i32
    %c0_i32_1 = arith.constant 0 : i32
    return %c0_i32, %c0_i32_0 : i32, i32
  }
  func.func @transform_23(%arg0: i32) -> (i32, i32) {
    %c0_i32 = arith.constant 0 : i32
    %c0_i32_0 = arith.constant 0 : i32
    %c0_i32_1 = arith.constant 0 : i32
    return %c0_i32, %c0_i32_0 : i32, i32
  }
}

</mosaic_0001>

<llo_original>
// kernel: tile.9
$region0: #{tile.9}
  %s0 = inlined_call_operand.vmem [shape: f32[9,31,31], index: 0, kind: input, shape index: {}]
  %s1 = inlined_call_operand.vmem [shape: f32[279,31], index: 1, kind: output, shape index: {}]
  %v2 = vld [vmem:[%s0] sm:$0xff]
  %vm3 = vcmask 252928
  %4 = vst.msk [vmem:[%s1] sm:$0xff] %vm3, %v2
  %s5 = scalar_lea.vmem %s0, 8
  %v6 = vld [vmem:[%s5] sm:$0xff]
  %vm7 = vcmask 252928
  %s8 = scalar_lea.vmem %s1, 8
  %9 = vst.msk [vmem:[%s8] sm:$0xff] %vm7, %v6
  %s10 = scalar_lea.vmem %s0, 16
  %v11 = vld [vmem:[%s10] sm:$0xff]
  %vm12 = vcmask 252928
  %s13 = scalar_lea.vmem %s1, 16
  %14 = vst.msk [vmem:[%s13] sm:$0xff] %vm12, %v11
  %s15 = scalar_lea.vmem %s0, 24
  %v16 = vld [vmem:[%s15] sm:$0x7f]
  %vm17 = vcmask 252928
  %s18 = scalar_lea.vmem %s1, 24
  %19 = vst.msk [vmem:[%s18] sm:$0x7f] %vm17, %v16
  %s20 = scalar_lea.vmem %s0, 32
  %v21 = vld [vmem:[%s20] sm:$0xff]
  %vm22 = vcmask 252928
  %s23 = scalar_lea.vmem %s1, 31
  %24 = vst.msk [vmem:[%s23] sm:$0xff] %vm22, %v21
  %s25 = scalar_lea.vmem %s0, 40
  %v26 = vld [vmem:[%s25] sm:$0xff]
  %vm27 = vcmask 252928
  %s28 = scalar_lea.vmem %s1, 39
  %29 = vst.msk [vmem:[%s28] sm:$0xff] %vm27, %v26
  %s30 = scalar_lea.vmem %s0, 48
  %v31 = vld [vmem:[%s30] sm:$0xff]
  %vm32 = vcmask 252928
  %s33 = scalar_lea.vmem %s1, 47
  %34 = vst.msk [vmem:[%s33] sm:$0xff] %vm32, %v31
  %s35 = scalar_lea.vmem %s0, 56
  %v36 = vld [vmem:[%s35] sm:$0x7f]
  %vm37 = vcmask 252928
  %s38 = scalar_lea.vmem %s1, 55
  %39 = vst.msk [vmem:[%s38] sm:$0x7f] %vm37, %v36
  %s40 = scalar_lea.vmem %s0, 64
  %v41 = vld [vmem:[%s40] sm:$0xff]
  %vm42 = vcmask 252928
  %s43 = scalar_lea.vmem %s1, 62
  %44 = vst.msk [vmem:[%s43] sm:$0xff] %vm42, %v41
  %s45 = scalar_lea.vmem %s0, 72
  %v46 = vld [vmem:[%s45] sm:$0xff]
  %vm47 = vcmask 252928
  %s48 = scalar_lea.vmem %s1, 70
  %49 = vst.msk [vmem:[%s48] sm:$0xff] %vm47, %v46
  %s50 = scalar_lea.vmem %s0, 80
  %v51 = vld [vmem:[%s50] sm:$0xff]
  %vm52 = vcmask 252928
  %s53 = scalar_lea.vmem %s1, 78
  %54 = vst.msk [vmem:[%s53] sm:$0xff] %vm52, %v51
  %s55 = scalar_lea.vmem %s0, 88
  %v56 = vld [vmem:[%s55] sm:$0x7f]
  %vm57 = vcmask 252928
  %s58 = scalar_lea.vmem %s1, 86
  %59 = vst.msk [vmem:[%s58] sm:$0x7f] %vm57, %v56
  %s60 = scalar_lea.vmem %s0, 96
  %v61 = vld [vmem:[%s60] sm:$0xff]
  %vm62 = vcmask 252928
  %s63 = scalar_lea.vmem %s1, 93
  %64 = vst.msk [vmem:[%s63] sm:$0xff] %vm62, %v61
  %s65 = scalar_lea.vmem %s0, 104
  %v66 = vld [vmem:[%s65] sm:$0xff]
  %vm67 = vcmask 252928
  %s68 = scalar_lea.vmem %s1, 101
  %69 = vst.msk [vmem:[%s68] sm:$0xff] %vm67, %v66
  %s70 = scalar_lea.vmem %s0, 112
  %v71 = vld [vmem:[%s70] sm:$0xff]
  %vm72 = vcmask 252928
  %s73 = scalar_lea.vmem %s1, 109
  %74 = vst.msk [vmem:[%s73] sm:$0xff] %vm72, %v71
  %s75 = scalar_lea.vmem %s0, 120
  %v76 = vld [vmem:[%s75] sm:$0x7f]
  %vm77 = vcmask 252928
  %s78 = scalar_lea.vmem %s1, 117
  %79 = vst.msk [vmem:[%s78] sm:$0x7f] %vm77, %v76
  %s80 = scalar_lea.vmem %s0, 128
  %v81 = vld [vmem:[%s80] sm:$0xff]
  %vm82 = vcmask 252928
  %s83 = scalar_lea.vmem %s1, 124
  %84 = vst.msk [vmem:[%s83] sm:$0xff] %vm82, %v81
  %s85 = scalar_lea.vmem %s0, 136
  %v86 = vld [vmem:[%s85] sm:$0xff]
  %vm87 = vcmask 252928
  %s88 = scalar_lea.vmem %s1, 132
  %89 = vst.msk [vmem:[%s88] sm:$0xff] %vm87, %v86
  %s90 = scalar_lea.vmem %s0, 144
  %v91 = vld [vmem:[%s90] sm:$0xff]
  %vm92 = vcmask 252928
  %s93 = scalar_lea.vmem %s1, 140
  %94 = vst.msk [vmem:[%s93] sm:$0xff] %vm92, %v91
  %s95 = scalar_lea.vmem %s0, 152
  %v96 = vld [vmem:[%s95] sm:$0x7f]
  %vm97 = vcmask 252928
  %s98 = scalar_lea.vmem %s1, 148
  %99 = vst.msk [vmem:[%s98] sm:$0x7f] %vm97, %v96
  %s100 = scalar_lea.vmem %s0, 160
  %v101 = vld [vmem:[%s100] sm:$0xff]
  %vm102 = vcmask 252928
  %s103 = scalar_lea.vmem %s1, 155
  %104 = vst.msk [vmem:[%s103] sm:$0xff] %vm102, %v101
  %s105 = scalar_lea.vmem %s0, 168
  %v106 = vld [vmem:[%s105] sm:$0xff]
  %vm107 = vcmask 252928
  %s108 = scalar_lea.vmem %s1, 163
  %109 = vst.msk [vmem:[%s108] sm:$0xff] %vm107, %v106
  %s110 = scalar_lea.vmem %s0, 176
  %v111 = vld [vmem:[%s110] sm:$0xff]
  %vm112 = vcmask 252928
  %s113 = scalar_lea.vmem %s1, 171
  %114 = vst.msk [vmem:[%s113] sm:$0xff] %vm112, %v111
  %s115 = scalar_lea.vmem %s0, 184
  %v116 = vld [vmem:[%s115] sm:$0x7f]
  %vm117 = vcmask 252928
  %s118 = scalar_lea.vmem %s1, 179
  %119 = vst.msk [vmem:[%s118] sm:$0x7f] %vm117, %v116
  %s120 = scalar_lea.vmem %s0, 192
  %v121 = vld [vmem:[%s120] sm:$0xff]
  %vm122 = vcmask 252928
  %s123 = scalar_lea.vmem %s1, 186
  %124 = vst.msk [vmem:[%s123] sm:$0xff] %vm122, %v121
  %s125 = scalar_lea.vmem %s0, 200
  %v126 = vld [vmem:[%s125] sm:$0xff]
  %vm127 = vcmask 252928
  %s128 = scalar_lea.vmem %s1, 194
  %129 = vst.msk [vmem:[%s128] sm:$0xff] %vm127, %v126
  %s130 = scalar_lea.vmem %s0, 208
  %v131 = vld [vmem:[%s130] sm:$0xff]
  %vm132 = vcmask 252928
  %s133 = scalar_lea.vmem %s1, 202
  %134 = vst.msk [vmem:[%s133] sm:$0xff] %vm132, %v131
  %s135 = scalar_lea.vmem %s0, 216
  %v136 = vld [vmem:[%s135] sm:$0x7f]
  %vm137 = vcmask 252928
  %s138 = scalar_lea.vmem %s1, 210
  %139 = vst.msk [vmem:[%s138] sm:$0x7f] %vm137, %v136
  %s140 = scalar_lea.vmem %s0, 224
  %v141 = vld [vmem:[%s140] sm:$0xff]
  %vm142 = vcmask 252928
  %s143 = scalar_lea.vmem %s1, 217
  %144 = vst.msk [vmem:[%s143] sm:$0xff] %vm142, %v141
  %s145 = scalar_lea.vmem %s0, 232
  %v146 = vld [vmem:[%s145] sm:$0xff]
  %vm147 = vcmask 252928
  %s148 = scalar_lea.vmem %s1, 225
  %149 = vst.msk [vmem:[%s148] sm:$0xff] %vm147, %v146
  %s150 = scalar_lea.vmem %s0, 240
  %v151 = vld [vmem:[%s150] sm:$0xff]
  %vm152 = vcmask 252928
  %s153 = scalar_lea.vmem %s1, 233
  %154 = vst.msk [vmem:[%s153] sm:$0xff] %vm152, %v151
  %s155 = scalar_lea.vmem %s0, 248
  %v156 = vld [vmem:[%s155] sm:$0x7f]
  %vm157 = vcmask 252928
  %s158 = scalar_lea.vmem %s1, 241
  %159 = vst.msk [vmem:[%s158] sm:$0x7f] %vm157, %v156
  %s160 = scalar_lea.vmem %s0, 256
  %v161 = vld [vmem:[%s160] sm:$0xff]
  %vm162 = vcmask 252928
  %s163 = scalar_lea.vmem %s1, 248
  %164 = vst.msk [vmem:[%s163] sm:$0xff] %vm162, %v161
  %s165 = scalar_lea.vmem %s0, 264
  %v166 = vld [vmem:[%s165] sm:$0xff]
  %vm167 = vcmask 252928
  %s168 = scalar_lea.vmem %s1, 256
  %169 = vst.msk [vmem:[%s168] sm:$0xff] %vm167, %v166
  %s170 = scalar_lea.vmem %s0, 272
  %v171 = vld [vmem:[%s170] sm:$0xff]
  %vm172 = vcmask 252928
  %s173 = scalar_lea.vmem %s1, 264
  %174 = vst.msk [vmem:[%s173] sm:$0xff] %vm172, %v171
  %s175 = scalar_lea.vmem %s0, 280
  %v176 = vld [vmem:[%s175] sm:$0x7f]
  %vm177 = vcmask 252928
  %s178 = scalar_lea.vmem %s1, 272
  %179 = vst.msk [vmem:[%s178] sm:$0x7f] %vm177, %v176

// kernel: eq.26
$region0: #{eq.26}
  %s0 = inlined_call_operand.vmem [shape: s32[2,4,8], index: 0, kind: input, shape index: {}]
  %s1 = inlined_call_operand.vmem [shape: s32[64], index: 1, kind: output, shape index: {}]
  $region1: #{eq.26} parent=0
    #allocation0 [shape = 'u8[4096]{0}', space=vmem, size = 0x1000, scoped, tag = 'scoped mem for output reshape']
    #allocation1 [shape = 'u8[8192]{0}', space=vmem, size = 0x2000, scoped, tag = 'scoped mem for input reshape']
    %s3 = sshll.u32 1, 4
    %s4 = ssub.s32 %s3, 1
    %s5 = scalar_lea.vmem %s0, 4
    %v6 = vld [vmem:[%s5] sm:%s4]
    %s7 = scalar_lea.vmem [#allocation1], 8
    %8 = vst [vmem:[%s7] sm:%s4] %v6
    %v9 = vld [vmem:[%s0] sm:%s4]
    %10 = vst [vmem:[#allocation1] sm:%s4] %v9
    %v11 = vld [vmem:[#allocation1] sm:$0x1]
    %vm12 = vcmask 64512
    %13 = vst.msk [vmem:[#allocation0] sm:$0x1] %vm12, %v11
    %s14 = scalar_lea.vmem [#allocation1], 11
    %v15 = vld [vmem:[%s14] sm:$0x1]
    %16 = vrot.lane.b32.xlu0 %v15, 56
    %v17 = vpop.permute.xlu0 %16
    %vm18 = vcmask 523712
    %19 = vst.msk [vmem:[#allocation0] sm:$0x1] %vm18, %v17
    %s20 = scalar_lea.vmem [#allocation1], 10
    %v21 = vld [vmem:[%s20] sm:$0x1]
    %22 = vrot.lane.b32.xlu0 %v21, 48
    %v23 = vpop.permute.xlu0 %22
    %vm24 = vcmask 458112
    %25 = vst.msk [vmem:[#allocation0] sm:$0x1] %vm24, %v23
    %s26 = scalar_lea.vmem [#allocation1], 9
    %v27 = vld [vmem:[%s26] sm:$0x1]
    %28 = vrot.lane.b32.xlu0 %v27, 40
    %v29 = vpop.permute.xlu0 %28
    %vm30 = vcmask 392512
    %31 = vst.msk [vmem:[#allocation0] sm:$0x1] %vm30, %v29
    %s32 = scalar_lea.vmem [#allocation1], 8
    %v33 = vld [vmem:[%s32] sm:$0x1]
    %34 = vrot.lane.b32.xlu0 %v33, 32
    %v35 = vpop.permute.xlu0 %34
    %vm36 = vcmask 326912
    %37 = vst.msk [vmem:[#allocation0] sm:$0x1] %vm36, %v35
    %s38 = scalar_lea.vmem [#allocation1], 3
    %v39 = vld [vmem:[%s38] sm:$0x1]
    %40 = vrot.lane.b32.xlu0 %v39, 24
    %v41 = vpop.permute.xlu0 %40
    %vm42 = vcmask 261312
    %43 = vst.msk [vmem:[#allocation0] sm:$0x1] %vm42, %v41
    %s44 = scalar_lea.vmem [#allocation1], 2
    %v45 = vld [vmem:[%s44] sm:$0x1]
    %46 = vrot.lane.b32.xlu0 %v45, 16
    %v47 = vpop.permute.xlu0 %46
    %vm48 = vcmask 195712
    %49 = vst.msk [vmem:[#allocation0] sm:$0x1] %vm48, %v47
    %s50 = scalar_lea.vmem [#allocation1], 1
    %v51 = vld [vmem:[%s50] sm:$0x1]
    %52 = vrot.lane.b32.xlu0 %v51, 8
    %v53 = vpop.permute.xlu0 %52
    %vm54 = vcmask 130112
    %55 = vst.msk [vmem:[#allocation0] sm:$0x1] %vm54, %v53
    %s57 = sshll.u32 1, 1
    %s58 = ssub.s32 %s57, 1
    %v60 = vld [vmem:[#allocation0] sm:%s58]
    %s61 = sshll.u32 1, 1
    %s62 = ssub.s32 %s61, 1
    %63 = vst [vmem:[%s1] sm:%s62] %v60

// kernel: squeeze.1
$region0: #{squeeze.1}
  %s0 = inlined_call_operand.vmem [shape: f32[9,31], index: 0, kind: input, shape index: {}]
  %s1 = inlined_call_operand.vmem [shape: f32[1,279], index: 1, kind: output, shape index: {}]
  $region1: #{squeeze.1} parent=0
    #allocation0 [shape = 'u8[12288]{0}', space=vmem, size = 0x3000, scoped, tag = 'scoped mem for output reshape']
    %v2 = vld [vmem:[%s0] sm:$0x1]
    %vm3 = vcmask 252928
    %4 = vst.msk [vmem:[#allocation0] sm:$0x1] %vm3, %v2
    %s5 = scalar_lea.vmem %s0, 4
    %v6 = vld [vmem:[%s5] sm:$0x1]
    %s7 = scalar_lea.vmem %s0, 4
    %v8 = vld [vmem:[%s7] sm:$0x1]
    %vm9 = vcmask 31744
    %v10 = vsel %vm9, %v8, %v6
    %11 = vrot.lane.b32.xlu0 %v10, 124
    %v12 = vpop.permute.xlu0 %11
    %vm13 = vcmask 220160
    %s14 = scalar_lea.vmem [#allocation0], 8
    %15 = vst.msk [vmem:[%s14] sm:$0x1] %vm13, %v12
    %vm16 = vcmask 1048544
    %17 = vst.msk [vmem:[#allocation0] sm:$0x1] %vm16, %v12
    %s18 = scalar_lea.vmem %s0, 8
    %v19 = vld [vmem:[%s18] sm:$0x1]
    %s20 = scalar_lea.vmem %s0, 8
    %v21 = vld [vmem:[%s20] sm:$0x1]
    %vm22 = vcmask 64512
    %v23 = vsel %vm22, %v21, %v19
    %24 = vrot.lane.b32.xlu0 %v23, 120
    %v25 = vpop.permute.xlu0 %24
    %vm26 = vcmask 187392
    %s27 = scalar_lea.vmem [#allocation0], 16
    %28 = vst.msk [vmem:[%s27] sm:$0x1] %vm26, %v25
    %vm29 = vcmask 1048512
    %s30 = scalar_lea.vmem [#allocation0], 8
    %31 = vst.msk [vmem:[%s30] sm:$0x1] %vm29, %v25
    %s32 = scalar_lea.vmem %s0, 3
    %v33 = vld [vmem:[%s32] sm:$0x1]
    %34 = vrot.lane.b32.xlu0 %v33, 93
    %v35 = vpop.permute.xlu0 %34
    %vm36 = vcmask 1015528
    %37 = vst.msk [vmem:[#allocation0] sm:$0x1] %vm36, %v35
    %s38 = scalar_lea.vmem %s0, 7
    %v39 = vld [vmem:[%s38] sm:$0x1]
    %40 = vrot.lane.b32.xlu0 %v39, 89
    %v41 = vpop.permute.xlu0 %40
    %vm42 = vcmask 982728
    %s43 = scalar_lea.vmem [#allocation0], 8
    %44 = vst.msk [vmem:[%s43] sm:$0x1] %vm42, %v41
    %s45 = scalar_lea.vmem %s0, 2
    %v46 = vld [vmem:[%s45] sm:$0x1]
    %47 = vrot.lane.b32.xlu0 %v46, 62
    %v48 = vpop.permute.xlu0 %47
    %vm49 = vcmask 761328
    %50 = vst.msk [vmem:[#allocation0] sm:$0x1] %vm49, %v48
    %s51 = scalar_lea.vmem %s0, 6
    %v52 = vld [vmem:[%s51] sm:$0x1]
    %53 = vrot.lane.b32.xlu0 %v52, 58
    %v54 = vpop.permute.xlu0 %53
    %vm55 = vcmask 728528
    %s56 = scalar_lea.vmem [#allocation0], 8
    %57 = vst.msk [vmem:[%s56] sm:$0x1] %vm55, %v54
    %s58 = scalar_lea.vmem %s0, 1
    %v59 = vld [vmem:[%s58] sm:$0x1]
    %60 = vrot.lane.b32.xlu0 %v59, 31
    %v61 = vpop.permute.xlu0 %60
    %vm62 = vcmask 507128
    %63 = vst.msk [vmem:[#allocation0] sm:$0x1] %vm62, %v61
    %s64 = scalar_lea.vmem %s0, 5
    %v65 = vld [vmem:[%s64] sm:$0x1]
    %66 = vrot.lane.b32.xlu0 %v65, 27
    %v67 = vpop.permute.xlu0 %66
    %vm68 = vcmask 474328
    %s69 = scalar_lea.vmem [#allocation0], 8
    %70 = vst.msk [vmem:[%s69] sm:$0x1] %vm68, %v67
    %s72 = sshll.u32 1, 1
    %s73 = ssub.s32 %s72, 1
    %v75 = vld [vmem:[#allocation0] sm:%s73]
    %s76 = sshll.u32 1, 1
    %s77 = ssub.s32 %s76, 1
    %78 = vst [vmem:[%s1] sm:%s77] %v75
    %s79 = scalar_lea.vmem [#allocation0], 8
    %v80 = vld [vmem:[%s79] sm:%s73]
    %s81 = sshll.u32 1, 1
    %s82 = ssub.s32 %s81, 1
    %s83 = scalar_lea.vmem %s1, 1
    %84 = vst [vmem:[%s83] sm:%s82] %v80
    %s85 = scalar_lea.vmem [#allocation0], 16
    %v86 = vld [vmem:[%s85] sm:%s73]
    %s87 = sshll.u32 1, 1
    %s88 = ssub.s32 %s87, 1
    %s89 = smul.addr 1, 2
    %s90 = scalar_lea.vmem %s1, %s89
    %91 = vst [vmem:[%s90] sm:%s88] %v86

// kernel: visionts_forward.1
$region0: #{visionts_forward.1}
  #allocation0 [shape = 'u32[]', space=smem, size = 0x4, offset = 0x4, fixed_abs, tag = 'smem constant byte address 0x4 - core index']
  #allocation1 [shape = 'u32[144,128]{1,0:T(1,128)}', space=vmem, size = 0x12000, scoped, tag = 'internal scratch']
  #allocation2 [shape = 'f32[1,1]{1,0:T(1,128)S(1)}', space=vmem, size = 0x200, scoped, tag = 'scoped memory for visionts_forward.1']
  %s0 = inlined_call_operand.vmem [shape: f32[192,9], index: 0, kind: input, shape index: {}]
  %s1 = inlined_call_operand.vmem [shape: f32[192,1], index: 1, kind: input, shape index: {}]
  %s2 = inlined_call_operand.vmem [shape: f32[24,31], index: 2, kind: input, shape index: {}]
  %s3 = inlined_call_operand.vmem [shape: f32[64,8], index: 3, kind: input, shape index: {}]
  %s4 = inlined_call_operand.vmem [shape: f32[64,24], index: 4, kind: input, shape index: {}]
  %s5 = inlined_call_operand.vmem [shape: f32[9,31], index: 5, kind: input, shape index: {}]
  %s6 = inlined_call_operand.vmem [shape: f32[1,31], index: 6, kind: input, shape index: {}]
  %s7 = inlined_call_operand.vmem [shape: f32[31,31], index: 7, kind: input, shape index: {}]
  %s8 = inlined_call_operand.vmem [shape: f32[1,31], index: 8, kind: input, shape index: {}]
  %s9 = inlined_call_operand.vmem [shape: f32[31,279], index: 9, kind: input, shape index: {}]
  %s10 = inlined_call_operand.vmem [shape: f32[1,279], index: 10, kind: input, shape index: {}]
  %s11 = inlined_call_operand.vmem [shape: f32[9,279], index: 11, kind: input, shape index: {}]
  %s12 = inlined_call_operand.vmem [shape: f32[279,31], index: 12, kind: input, shape index: {}]
  %s13 = inlined_call_operand.vmem [shape: f32[1,31], index: 13, kind: input, shape index: {}]
  %s14 = inlined_call_operand.vmem [shape: f32[31,24], index: 14, kind: input, shape index: {}]
  %s15 = inlined_call_operand.vmem [shape: f32[1,24], index: 15, kind: input, shape index: {}]
  %s16 = inlined_call_operand.vmem [shape: f32[1,24], index: 16, kind: input, shape index: {}]
  %s17 = inlined_call_operand.vmem [shape: f32[8,32], index: 17, kind: input, shape index: {}]
  %s18 = inlined_call_operand.vmem [shape: f32[24,32], index: 18, kind: input, shape index: {}]
  %s19 = inlined_call_operand.vmem [shape: f32[1,32], index: 19, kind: input, shape index: {}]
  %s20 = inlined_call_operand.vmem [shape: f32[32,1], index: 20, kind: input, shape index: {}]
  %s21 = inlined_call_operand.<no memory space> [shape: f32[1,1], index: 21, kind: input, shape index: {}]
  %s22 = inlined_call_operand.vmem [shape: f32[64,64], index: 22, kind: input, shape index: {}]
  %s23 = inlined_call_operand.vmem [shape: f32[1,64], index: 23, kind: output, shape index: {}]
  %s24 = sld [smem:[#allocation0]]
  $region102: #{visionts_forward.1} parent=0
    _
  %s26 = ssub.s32 1, %s24
  %s27 = scalar_select 0, %s26, %s24
  %v28 = vstv %s21
  %29 = vst [vmem:[#allocation2] sm:$0x1] %v28
  // Predicated region
  $region2: #{visionts_forward.1} parent=0 // pred_check
    _
  $region3: #{visionts_forward.1} parent=0 // pred_check_branch
    %31 = sbr.rel (0) target = $region5
  $region4: #{visionts_forward.1} parent=0 // pred_region
    _
  $region5: #{visionts_forward.1} parent=0 // pred_fallthru
    _
  // Predicated region
  $region6: #{visionts_forward.1} parent=0 // pred_check
    _
  $region7: #{visionts_forward.1} parent=0 // pred_check_branch
    %33 = sbr.rel (0) target = $region9
  $region8: #{visionts_forward.1} parent=0 // pred_region
    _
  $region9: #{visionts_forward.1} parent=0 // pred_fallthru
    _
  // Predicated region
  $region10: #{visionts_forward.1} parent=0 // pred_check
    _
  $region11: #{visionts_forward.1} parent=0 // pred_check_branch
    %35 = sbr.rel (0) target = $region13
  $region12: #{visionts_forward.1} parent=0 // pred_region
    _
  $region13: #{visionts_forward.1} parent=0 // pred_fallthru
    _
  // Predicated region
  $region14: #{visionts_forward.1} parent=0 // pred_check
    _
  $region15: #{visionts_forward.1} parent=0 // pred_check_branch
    %37 = sbr.rel (0) target = $region17
  $region16: #{visionts_forward.1} parent=0 // pred_region
    _
  $region17: #{visionts_forward.1} parent=0 // pred_fallthru
    _
  // Predicated region
  $region18: #{visionts_forward.1} parent=0 // pred_check
    _
  $region19: #{visionts_forward.1} parent=0 // pred_check_branch
    %39 = sbr.rel (0) target = $region21
  $region20: #{visionts_forward.1} parent=0 // pred_region
    _
  $region21: #{visionts_forward.1} parent=0 // pred_fallthru
    _
  // Predicated region
  $region22: #{visionts_forward.1} parent=0 // pred_check
    _
  $region23: #{visionts_forward.1} parent=0 // pred_check_branch
    %41 = sbr.rel (0) target = $region25
  $region24: #{visionts_forward.1} parent=0 // pred_region
    _
  $region25: #{visionts_forward.1} parent=0 // pred_fallthru
    _
  // Predicated region
  $region26: #{visionts_forward.1} parent=0 // pred_check
    _
  $region27: #{visionts_forward.1} parent=0 // pred_check_branch
    %43 = sbr.rel (0) target = $region29
  $region28: #{visionts_forward.1} parent=0 // pred_region
    _
  $region29: #{visionts_forward.1} parent=0 // pred_fallthru
    _
  // Predicated region
  $region30: #{visionts_forward.1} parent=0 // pred_check
    _
  $region31: #{visionts_forward.1} parent=0 // pred_check_branch
    %45 = sbr.rel (0) target = $region33
  $region32: #{visionts_forward.1} parent=0 // pred_region
    _
  $region33: #{visionts_forward.1} parent=0 // pred_fallthru
    _
  // Predicated region
  $region34: #{visionts_forward.1} parent=0 // pred_check
    _
  $region35: #{visionts_forward.1} parent=0 // pred_check_branch
    %47 = sbr.rel (0) target = $region37
  $region36: #{visionts_forward.1} parent=0 // pred_region
    _
  $region37: #{visionts_forward.1} parent=0 // pred_fallthru
    _
  // Predicated region
  $region38: #{visionts_forward.1} parent=0 // pred_check
    _
  $region39: #{visionts_forward.1} parent=0 // pred_check_branch
    %49 = sbr.rel (0) target = $region41
  $region40: #{visionts_forward.1} parent=0 // pred_region
    _
  $region41: #{visionts_forward.1} parent=0 // pred_fallthru
    _
  // Predicated region
  $region42: #{visionts_forward.1} parent=0 // pred_check
    _
  $region43: #{visionts_forward.1} parent=0 // pred_check_branch
    %51 = sbr.rel (0) target = $region45
  $region44: #{visionts_forward.1} parent=0 // pred_region
    _
  $region45: #{visionts_forward.1} parent=0 // pred_fallthru
    _
  // Predicated region
  $region46: #{visionts_forward.1} parent=0 // pred_check
    _
  $region47: #{visionts_forward.1} parent=0 // pred_check_branch
    %53 = sbr.rel (0) target = $region49
  $region48: #{visionts_forward.1} parent=0 // pred_region
    _
  $region49: #{visionts_forward.1} parent=0 // pred_fallthru
    _
  // Predicated region
  $region50: #{visionts_forward.1} parent=0 // pred_check
    _
  $region51: #{visionts_forward.1} parent=0 // pred_check_branch
    %55 = sbr.rel (0) target = $region53
  $region52: #{visionts_forward.1} parent=0 // pred_region
    _
  $region53: #{visionts_forward.1} parent=0 // pred_fallthru
    _
  // Predicated region
  $region54: #{visionts_forward.1} parent=0 // pred_check
    _
  $region55: #{visionts_forward.1} parent=0 // pred_check_branch
    %57 = sbr.rel (0) target = $region57
  $region56: #{visionts_forward.1} parent=0 // pred_region
    _
  $region57: #{visionts_forward.1} parent=0 // pred_fallthru
    _
  // Predicated region
  $region58: #{visionts_forward.1} parent=0 // pred_check
    _
  $region59: #{visionts_forward.1} parent=0 // pred_check_branch
    %59 = sbr.rel (0) target = $region61
  $region60: #{visionts_forward.1} parent=0 // pred_region
    _
  $region61: #{visionts_forward.1} parent=0 // pred_fallthru
    _
  // Predicated region
  $region62: #{visionts_forward.1} parent=0 // pred_check
    _
  $region63: #{visionts_forward.1} parent=0 // pred_check_branch
    %61 = sbr.rel (0) target = $region65
  $region64: #{visionts_forward.1} parent=0 // pred_region
    _
  $region65: #{visionts_forward.1} parent=0 // pred_fallthru
    _
  // Predicated region
  $region66: #{visionts_forward.1} parent=0 // pred_check
    _
  $region67: #{visionts_forward.1} parent=0 // pred_check_branch
    %63 = sbr.rel (0) target = $region69
  $region68: #{visionts_forward.1} parent=0 // pred_region
    _
  $region69: #{visionts_forward.1} parent=0 // pred_fallthru
    _
  // Predicated region
  $region70: #{visionts_forward.1} parent=0 // pred_check
    _
  $region71: #{visionts_forward.1} parent=0 // pred_check_branch
    %65 = sbr.rel (0) target = $region73
  $region72: #{visionts_forward.1} parent=0 // pred_region
    _
  $region73: #{visionts_forward.1} parent=0 // pred_fallthru
    _
  // Predicated region
  $region74: #{visionts_forward.1} parent=0 // pred_check
    _
  $region75: #{visionts_forward.1} parent=0 // pred_check_branch
    %67 = sbr.rel (0) target = $region77
  $region76: #{visionts_forward.1} parent=0 // pred_region
    _
  $region77: #{visionts_forward.1} parent=0 // pred_fallthru
    _
  // Predicated region
  $region78: #{visionts_forward.1} parent=0 // pred_check
    _
  $region79: #{visionts_forward.1} parent=0 // pred_check_branch
    %69 = sbr.rel (0) target = $region81
  $region80: #{visionts_forward.1} parent=0 // pred_region
    _
  $region81: #{visionts_forward.1} parent=0 // pred_fallthru
    _
  // Predicated region
  $region82: #{visionts_forward.1} parent=0 // pred_check
    _
  $region83: #{visionts_forward.1} parent=0 // pred_check_branch
    %71 = sbr.rel (0) target = $region85
  $region84: #{visionts_forward.1} parent=0 // pred_region
    _
  $region85: #{visionts_forward.1} parent=0 // pred_fallthru
    _
  // Predicated region
  $region86: #{visionts_forward.1} parent=0 // pred_check
    _
  $region87: #{visionts_forward.1} parent=0 // pred_check_branch
    %73 = sbr.rel (0) target = $region89
  $region88: #{visionts_forward.1} parent=0 // pred_region
    _
  $region89: #{visionts_forward.1} parent=0 // pred_fallthru
    _
  // Predicated region
  $region90: #{visionts_forward.1} parent=0 // pred_check
    _
  $region91: #{visionts_forward.1} parent=0 // pred_check_branch
    %75 = sbr.rel (0) target = $region93
  $region92: #{visionts_forward.1} parent=0 // pred_region
    _
  $region93: #{visionts_forward.1} parent=0 // pred_fallthru
    _
  %v76 = vld [vmem:[%s0] sm:$0xff]
  %v77 = vld [vmem:[%s0 + $0x8] sm:$0xff]
  %v78 = vld [vmem:[%s0 + $0x10] sm:$0xff]
  %v79 = vld [vmem:[%s0 + $0x18] sm:$0xff]
  %v80 = vld [vmem:[%s0 + $0x20] sm:$0xff]
  %v81 = vld [vmem:[%s0 + $0x28] sm:$0xff]
  %v82 = vld [vmem:[%s0 + $0x30] sm:$0xff]
  %v83 = vld [vmem:[%s0 + $0x38] sm:$0xff]
  %v84 = vld [vmem:[%s0 + $0x40] sm:$0xff]
  %v85 = vld [vmem:[%s0 + $0x48] sm:$0xff]
  %v86 = vld [vmem:[%s0 + $0x50] sm:$0xff]
  %v87 = vld [vmem:[%s0 + $0x58] sm:$0xff]
  %v88 = vld [vmem:[%s0 + $0x60] sm:$0xff]
  %v89 = vld [vmem:[%s0 + $0x68] sm:$0xff]
  %v90 = vld [vmem:[%s0 + $0x70] sm:$0xff]
  %v91 = vld [vmem:[%s0 + $0x78] sm:$0xff]
  %v92 = vld [vmem:[%s0 + $0x80] sm:$0xff]
  %v93 = vld [vmem:[%s0 + $0x88] sm:$0xff]
  %v94 = vld [vmem:[%s0 + $0x90] sm:$0xff]
  %v95 = vld [vmem:[%s0 + $0x98] sm:$0xff]
  %v96 = vld [vmem:[%s0 + $0xa0] sm:$0xff]
  %v97 = vld [vmem:[%s0 + $0xa8] sm:$0xff]
  %v98 = vld [vmem:[%s0 + $0xb0] sm:$0xff]
  %v99 = vld [vmem:[%s0 + $0xb8] sm:$0xff]
  %v100 = vld [vmem:[%s5] sm:$0xff]
  %v101 = vld [vmem:[%s5 + $0x8] sm:$0x1]
  %v102 = vld [vmem:[%s6] sm:$0x1]
  %v104 = vlaneseq
  %v105 = vshrl.u32 %v104, 7
  %v106 = vsub.s32 0, %v105
  %v107 = vrot.slane %v102, %v106
  %vm109 = vcmask 72704
  %v111 = vsel %vm109, %v76, 0
  %v114 = vsel %vm109, %v77, 0
  %v117 = vsel %vm109, %v78, 0
  %v120 = vsel %vm109, %v79, 0
  %v123 = vsel %vm109, %v80, 0
  %v126 = vsel %vm109, %v81, 0
  %v129 = vsel %vm109, %v82, 0
  %v132 = vsel %vm109, %v83, 0
  %v135 = vsel %vm109, %v84, 0
  %v138 = vsel %vm109, %v85, 0
  %v141 = vsel %vm109, %v86, 0
  %v144 = vsel %vm109, %v87, 0
  %v147 = vsel %vm109, %v88, 0
  %v150 = vsel %vm109, %v89, 0
  %v153 = vsel %vm109, %v90, 0
  %v156 = vsel %vm109, %v91, 0
  %v159 = vsel %vm109, %v92, 0
  %v162 = vsel %vm109, %v93, 0
  %v165 = vsel %vm109, %v94, 0
  %v168 = vsel %vm109, %v95, 0
  %v171 = vsel %vm109, %v96, 0
  %v174 = vsel %vm109, %v97, 0
  %v177 = vsel %vm109, %v98, 0
  %v180 = vsel %vm109, %v99, 0
  %vm182 = vcmask 1040384
  %v184 = vsel %vm182, %v101, 0
  %186 = vmatprep.subr.mxu0 0.0
  %187 = vmatpush1.msra.mxu0 0.0
  %188 = vmatprep.subr.mxu0 0.0
  %189 = vmatpush1.msra.mxu0 0.0
  %190 = vmatprep.subr.mxu0 0.0
  %191 = vmatpush1.msra.mxu0 0.0
  %192 = vmatprep.subr.mxu0 0.0
  %193 = vmatpush1.msra.mxu0 0.0
  %194 = vmatprep.subr.mxu0 0.0
  %195 = vmatpush1.msra.mxu0 0.0
  %196 = vmatprep.subr.mxu0 0.0
  %197 = vmatpush1.msra.mxu0 0.0
  %198 = vmatprep.subr.mxu0 0.0
  %199 = vmatpush1.msra.mxu0 0.0
  %200 = vmatprep.subr.mxu0 0.0
  %201 = vmatpush1.msra.mxu0 0.0
  %202 = vmatprep.subr.mxu0 0.0
  %203 = vmatpush1.msra.mxu0 0.0
  %204 = vmatprep.subr.mxu0 0.0
  %205 = vmatpush1.msra.mxu0 0.0
  %206 = vmatprep.subr.mxu0 0.0
  %207 = vmatpush1.msra.mxu0 0.0
  %208 = vmatprep.subr.mxu0 0.0
  %209 = vmatpush1.msra.mxu0 0.0
  %210 = vmatprep.subr.mxu0 0.0
  %211 = vmatpush1.msra.mxu0 0.0
  %212 = vmatprep.subr.mxu0 0.0
  %213 = vmatpush1.msra.mxu0 0.0
  %214 = vmatprep.subr.mxu0 0.0
  %215 = vmatpush1.msra.mxu0 %v184
  %216 = vmatprep.subr.mxu0 0.0
  %217 = vmatpush1.msra.mxu0 %v100
  %218 = vmatprep.subr.mxu0 0.0
  %219 = vmatpush2.msra.mxu0 0.0
  %220 = vmatprep.subr.mxu0 0.0
  %221 = vmatpush2.msra.mxu0 0.0
  %222 = vmatprep.subr.mxu0 0.0
  %223 = vmatpush2.msra.mxu0 0.0
  %224 = vmatprep.subr.mxu0 0.0
  %225 = vmatpush2.msra.mxu0 0.0
  %226 = vmatprep.subr.mxu0 0.0
  %227 = vmatpush2.msra.mxu0 0.0
  %228 = vmatprep.subr.mxu0 0.0
  %229 = vmatpush2.msra.mxu0 0.0
  %230 = vmatprep.subr.mxu0 0.0
  %231 = vmatpush2.msra.mxu0 0.0
  %232 = vmatprep.subr.mxu0 0.0
  %233 = vmatpush2.msra.mxu0 0.0
  %234 = vmatprep.subr.mxu0 0.0
  %235 = vmatpush2.msra.mxu0 0.0
  %236 = vmatprep.subr.mxu0 0.0
  %237 = vmatpush2.msra.mxu0 0.0
  %238 = vmatprep.subr.mxu0 0.0
  %239 = vmatpush2.msra.mxu0 0.0
  %240 = vmatprep.subr.mxu0 0.0
  %241 = vmatpush2.msra.mxu0 0.0
  %242 = vmatprep.subr.mxu0 0.0
  %243 = vmatpush2.msra.mxu0 0.0
  %244 = vmatprep.subr.mxu0 0.0
  %245 = vmatpush2.msra.mxu0 0.0
  %246 = vmatprep.subr.mxu0 0.0
  %247 = vmatpush2.msra.mxu0 0.0
  %248 = vmatprep.subr.mxu0 0.0
  %249 = vmatpush2.msra.mxu0 0.0
  %250 = vmatprep.mubr.f32.mxu0 0.0
  %251 = vmatmul.mubr.f32.gmra.mxu0 %v111
  %v252 = vpop.f32.mrf.mxu0
  %v253 = vadd.f32 %v107, %v252
  %v254 = vpop.f32.mrf.mxu0
  %255 = vmatprep.mubr.f32.mxu0 0.0
  %256 = vmatmul.mubr.f32.gmra.mxu0 %v114
  %v257 = vpop.f32.mrf.mxu0
  %v258 = vadd.f32 %v107, %v257
  %v259 = vpop.f32.mrf.mxu0
  %260 = vmatprep.mubr.f32.mxu0 0.0
  %261 = vmatmul.mubr.f32.gmra.mxu0 %v117
  %v262 = vpop.f32.mrf.mxu0
  %v263 = vadd.f32 %v107, %v262
  %v264 = vpop.f32.mrf.mxu0
  %265 = vmatprep.mubr.f32.mxu0 0.0
  %266 = vmatmul.mubr.f32.gmra.mxu0 %v120
  %v267 = vpop.f32.mrf.mxu0
  %v268 = vadd.f32 %v107, %v267
  %v269 = vpop.f32.mrf.mxu0
  %270 = vmatprep.mubr.f32.mxu0 0.0
  %271 = vmatmul.mubr.f32.gmra.mxu0 %v123
  %v272 = vpop.f32.mrf.mxu0
  %v273 = vadd.f32 %v107, %v272
  %v274 = vpop.f32.mrf.mxu0
  %275 = vmatprep.mubr.f32.mxu0 0.0
  %276 = vmatmul.mubr.f32.gmra.mxu0 %v126
  %v277 = vpop.f32.mrf.mxu0
  %v278 = vadd.f32 %v107, %v277
  %v279 = vpop.f32.mrf.mxu0
  %280 = vmatprep.mubr.f32.mxu0 0.0
  %281 = vmatmul.mubr.f32.gmra.mxu0 %v129
  %v282 = vpop.f32.mrf.mxu0
  %v283 = vadd.f32 %v107, %v282
  %v284 = vpop.f32.mrf.mxu0
  %285 = vmatprep.mubr.f32.mxu0 0.0
  %286 = vmatmul.mubr.f32.gmra.mxu0 %v132
  %v287 = vpop.f32.mrf.mxu0
  %v288 = vadd.f32 %v107, %v287
  %v289 = vpop.f32.mrf.mxu0
  %290 = vmatprep.mubr.f32.mxu0 0.0
  %291 = vmatmul.mubr.f32.gmra.mxu0 %v135
  %v292 = vpop.f32.mrf.mxu0
  %v293 = vadd.f32 %v107, %v292
  %v294 = vpop.f32.mrf.mxu0
  %295 = vmatprep.mubr.f32.mxu0 0.0
  %296 = vmatmul.mubr.f32.gmra.mxu0 %v138
  %v297 = vpop.f32.mrf.mxu0
  %v298 = vadd.f32 %v107, %v297
  %v299 = vpop.f32.mrf.mxu0
  %300 = vmatprep.mubr.f32.mxu0 0.0
  %301 = vmatmul.mubr.f32.gmra.mxu0 %v141
  %v302 = vpop.f32.mrf.mxu0
  %v303 = vadd.f32 %v107, %v302
  %v304 = vpop.f32.mrf.mxu0
  %305 = vmatprep.mubr.f32.mxu0 0.0
  %306 = vmatmul.mubr.f32.gmra.mxu0 %v144
  %v307 = vpop.f32.mrf.mxu0
  %v308 = vadd.f32 %v107, %v307
  %v309 = vpop.f32.mrf.mxu0
  %310 = vmatprep.mubr.f32.mxu0 0.0
  %311 = vmatmul.mubr.f32.gmra.mxu0 %v147
  %v312 = vpop.f32.mrf.mxu0
  %v313 = vadd.f32 %v107, %v312
  %v314 = vpop.f32.mrf.mxu0
  %315 = vmatprep.mubr.f32.mxu0 0.0
  %316 = vmatmul.mubr.f32.gmra.mxu0 %v150
  %v317 = vpop.f32.mrf.mxu0
  %v318 = vadd.f32 %v107, %v317
  %v319 = vpop.f32.mrf.mxu0
  %320 = vmatprep.mubr.f32.mxu0 0.0
  %321 = vmatmul.mubr.f32.gmra.mxu0 %v153
  %v322 = vpop.f32.mrf.mxu0
  %v323 = vadd.f32 %v107, %v322
  %v324 = vpop.f32.mrf.mxu0
  %325 = vmatprep.mubr.f32.mxu0 0.0
  %326 = vmatmul.mubr.f32.gmra.mxu0 %v156
  %v327 = vpop.f32.mrf.mxu0
  %v328 = vadd.f32 %v107, %v327
  %v329 = vpop.f32.mrf.mxu0
  %330 = vmatprep.mubr.f32.mxu0 0.0
  %331 = vmatmul.mubr.f32.gmra.mxu0 %v159
  %v332 = vpop.f32.mrf.mxu0
  %v333 = vadd.f32 %v107, %v332
  %v334 = vpop.f32.mrf.mxu0
  %335 = vmatprep.mubr.f32.mxu0 0.0
  %336 = vmatmul.mubr.f32.gmra.mxu0 %v162
  %v337 = vpop.f32.mrf.mxu0
  %v338 = vadd.f32 %v107, %v337
  %v339 = vpop.f32.mrf.mxu0
  %340 = vmatprep.mubr.f32.mxu0 0.0
  %341 = vmatmul.mubr.f32.gmra.mxu0 %v165
  %v342 = vpop.f32.mrf.mxu0
  %v343 = vadd.f32 %v107, %v342
  %v344 = vpop.f32.mrf.mxu0
  %345 = vmatprep.mubr.f32.mxu0 0.0
  %346 = vmatmul.mubr.f32.gmra.mxu0 %v168
  %v347 = vpop.f32.mrf.mxu0
  %v348 = vadd.f32 %v107, %v347
  %v349 = vpop.f32.mrf.mxu0
  %350 = vmatprep.mubr.f32.mxu0 0.0
  %351 = vmatmul.mubr.f32.gmra.mxu0 %v171
  %v352 = vpop.f32.mrf.mxu0
  %v353 = vadd.f32 %v107, %v352
  %v354 = vpop.f32.mrf.mxu0
  %355 = vmatprep.mubr.f32.mxu0 0.0
  %356 = vmatmul.mubr.f32.gmra.mxu0 %v174
  %v357 = vpop.f32.mrf.mxu0
  %v358 = vadd.f32 %v107, %v357
  %v359 = vpop.f32.mrf.mxu0
  %360 = vmatprep.mubr.f32.mxu0 0.0
  %361 = vmatmul.mubr.f32.gmra.mxu0 %v177
  %v362 = vpop.f32.mrf.mxu0
  %v363 = vadd.f32 %v107, %v362
  %v364 = vpop.f32.mrf.mxu0
  %365 = vmatprep.mubr.f32.mxu0 0.0
  %366 = vmatmul.mubr.f32.gmra.mxu0 %v180
  %v367 = vpop.f32.mrf.mxu0
  %v368 = vadd.f32 %v107, %v367
  %v369 = vpop.f32.mrf.mxu0
  %370 = vdwg.mxu0
  %v371 = vmax.f32 %v253, 0.0
  %v372 = vmax.f32 %v258, 0.0
  %v373 = vmax.f32 %v263, 0.0
  %v374 = vmax.f32 %v268, 0.0
  %v375 = vmax.f32 %v273, 0.0
  %v376 = vmax.f32 %v278, 0.0
  %v377 = vmax.f32 %v283, 0.0
  %v378 = vmax.f32 %v288, 0.0
  %v379 = vmax.f32 %v293, 0.0
  %v380 = vmax.f32 %v298, 0.0
  %v381 = vmax.f32 %v303, 0.0
  %v382 = vmax.f32 %v308, 0.0
  %v383 = vmax.f32 %v313, 0.0
  %v384 = vmax.f32 %v318, 0.0
  %v385 = vmax.f32 %v323, 0.0
  %v386 = vmax.f32 %v328, 0.0
  %v387 = vmax.f32 %v333, 0.0
  %v388 = vmax.f32 %v338, 0.0
  %v389 = vmax.f32 %v343, 0.0
  %v390 = vmax.f32 %v348, 0.0
  %v391 = vmax.f32 %v353, 0.0
  %v392 = vmax.f32 %v358, 0.0
  %v393 = vmax.f32 %v363, 0.0
  %v394 = vmax.f32 %v368, 0.0
  %v395 = vld [vmem:[%s7] sm:$0xff]
  %v396 = vld [vmem:[%s7 + $0x8] sm:$0xff]
  %v397 = vld [vmem:[%s7 + $0x10] sm:$0xff]
  %v398 = vld [vmem:[%s7 + $0x18] sm:$0x7f]
  %v399 = vld [vmem:[%s8] sm:$0x1]
  %v401 = vlaneseq
  %v402 = vshrl.u32 %v401, 7
  %v403 = vsub.s32 0, %v402
  %v404 = vrot.slane %v399, %v403
  %vm406 = vcmask 252928
  %v408 = vsel %vm406, %v371, 0
  %v411 = vsel %vm406, %v372, 0
  %v414 = vsel %vm406, %v373, 0
  %v417 = vsel %vm406, %v374, 0
  %v420 = vsel %vm406, %v375, 0
  %v423 = vsel %vm406, %v376, 0
  %v426 = vsel %vm406, %v377, 0
  %v429 = vsel %vm406, %v378, 0
  %v432 = vsel %vm406, %v379, 0
  %v435 = vsel %vm406, %v380, 0
  %v438 = vsel %vm406, %v381, 0
  %v441 = vsel %vm406, %v382, 0
  %v444 = vsel %vm406, %v383, 0
  %v447 = vsel %vm406, %v384, 0
  %v450 = vsel %vm406, %v385, 0
  %v453 = vsel %vm406, %v386, 0
  %v456 = vsel %vm406, %v387, 0
  %v459 = vsel %vm406, %v388, 0
  %v462 = vsel %vm406, %v389, 0
  %v465 = vsel %vm406, %v390, 0
  %v468 = vsel %vm406, %v391, 0
  %v471 = vsel %vm406, %v392, 0
  %v474 = vsel %vm406, %v393, 0
  %v477 = vsel %vm406, %v394, 0
  %vm479 = vcmask 1046528
  %v481 = vsel %vm479, %v398, 0
  %483 = vmatprep.subr.mxu0 0.0
  %484 = vmatpush1.msra.mxu0 0.0
  %485 = vmatprep.subr.mxu0 0.0
  %486 = vmatpush1.msra.mxu0 0.0
  %487 = vmatprep.subr.mxu0 0.0
  %488 = vmatpush1.msra.mxu0 0.0
  %489 = vmatprep.subr.mxu0 0.0
  %490 = vmatpush1.msra.mxu0 0.0
  %491 = vmatprep.subr.mxu0 0.0
  %492 = vmatpush1.msra.mxu0 0.0
  %493 = vmatprep.subr.mxu0 0.0
  %494 = vmatpush1.msra.mxu0 0.0
  %495 = vmatprep.subr.mxu0 0.0
  %496 = vmatpush1.msra.mxu0 0.0
  %497 = vmatprep.subr.mxu0 0.0
  %498 = vmatpush1.msra.mxu0 0.0
  %499 = vmatprep.subr.mxu0 0.0
  %500 = vmatpush1.msra.mxu0 0.0
  %501 = vmatprep.subr.mxu0 0.0
  %502 = vmatpush1.msra.mxu0 0.0
  %503 = vmatprep.subr.mxu0 0.0
  %504 = vmatpush1.msra.mxu0 0.0
  %505 = vmatprep.subr.mxu0 0.0
  %506 = vmatpush1.msra.mxu0 0.0
  %507 = vmatprep.subr.mxu0 0.0
  %508 = vmatpush1.msra.mxu0 %v481
  %509 = vmatprep.subr.mxu0 0.0
  %510 = vmatpush1.msra.mxu0 %v397
  %511 = vmatprep.subr.mxu0 0.0
  %512 = vmatpush1.msra.mxu0 %v396
  %513 = vmatprep.subr.mxu0 0.0
  %514 = vmatpush1.msra.mxu0 %v395
  %515 = vmatprep.subr.mxu0 0.0
  %516 = vmatpush2.msra.mxu0 0.0
  %517 = vmatprep.subr.mxu0 0.0
  %518 = vmatpush2.msra.mxu0 0.0
  %519 = vmatprep.subr.mxu0 0.0
  %520 = vmatpush2.msra.mxu0 0.0
  %521 = vmatprep.subr.mxu0 0.0
  %522 = vmatpush2.msra.mxu0 0.0
  %523 = vmatprep.subr.mxu0 0.0
  %524 = vmatpush2.msra.mxu0 0.0
  %525 = vmatprep.subr.mxu0 0.0
  %526 = vmatpush2.msra.mxu0 0.0
  %527 = vmatprep.subr.mxu0 0.0
  %528 = vmatpush2.msra.mxu0 0.0
  %529 = vmatprep.subr.mxu0 0.0
  %530 = vmatpush2.msra.mxu0 0.0
  %531 = vmatprep.subr.mxu0 0.0
  %532 = vmatpush2.msra.mxu0 0.0
  %533 = vmatprep.subr.mxu0 0.0
  %534 = vmatpush2.msra.mxu0 0.0
  %535 = vmatprep.subr.mxu0 0.0
  %536 = vmatpush2.msra.mxu0 0.0
  %537 = vmatprep.subr.mxu0 0.0
  %538 = vmatpush2.msra.mxu0 0.0
  %539 = vmatprep.subr.mxu0 0.0
  %540 = vmatpush2.msra.mxu0 0.0
  %541 = vmatprep.subr.mxu0 0.0
  %542 = vmatpush2.msra.mxu0 0.0
  %543 = vmatprep.subr.mxu0 0.0
  %544 = vmatpush2.msra.mxu0 0.0
  %545 = vmatprep.subr.mxu0 0.0
  %546 = vmatpush2.msra.mxu0 0.0
  %547 = vmatprep.mubr.f32.mxu0 0.0
  %548 = vmatmul.mubr.f32.gmra.mxu0 %v408
  %v549 = vpop.f32.mrf.mxu0
  %v550 = vadd.f32 %v404, %v549
  %v551 = vpop.f32.mrf.mxu0
  %552 = vmatprep.mubr.f32.mxu0 0.0
  %553 = vmatmul.mubr.f32.gmra.mxu0 %v411
  %v554 = vpop.f32.mrf.mxu0
  %v555 = vadd.f32 %v404, %v554
  %v556 = vpop.f32.mrf.mxu0
  %557 = vmatprep.mubr.f32.mxu0 0.0
  %558 = vmatmul.mubr.f32.gmra.mxu0 %v414
  %v559 = vpop.f32.mrf.mxu0
  %v560 = vadd.f32 %v404, %v559
  %v561 = vpop.f32.mrf.mxu0
  %562 = vmatprep.mubr.f32.mxu0 0.0
  %563 = vmatmul.mubr.f32.gmra.mxu0 %v417
  %v564 = vpop.f32.mrf.mxu0
  %v565 = vadd.f32 %v404, %v564
  %v566 = vpop.f32.mrf.mxu0
  %567 = vmatprep.mubr.f32.mxu0 0.0
  %568 = vmatmul.mubr.f32.gmra.mxu0 %v420
  %v569 = vpop.f32.mrf.mxu0
  %v570 = vadd.f32 %v404, %v569
  %v571 = vpop.f32.mrf.mxu0
  %572 = vmatprep.mubr.f32.mxu0 0.0
  %573 = vmatmul.mubr.f32.gmra.mxu0 %v423
  %v574 = vpop.f32.mrf.mxu0
  %v575 = vadd.f32 %v404, %v574
  %v576 = vpop.f32.mrf.mxu0
  %577 = vmatprep.mubr.f32.mxu0 0.0
  %578 = vmatmul.mubr.f32.gmra.mxu0 %v426
  %v579 = vpop.f32.mrf.mxu0
  %v580 = vadd.f32 %v404, %v579
  %v581 = vpop.f32.mrf.mxu0
  %582 = vmatprep.mubr.f32.mxu0 0.0
  %583 = vmatmul.mubr.f32.gmra.mxu0 %v429
  %v584 = vpop.f32.mrf.mxu0
  %v585 = vadd.f32 %v404, %v584
  %v586 = vpop.f32.mrf.mxu0
  %587 = vmatprep.mubr.f32.mxu0 0.0
  %588 = vmatmul.mubr.f32.gmra.mxu0 %v432
  %v589 = vpop.f32.mrf.mxu0
  %v590 = vadd.f32 %v404, %v589
  %v591 = vpop.f32.mrf.mxu0
  %592 = vmatprep.mubr.f32.mxu0 0.0
  %593 = vmatmul.mubr.f32.gmra.mxu0 %v435
  %v594 = vpop.f32.mrf.mxu0
  %v595 = vadd.f32 %v404, %v594
  %v596 = vpop.f32.mrf.mxu0
  %597 = vmatprep.mubr.f32.mxu0 0.0
  %598 = vmatmul.mubr.f32.gmra.mxu0 %v438
  %v599 = vpop.f32.mrf.mxu0
  %v600 = vadd.f32 %v404, %v599
  %v601 = vpop.f32.mrf.mxu0
  %602 = vmatprep.mubr.f32.mxu0 0.0
  %603 = vmatmul.mubr.f32.gmra.mxu0 %v441
  %v604 = vpop.f32.mrf.mxu0
  %v605 = vadd.f32 %v404, %v604
  %v606 = vpop.f32.mrf.mxu0
  %607 = vmatprep.mubr.f32.mxu0 0.0
  %608 = vmatmul.mubr.f32.gmra.mxu0 %v444
  %v609 = vpop.f32.mrf.mxu0
  %v610 = vadd.f32 %v404, %v609
  %v611 = vpop.f32.mrf.mxu0
  %612 = vmatprep.mubr.f32.mxu0 0.0
  %613 = vmatmul.mubr.f32.gmra.mxu0 %v447
  %v614 = vpop.f32.mrf.mxu0
  %v615 = vadd.f32 %v404, %v614
  %v616 = vpop.f32.mrf.mxu0
  %617 = vmatprep.mubr.f32.mxu0 0.0
  %618 = vmatmul.mubr.f32.gmra.mxu0 %v450
  %v619 = vpop.f32.mrf.mxu0
  %v620 = vadd.f32 %v404, %v619
  %v621 = vpop.f32.mrf.mxu0
  %622 = vmatprep.mubr.f32.mxu0 0.0
  %623 = vmatmul.mubr.f32.gmra.mxu0 %v453
  %v624 = vpop.f32.mrf.mxu0
  %v625 = vadd.f32 %v404, %v624
  %v626 = vpop.f32.mrf.mxu0
  %627 = vmatprep.mubr.f32.mxu0 0.0
  %628 = vmatmul.mubr.f32.gmra.mxu0 %v456
  %v629 = vpop.f32.mrf.mxu0
  %v630 = vadd.f32 %v404, %v629
  %v631 = vpop.f32.mrf.mxu0
  %632 = vmatprep.mubr.f32.mxu0 0.0
  %633 = vmatmul.mubr.f32.gmra.mxu0 %v459
  %v634 = vpop.f32.mrf.mxu0
  %v635 = vadd.f32 %v404, %v634
  %v636 = vpop.f32.mrf.mxu0
  %637 = vmatprep.mubr.f32.mxu0 0.0
  %638 = vmatmul.mubr.f32.gmra.mxu0 %v462
  %v639 = vpop.f32.mrf.mxu0
  %v640 = vadd.f32 %v404, %v639
  %v641 = vpop.f32.mrf.mxu0
  %642 = vmatprep.mubr.f32.mxu0 0.0
  %643 = vmatmul.mubr.f32.gmra.mxu0 %v465
  %v644 = vpop.f32.mrf.mxu0
  %v645 = vadd.f32 %v404, %v644
  %v646 = vpop.f32.mrf.mxu0
  %647 = vmatprep.mubr.f32.mxu0 0.0
  %648 = vmatmul.mubr.f32.gmra.mxu0 %v468
  %v649 = vpop.f32.mrf.mxu0
  %v650 = vadd.f32 %v404, %v649
  %v651 = vpop.f32.mrf.mxu0
  %652 = vmatprep.mubr.f32.mxu0 0.0
  %653 = vmatmul.mubr.f32.gmra.mxu0 %v471
  %v654 = vpop.f32.mrf.mxu0
  %v655 = vadd.f32 %v404, %v654
  %v656 = vpop.f32.mrf.mxu0
  %657 = vmatprep.mubr.f32.mxu0 0.0
  %658 = vmatmul.mubr.f32.gmra.mxu0 %v474
  %v659 = vpop.f32.mrf.mxu0
  %v660 = vadd.f32 %v404, %v659
  %v661 = vpop.f32.mrf.mxu0
  %662 = vmatprep.mubr.f32.mxu0 0.0
  %663 = vmatmul.mubr.f32.gmra.mxu0 %v477
  %v664 = vpop.f32.mrf.mxu0
  %v665 = vadd.f32 %v404, %v664
  %v666 = vpop.f32.mrf.mxu0
  %667 = vdwg.mxu0
  %v668 = vmax.f32 %v550, 0.0
  %v669 = vmax.f32 %v555, 0.0
  %v670 = vmax.f32 %v560, 0.0
  %v671 = vmax.f32 %v565, 0.0
  %v672 = vmax.f32 %v570, 0.0
  %v673 = vmax.f32 %v575, 0.0
  %v674 = vmax.f32 %v580, 0.0
  %v675 = vmax.f32 %v585, 0.0
  %v676 = vmax.f32 %v590, 0.0
  %v677 = vmax.f32 %v595, 0.0
  %v678 = vmax.f32 %v600, 0.0
  %v679 = vmax.f32 %v605, 0.0
  %v680 = vmax.f32 %v610, 0.0
  %v681 = vmax.f32 %v615, 0.0
  %v682 = vmax.f32 %v620, 0.0
  %v683 = vmax.f32 %v625, 0.0
  %v684 = vmax.f32 %v630, 0.0
  %v685 = vmax.f32 %v635, 0.0
  %v686 = vmax.f32 %v640, 0.0
  %v687 = vmax.f32 %v645, 0.0
  %v688 = vmax.f32 %v650, 0.0
  %v689 = vmax.f32 %v655, 0.0
  %v690 = vmax.f32 %v660, 0.0
  %v691 = vmax.f32 %v665, 0.0
  %v692 = vld [vmem:[%s9] sm:$0xff]
  %v693 = vld [vmem:[%s9 + $0x8] sm:$0xff]
  %v694 = vld [vmem:[%s9 + $0x10] sm:$0xff]
  %v695 = vld [vmem:[%s9 + $0x18] sm:$0xff]
  %v696 = vld [vmem:[%s9 + $0x20] sm:$0xff]
  %v697 = vld [vmem:[%s9 + $0x28] sm:$0xff]
  %v698 = vld [vmem:[%s9 + $0x30] sm:$0xff]
  %v699 = vld [vmem:[%s9 + $0x38] sm:$0xff]
  %v700 = vld [vmem:[%s9 + $0x40] sm:$0xff]
  %v701 = vld [vmem:[%s9 + $0x48] sm:$0x7f]
  %v702 = vld [vmem:[%s9 + $0x50] sm:$0x7f]
  %v703 = vld [vmem:[%s9 + $0x58] sm:$0x7f]
  %v704 = vld [vmem:[%s10] sm:$0x7]
  %v706 = vlaneseq
  %v707 = vshrl.u32 %v706, 7
  %v708 = vsub.s32 0, %v707
  %v709 = vrot.slane %v704, %v708
  %v710 = vlaneseq
  %v711 = vshrl.u32 %v710, 7
  %v712 = vsub.s32 1, %v711
  %v713 = vrot.slane %v704, %v712
  %v714 = vlaneseq
  %v715 = vshrl.u32 %v714, 7
  %v716 = vsub.s32 2, %v715
  %v717 = vrot.slane %v704, %v716
  %v722 = vsel %vm406, %v668, 0
  %v725 = vsel %vm406, %v669, 0
  %v728 = vsel %vm406, %v670, 0
  %v731 = vsel %vm406, %v671, 0
  %v734 = vsel %vm406, %v672, 0
  %v737 = vsel %vm406, %v673, 0
  %v740 = vsel %vm406, %v674, 0
  %v743 = vsel %vm406, %v675, 0
  %v746 = vsel %vm406, %v676, 0
  %v749 = vsel %vm406, %v677, 0
  %v752 = vsel %vm406, %v678, 0
  %v755 = vsel %vm406, %v679, 0
  %v758 = vsel %vm406, %v680, 0
  %v761 = vsel %vm406, %v681, 0
  %v764 = vsel %vm406, %v682, 0
  %v767 = vsel %vm406, %v683, 0
  %v770 = vsel %vm406, %v684, 0
  %v773 = vsel %vm406, %v685, 0
  %v776 = vsel %vm406, %v686, 0
  %v779 = vsel %vm406, %v687, 0
  %v782 = vsel %vm406, %v688, 0
  %v785 = vsel %vm406, %v689, 0
  %v788 = vsel %vm406, %v690, 0
  %v791 = vsel %vm406, %v691, 0
  %v794 = vsel %vm479, %v701, 0
  %v797 = vsel %vm479, %v702, 0
  %v800 = vsel %vm479, %v703, 0
  %802 = vmatprep.subr.mxu0 0.0
  %803 = vmatpush1.msra.mxu0 0.0
  %804 = vmatprep.subr.mxu0 0.0
  %805 = vmatpush1.msra.mxu0 0.0
  %806 = vmatprep.subr.mxu0 0.0
  %807 = vmatpush1.msra.mxu0 0.0
  %808 = vmatprep.subr.mxu0 0.0
  %809 = vmatpush1.msra.mxu0 0.0
  %810 = vmatprep.subr.mxu0 0.0
  %811 = vmatpush1.msra.mxu0 0.0
  %812 = vmatprep.subr.mxu0 0.0
  %813 = vmatpush1.msra.mxu0 0.0
  %814 = vmatprep.subr.mxu0 0.0
  %815 = vmatpush1.msra.mxu0 0.0
  %816 = vmatprep.subr.mxu0 0.0
  %817 = vmatpush1.msra.mxu0 0.0
  %818 = vmatprep.subr.mxu0 0.0
  %819 = vmatpush1.msra.mxu0 0.0
  %820 = vmatprep.subr.mxu0 0.0
  %821 = vmatpush1.msra.mxu0 0.0
  %822 = vmatprep.subr.mxu0 0.0
  %823 = vmatpush1.msra.mxu0 0.0
  %824 = vmatprep.subr.mxu0 0.0
  %825 = vmatpush1.msra.mxu0 0.0
  %826 = vmatprep.subr.mxu0 %v797
  %827 = vmatpush1.msra.mxu0 %v794
  %828 = vmatprep.subr.mxu0 %v699
  %829 = vmatpush1.msra.mxu0 %v698
  %830 = vmatprep.subr.mxu0 %v696
  %831 = vmatpush1.msra.mxu0 %v695
  %832 = vmatprep.subr.mxu0 %v693
  %833 = vmatpush1.msra.mxu0 %v692
  %834 = vmatprep.subr.mxu0 0.0
  %835 = vmatpush2.msra.mxu0 0.0
  %836 = vmatprep.subr.mxu0 0.0
  %837 = vmatpush2.msra.mxu0 0.0
  %838 = vmatprep.subr.mxu0 0.0
  %839 = vmatpush2.msra.mxu0 0.0
  %840 = vmatprep.subr.mxu0 0.0
  %841 = vmatpush2.msra.mxu0 0.0
  %842 = vmatprep.subr.mxu0 0.0
  %843 = vmatpush2.msra.mxu0 0.0
  %844 = vmatprep.subr.mxu0 0.0
  %845 = vmatpush2.msra.mxu0 0.0
  %846 = vmatprep.subr.mxu0 0.0
  %847 = vmatpush2.msra.mxu0 0.0
  %848 = vmatprep.subr.mxu0 0.0
  %849 = vmatpush2.msra.mxu0 0.0
  %850 = vmatprep.subr.mxu0 0.0
  %851 = vmatpush2.msra.mxu0 0.0
  %852 = vmatprep.subr.mxu0 0.0
  %853 = vmatpush2.msra.mxu0 0.0
  %854 = vmatprep.subr.mxu0 0.0
  %855 = vmatpush2.msra.mxu0 0.0
  %856 = vmatprep.subr.mxu0 0.0
  %857 = vmatpush2.msra.mxu0 0.0
  %858 = vmatprep.subr.mxu0 0.0
  %859 = vmatpush2.msra.mxu0 0.0
  %860 = vmatprep.subr.mxu0 0.0
  %861 = vmatpush2.msra.mxu0 0.0
  %862 = vmatprep.subr.mxu0 0.0
  %863 = vmatpush2.msra.mxu0 0.0
  %864 = vmatprep.subr.mxu0 0.0
  %865 = vmatpush2.msra.mxu0 0.0
  %866 = vmatprep.mubr.f32.mxu0 0.0
  %867 = vmatmul.mubr.f32.gmra.mxu0 %v722
  %v868 = vpop.f32.mrf.mxu0
  %v869 = vadd.f32 %v709, %v868
  %v870 = vpop.f32.mrf.mxu0
  %v871 = vadd.f32 %v713, %v870
  %872 = vmatprep.mubr.f32.mxu0 0.0
  %873 = vmatmul.mubr.f32.gmra.mxu0 %v725
  %v874 = vpop.f32.mrf.mxu0
  %v875 = vadd.f32 %v709, %v874
  %v876 = vpop.f32.mrf.mxu0
  %v877 = vadd.f32 %v713, %v876
  %878 = vmatprep.mubr.f32.mxu0 0.0
  %879 = vmatmul.mubr.f32.gmra.mxu0 %v728
  %v880 = vpop.f32.mrf.mxu0
  %v881 = vadd.f32 %v709, %v880
  %v882 = vpop.f32.mrf.mxu0
  %v883 = vadd.f32 %v713, %v882
  %884 = vmatprep.mubr.f32.mxu0 0.0
  %885 = vmatmul.mubr.f32.gmra.mxu0 %v731
  %v886 = vpop.f32.mrf.mxu0
  %v887 = vadd.f32 %v709, %v886
  %v888 = vpop.f32.mrf.mxu0
  %v889 = vadd.f32 %v713, %v888
  %890 = vmatprep.mubr.f32.mxu0 0.0
  %891 = vmatmul.mubr.f32.gmra.mxu0 %v734
  %v892 = vpop.f32.mrf.mxu0
  %v893 = vadd.f32 %v709, %v892
  %v894 = vpop.f32.mrf.mxu0
  %v895 = vadd.f32 %v713, %v894
  %896 = vmatprep.mubr.f32.mxu0 0.0
  %897 = vmatmul.mubr.f32.gmra.mxu0 %v737
  %v898 = vpop.f32.mrf.mxu0
  %v899 = vadd.f32 %v709, %v898
  %v900 = vpop.f32.mrf.mxu0
  %v901 = vadd.f32 %v713, %v900
  %902 = vmatprep.mubr.f32.mxu0 0.0
  %903 = vmatmul.mubr.f32.gmra.mxu0 %v740
  %v904 = vpop.f32.mrf.mxu0
  %v905 = vadd.f32 %v709, %v904
  %v906 = vpop.f32.mrf.mxu0
  %v907 = vadd.f32 %v713, %v906
  %908 = vmatprep.mubr.f32.mxu0 0.0
  %909 = vmatmul.mubr.f32.gmra.mxu0 %v743
  %v910 = vpop.f32.mrf.mxu0
  %v911 = vadd.f32 %v709, %v910
  %v912 = vpop.f32.mrf.mxu0
  %v913 = vadd.f32 %v713, %v912
  %914 = vmatprep.mubr.f32.mxu0 0.0
  %915 = vmatmul.mubr.f32.gmra.mxu0 %v746
  %v916 = vpop.f32.mrf.mxu0
  %v917 = vadd.f32 %v709, %v916
  %v918 = vpop.f32.mrf.mxu0
  %v919 = vadd.f32 %v713, %v918
  %920 = vmatprep.mubr.f32.mxu0 0.0
  %921 = vmatmul.mubr.f32.gmra.mxu0 %v749
  %v922 = vpop.f32.mrf.mxu0
  %v923 = vadd.f32 %v709, %v922
  %v924 = vpop.f32.mrf.mxu0
  %v925 = vadd.f32 %v713, %v924
  %926 = vmatprep.mubr.f32.mxu0 0.0
  %927 = vmatmul.mubr.f32.gmra.mxu0 %v752
  %v928 = vpop.f32.mrf.mxu0
  %v929 = vadd.f32 %v709, %v928
  %v930 = vpop.f32.mrf.mxu0
  %v931 = vadd.f32 %v713, %v930
  %932 = vmatprep.mubr.f32.mxu0 0.0
  %933 = vmatmul.mubr.f32.gmra.mxu0 %v755
  %v934 = vpop.f32.mrf.mxu0
  %v935 = vadd.f32 %v709, %v934
  %v936 = vpop.f32.mrf.mxu0
  %v937 = vadd.f32 %v713, %v936
  %938 = vmatprep.mubr.f32.mxu0 0.0
  %939 = vmatmul.mubr.f32.gmra.mxu0 %v758
  %v940 = vpop.f32.mrf.mxu0
  %v941 = vadd.f32 %v709, %v940
  %v942 = vpop.f32.mrf.mxu0
  %v943 = vadd.f32 %v713, %v942
  %944 = vmatprep.mubr.f32.mxu0 0.0
  %945 = vmatmul.mubr.f32.gmra.mxu0 %v761
  %v946 = vpop.f32.mrf.mxu0
  %v947 = vadd.f32 %v709, %v946
  %v948 = vpop.f32.mrf.mxu0
  %v949 = vadd.f32 %v713, %v948
  %950 = vmatprep.mubr.f32.mxu0 0.0
  %951 = vmatmul.mubr.f32.gmra.mxu0 %v764
  %v952 = vpop.f32.mrf.mxu0
  %v953 = vadd.f32 %v709, %v952
  %v954 = vpop.f32.mrf.mxu0
  %v955 = vadd.f32 %v713, %v954
  %956 = vmatprep.mubr.f32.mxu0 0.0
  %957 = vmatmul.mubr.f32.gmra.mxu0 %v767
  %v958 = vpop.f32.mrf.mxu0
  %v959 = vadd.f32 %v709, %v958
  %v960 = vpop.f32.mrf.mxu0
  %v961 = vadd.f32 %v713, %v960
  %962 = vmatprep.mubr.f32.mxu0 0.0
  %963 = vmatmul.mubr.f32.gmra.mxu0 %v770
  %v964 = vpop.f32.mrf.mxu0
  %v965 = vadd.f32 %v709, %v964
  %v966 = vpop.f32.mrf.mxu0
  %v967 = vadd.f32 %v713, %v966
  %968 = vmatprep.mubr.f32.mxu0 0.0
  %969 = vmatmul.mubr.f32.gmra.mxu0 %v773
  %v970 = vpop.f32.mrf.mxu0
  %v971 = vadd.f32 %v709, %v970
  %v972 = vpop.f32.mrf.mxu0
  %v973 = vadd.f32 %v713, %v972
  %974 = vmatprep.mubr.f32.mxu0 0.0
  %975 = vmatmul.mubr.f32.gmra.mxu0 %v776
  %v976 = vpop.f32.mrf.mxu0
  %v977 = vadd.f32 %v709, %v976
  %v978 = vpop.f32.mrf.mxu0
  %v979 = vadd.f32 %v713, %v978
  %980 = vmatprep.mubr.f32.mxu0 0.0
  %981 = vmatmul.mubr.f32.gmra.mxu0 %v779
  %v982 = vpop.f32.mrf.mxu0
  %v983 = vadd.f32 %v709, %v982
  %v984 = vpop.f32.mrf.mxu0
  %v985 = vadd.f32 %v713, %v984
  %986 = vmatprep.mubr.f32.mxu0 0.0
  %987 = vmatmul.mubr.f32.gmra.mxu0 %v782
  %v988 = vpop.f32.mrf.mxu0
  %v989 = vadd.f32 %v709, %v988
  %v990 = vpop.f32.mrf.mxu0
  %v991 = vadd.f32 %v713, %v990
  %992 = vmatprep.mubr.f32.mxu0 0.0
  %993 = vmatmul.mubr.f32.gmra.mxu0 %v785
  %v994 = vpop.f32.mrf.mxu0
  %v995 = vadd.f32 %v709, %v994
  %v996 = vpop.f32.mrf.mxu0
  %v997 = vadd.f32 %v713, %v996
  %998 = vmatprep.mubr.f32.mxu0 0.0
  %999 = vmatmul.mubr.f32.gmra.mxu0 %v788
  %v1000 = vpop.f32.mrf.mxu0
  %v1001 = vadd.f32 %v709, %v1000
  %v1002 = vpop.f32.mrf.mxu0
  %v1003 = vadd.f32 %v713, %v1002
  %1004 = vmatprep.mubr.f32.mxu0 0.0
  %1005 = vmatmul.mubr.f32.gmra.mxu0 %v791
  %v1006 = vpop.f32.mrf.mxu0
  %v1007 = vadd.f32 %v709, %v1006
  %v1008 = vpop.f32.mrf.mxu0
  %v1009 = vadd.f32 %v713, %v1008
  %1010 = vdwg.mxu0
  %1011 = vmatprep.subr.mxu0 0.0
  %1012 = vmatpush1.msra.mxu0 0.0
  %1013 = vmatprep.subr.mxu0 0.0
  %1014 = vmatpush1.msra.mxu0 0.0
  %1015 = vmatprep.subr.mxu0 0.0
  %1016 = vmatpush1.msra.mxu0 0.0
  %1017 = vmatprep.subr.mxu0 0.0
  %1018 = vmatpush1.msra.mxu0 0.0
  %1019 = vmatprep.subr.mxu0 0.0
  %1020 = vmatpush1.msra.mxu0 0.0
  %1021 = vmatprep.subr.mxu0 0.0
  %1022 = vmatpush1.msra.mxu0 0.0
  %1023 = vmatprep.subr.mxu0 0.0
  %1024 = vmatpush1.msra.mxu0 0.0
  %1025 = vmatprep.subr.mxu0 0.0
  %1026 = vmatpush1.msra.mxu0 0.0
  %1027 = vmatprep.subr.mxu0 0.0
  %1028 = vmatpush1.msra.mxu0 0.0
  %1029 = vmatprep.subr.mxu0 0.0
  %1030 = vmatpush1.msra.mxu0 0.0
  %1031 = vmatprep.subr.mxu0 0.0
  %1032 = vmatpush1.msra.mxu0 0.0
  %1033 = vmatprep.subr.mxu0 0.0
  %1034 = vmatpush1.msra.mxu0 0.0
  %1035 = vmatprep.subr.mxu0 0.0
  %1036 = vmatpush1.msra.mxu0 %v800
  %1037 = vmatprep.subr.mxu0 0.0
  %1038 = vmatpush1.msra.mxu0 %v700
  %1039 = vmatprep.subr.mxu0 0.0
  %1040 = vmatpush1.msra.mxu0 %v697
  %1041 = vmatprep.subr.mxu0 0.0
  %1042 = vmatpush1.msra.mxu0 %v694
  %1043 = vmatprep.subr.mxu0 0.0
  %1044 = vmatpush2.msra.mxu0 0.0
  %1045 = vmatprep.subr.mxu0 0.0
  %1046 = vmatpush2.msra.mxu0 0.0
  %1047 = vmatprep.subr.mxu0 0.0
  %1048 = vmatpush2.msra.mxu0 0.0
  %1049 = vmatprep.subr.mxu0 0.0
  %1050 = vmatpush2.msra.mxu0 0.0
  %1051 = vmatprep.subr.mxu0 0.0
  %1052 = vmatpush2.msra.mxu0 0.0
  %1053 = vmatprep.subr.mxu0 0.0
  %1054 = vmatpush2.msra.mxu0 0.0
  %1055 = vmatprep.subr.mxu0 0.0
  %1056 = vmatpush2.msra.mxu0 0.0
  %1057 = vmatprep.subr.mxu0 0.0
  %1058 = vmatpush2.msra.mxu0 0.0
  %1059 = vmatprep.subr.mxu0 0.0
  %1060 = vmatpush2.msra.mxu0 0.0
  %1061 = vmatprep.subr.mxu0 0.0
  %1062 = vmatpush2.msra.mxu0 0.0
  %1063 = vmatprep.subr.mxu0 0.0
  %1064 = vmatpush2.msra.mxu0 0.0
  %1065 = vmatprep.subr.mxu0 0.0
  %1066 = vmatpush2.msra.mxu0 0.0
  %1067 = vmatprep.subr.mxu0 0.0
  %1068 = vmatpush2.msra.mxu0 0.0
  %1069 = vmatprep.subr.mxu0 0.0
  %1070 = vmatpush2.msra.mxu0 0.0
  %1071 = vmatprep.subr.mxu0 0.0
  %1072 = vmatpush2.msra.mxu0 0.0
  %1073 = vmatprep.subr.mxu0 0.0
  %1074 = vmatpush2.msra.mxu0 0.0
  %1075 = vmatprep.mubr.f32.mxu0 0.0
  %1076 = vmatmul.mubr.f32.gmra.mxu0 %v722
  %v1077 = vpop.f32.mrf.mxu0
  %v1078 = vadd.f32 %v717, %v1077
  %v1079 = vpop.f32.mrf.mxu0
  %1080 = vmatprep.mubr.f32.mxu0 0.0
  %1081 = vmatmul.mubr.f32.gmra.mxu0 %v725
  %v1082 = vpop.f32.mrf.mxu0
  %v1083 = vadd.f32 %v717, %v1082
  %v1084 = vpop.f32.mrf.mxu0
  %1085 = vmatprep.mubr.f32.mxu0 0.0
  %1086 = vmatmul.mubr.f32.gmra.mxu0 %v728
  %v1087 = vpop.f32.mrf.mxu0
  %v1088 = vadd.f32 %v717, %v1087
  %v1089 = vpop.f32.mrf.mxu0
  %1090 = vmatprep.mubr.f32.mxu0 0.0
  %1091 = vmatmul.mubr.f32.gmra.mxu0 %v731
  %v1092 = vpop.f32.mrf.mxu0
  %v1093 = vadd.f32 %v717, %v1092
  %v1094 = vpop.f32.mrf.mxu0
  %1095 = vmatprep.mubr.f32.mxu0 0.0
  %1096 = vmatmul.mubr.f32.gmra.mxu0 %v734
  %v1097 = vpop.f32.mrf.mxu0
  %v1098 = vadd.f32 %v717, %v1097
  %v1099 = vpop.f32.mrf.mxu0
  %1100 = vmatprep.mubr.f32.mxu0 0.0
  %1101 = vmatmul.mubr.f32.gmra.mxu0 %v737
  %v1102 = vpop.f32.mrf.mxu0
  %v1103 = vadd.f32 %v717, %v1102
  %v1104 = vpop.f32.mrf.mxu0
  %1105 = vmatprep.mubr.f32.mxu0 0.0
  %1106 = vmatmul.mubr.f32.gmra.mxu0 %v740
  %v1107 = vpop.f32.mrf.mxu0
  %v1108 = vadd.f32 %v717, %v1107
  %v1109 = vpop.f32.mrf.mxu0
  %1110 = vmatprep.mubr.f32.mxu0 0.0
  %1111 = vmatmul.mubr.f32.gmra.mxu0 %v743
  %v1112 = vpop.f32.mrf.mxu0
  %v1113 = vadd.f32 %v717, %v1112
  %v1114 = vpop.f32.mrf.mxu0
  %1115 = vmatprep.mubr.f32.mxu0 0.0
  %1116 = vmatmul.mubr.f32.gmra.mxu0 %v746
  %v1117 = vpop.f32.mrf.mxu0
  %v1118 = vadd.f32 %v717, %v1117
  %v1119 = vpop.f32.mrf.mxu0
  %1120 = vmatprep.mubr.f32.mxu0 0.0
  %1121 = vmatmul.mubr.f32.gmra.mxu0 %v749
  %v1122 = vpop.f32.mrf.mxu0
  %v1123 = vadd.f32 %v717, %v1122
  %v1124 = vpop.f32.mrf.mxu0
  %1125 = vmatprep.mubr.f32.mxu0 0.0
  %1126 = vmatmul.mubr.f32.gmra.mxu0 %v752
  %v1127 = vpop.f32.mrf.mxu0
  %v1128 = vadd.f32 %v717, %v1127
  %v1129 = vpop.f32.mrf.mxu0
  %1130 = vmatprep.mubr.f32.mxu0 0.0
  %1131 = vmatmul.mubr.f32.gmra.mxu0 %v755
  %v1132 = vpop.f32.mrf.mxu0
  %v1133 = vadd.f32 %v717, %v1132
  %v1134 = vpop.f32.mrf.mxu0
  %1135 = vmatprep.mubr.f32.mxu0 0.0
  %1136 = vmatmul.mubr.f32.gmra.mxu0 %v758
  %v1137 = vpop.f32.mrf.mxu0
  %v1138 = vadd.f32 %v717, %v1137
  %v1139 = vpop.f32.mrf.mxu0
  %1140 = vmatprep.mubr.f32.mxu0 0.0
  %1141 = vmatmul.mubr.f32.gmra.mxu0 %v761
  %v1142 = vpop.f32.mrf.mxu0
  %v1143 = vadd.f32 %v717, %v1142
  %v1144 = vpop.f32.mrf.mxu0
  %1145 = vmatprep.mubr.f32.mxu0 0.0
  %1146 = vmatmul.mubr.f32.gmra.mxu0 %v764
  %v1147 = vpop.f32.mrf.mxu0
  %v1148 = vadd.f32 %v717, %v1147
  %v1149 = vpop.f32.mrf.mxu0
  %1150 = vmatprep.mubr.f32.mxu0 0.0
  %1151 = vmatmul.mubr.f32.gmra.mxu0 %v767
  %v1152 = vpop.f32.mrf.mxu0
  %v1153 = vadd.f32 %v717, %v1152
  %v1154 = vpop.f32.mrf.mxu0
  %1155 = vmatprep.mubr.f32.mxu0 0.0
  %1156 = vmatmul.mubr.f32.gmra.mxu0 %v770
  %v1157 = vpop.f32.mrf.mxu0
  %v1158 = vadd.f32 %v717, %v1157
  %v1159 = vpop.f32.mrf.mxu0
  %1160 = vmatprep.mubr.f32.mxu0 0.0
  %1161 = vmatmul.mubr.f32.gmra.mxu0 %v773
  %v1162 = vpop.f32.mrf.mxu0
  %v1163 = vadd.f32 %v717, %v1162
  %v1164 = vpop.f32.mrf.mxu0
  %1165 = vmatprep.mubr.f32.mxu0 0.0
  %1166 = vmatmul.mubr.f32.gmra.mxu0 %v776
  %v1167 = vpop.f32.mrf.mxu0
  %v1168 = vadd.f32 %v717, %v1167
  %v1169 = vpop.f32.mrf.mxu0
  %1170 = vmatprep.mubr.f32.mxu0 0.0
  %1171 = vmatmul.mubr.f32.gmra.mxu0 %v779
  %v1172 = vpop.f32.mrf.mxu0
  %v1173 = vadd.f32 %v717, %v1172
  %v1174 = vpop.f32.mrf.mxu0
  %1175 = vmatprep.mubr.f32.mxu0 0.0
  %1176 = vmatmul.mubr.f32.gmra.mxu0 %v782
  %v1177 = vpop.f32.mrf.mxu0
  %v1178 = vadd.f32 %v717, %v1177
  %v1179 = vpop.f32.mrf.mxu0
  %1180 = vmatprep.mubr.f32.mxu0 0.0
  %1181 = vmatmul.mubr.f32.gmra.mxu0 %v785
  %v1182 = vpop.f32.mrf.mxu0
  %v1183 = vadd.f32 %v717, %v1182
  %v1184 = vpop.f32.mrf.mxu0
  %1185 = vmatprep.mubr.f32.mxu0 0.0
  %1186 = vmatmul.mubr.f32.gmra.mxu0 %v788
  %v1187 = vpop.f32.mrf.mxu0
  %v1188 = vadd.f32 %v717, %v1187
  %v1189 = vpop.f32.mrf.mxu0
  %1190 = vmatprep.mubr.f32.mxu0 0.0
  %1191 = vmatmul.mubr.f32.gmra.mxu0 %v791
  %v1192 = vpop.f32.mrf.mxu0
  %v1193 = vadd.f32 %v717, %v1192
  %v1194 = vpop.f32.mrf.mxu0
  %1195 = vdwg.mxu0
  %v1196 = vld [vmem:[%s11] sm:$0xff]
  %v1197 = vld [vmem:[%s11 + $0x8] sm:$0xff]
  %v1198 = vld [vmem:[%s11 + $0x10] sm:$0xff]
  %v1199 = vld [vmem:[%s11 + $0x18] sm:$0x1]
  %v1200 = vld [vmem:[%s11 + $0x20] sm:$0x1]
  %v1201 = vld [vmem:[%s11 + $0x28] sm:$0x1]
  %v1203 = vsel %vm182, %v1199, 0
  %v1206 = vsel %vm182, %v1200, 0
  %v1209 = vsel %vm182, %v1201, 0
  %1211 = vmatprep.subr.mxu0 0.0
  %1212 = vmatpush1.msra.mxu0 0.0
  %1213 = vmatprep.subr.mxu0 0.0
  %1214 = vmatpush1.msra.mxu0 0.0
  %1215 = vmatprep.subr.mxu0 0.0
  %1216 = vmatpush1.msra.mxu0 0.0
  %1217 = vmatprep.subr.mxu0 0.0
  %1218 = vmatpush1.msra.mxu0 0.0
  %1219 = vmatprep.subr.mxu0 0.0
  %1220 = vmatpush1.msra.mxu0 0.0
  %1221 = vmatprep.subr.mxu0 0.0
  %1222 = vmatpush1.msra.mxu0 0.0
  %1223 = vmatprep.subr.mxu0 0.0
  %1224 = vmatpush1.msra.mxu0 0.0
  %1225 = vmatprep.subr.mxu0 0.0
  %1226 = vmatpush1.msra.mxu0 0.0
  %1227 = vmatprep.subr.mxu0 0.0
  %1228 = vmatpush1.msra.mxu0 0.0
  %1229 = vmatprep.subr.mxu0 0.0
  %1230 = vmatpush1.msra.mxu0 0.0
  %1231 = vmatprep.subr.mxu0 0.0
  %1232 = vmatpush1.msra.mxu0 0.0
  %1233 = vmatprep.subr.mxu0 0.0
  %1234 = vmatpush1.msra.mxu0 0.0
  %1235 = vmatprep.subr.mxu0 0.0
  %1236 = vmatpush1.msra.mxu0 0.0
  %1237 = vmatprep.subr.mxu0 0.0
  %1238 = vmatpush1.msra.mxu0 0.0
  %1239 = vmatprep.subr.mxu0 %v1206
  %1240 = vmatpush1.msra.mxu0 %v1203
  %1241 = vmatprep.subr.mxu0 %v1197
  %1242 = vmatpush1.msra.mxu0 %v1196
  %1243 = vmatprep.subr.mxu0 0.0
  %1244 = vmatpush2.msra.mxu0 0.0
  %1245 = vmatprep.subr.mxu0 0.0
  %1246 = vmatpush2.msra.mxu0 0.0
  %1247 = vmatprep.subr.mxu0 0.0
  %1248 = vmatpush2.msra.mxu0 0.0
  %1249 = vmatprep.subr.mxu0 0.0
  %1250 = vmatpush2.msra.mxu0 0.0
  %1251 = vmatprep.subr.mxu0 0.0
  %1252 = vmatpush2.msra.mxu0 0.0
  %1253 = vmatprep.subr.mxu0 0.0
  %1254 = vmatpush2.msra.mxu0 0.0
  %1255 = vmatprep.subr.mxu0 0.0
  %1256 = vmatpush2.msra.mxu0 0.0
  %1257 = vmatprep.subr.mxu0 0.0
  %1258 = vmatpush2.msra.mxu0 0.0
  %1259 = vmatprep.subr.mxu0 0.0
  %1260 = vmatpush2.msra.mxu0 0.0
  %1261 = vmatprep.subr.mxu0 0.0
  %1262 = vmatpush2.msra.mxu0 0.0
  %1263 = vmatprep.subr.mxu0 0.0
  %1264 = vmatpush2.msra.mxu0 0.0
  %1265 = vmatprep.subr.mxu0 0.0
  %1266 = vmatpush2.msra.mxu0 0.0
  %1267 = vmatprep.subr.mxu0 0.0
  %1268 = vmatpush2.msra.mxu0 0.0
  %1269 = vmatprep.subr.mxu0 0.0
  %1270 = vmatpush2.msra.mxu0 0.0
  %1271 = vmatprep.subr.mxu0 0.0
  %1272 = vmatpush2.msra.mxu0 0.0
  %1273 = vmatprep.subr.mxu0 0.0
  %1274 = vmatpush2.msra.mxu0 0.0
  %1275 = vmatprep.mubr.f32.mxu0 0.0
  %1276 = vmatmul.mubr.f32.gmra.mxu0 %v111
  %v1277 = vpop.f32.mrf.mxu0
  %v1278 = vadd.f32 0.0, %v1277
  %v1279 = vpop.f32.mrf.mxu0
  %v1280 = vadd.f32 0.0, %v1279
  %1281 = vmatprep.mubr.f32.mxu0 0.0
  %1282 = vmatmul.mubr.f32.gmra.mxu0 %v114
  %v1283 = vpop.f32.mrf.mxu0
  %v1284 = vadd.f32 0.0, %v1283
  %v1285 = vpop.f32.mrf.mxu0
  %v1286 = vadd.f32 0.0, %v1285
  %1287 = vmatprep.mubr.f32.mxu0 0.0
  %1288 = vmatmul.mubr.f32.gmra.mxu0 %v117
  %v1289 = vpop.f32.mrf.mxu0
  %v1290 = vadd.f32 0.0, %v1289
  %v1291 = vpop.f32.mrf.mxu0
  %v1292 = vadd.f32 0.0, %v1291
  %1293 = vmatprep.mubr.f32.mxu0 0.0
  %1294 = vmatmul.mubr.f32.gmra.mxu0 %v120
  %v1295 = vpop.f32.mrf.mxu0
  %v1296 = vadd.f32 0.0, %v1295
  %v1297 = vpop.f32.mrf.mxu0
  %v1298 = vadd.f32 0.0, %v1297
  %1299 = vmatprep.mubr.f32.mxu0 0.0
  %1300 = vmatmul.mubr.f32.gmra.mxu0 %v123
  %v1301 = vpop.f32.mrf.mxu0
  %v1302 = vadd.f32 0.0, %v1301
  %v1303 = vpop.f32.mrf.mxu0
  %v1304 = vadd.f32 0.0, %v1303
  %1305 = vmatprep.mubr.f32.mxu0 0.0
  %1306 = vmatmul.mubr.f32.gmra.mxu0 %v126
  %v1307 = vpop.f32.mrf.mxu0
  %v1308 = vadd.f32 0.0, %v1307
  %v1309 = vpop.f32.mrf.mxu0
  %v1310 = vadd.f32 0.0, %v1309
  %1311 = vmatprep.mubr.f32.mxu0 0.0
  %1312 = vmatmul.mubr.f32.gmra.mxu0 %v129
  %v1313 = vpop.f32.mrf.mxu0
  %v1314 = vadd.f32 0.0, %v1313
  %v1315 = vpop.f32.mrf.mxu0
  %v1316 = vadd.f32 0.0, %v1315
  %1317 = vmatprep.mubr.f32.mxu0 0.0
  %1318 = vmatmul.mubr.f32.gmra.mxu0 %v132
  %v1319 = vpop.f32.mrf.mxu0
  %v1320 = vadd.f32 0.0, %v1319
  %v1321 = vpop.f32.mrf.mxu0
  %v1322 = vadd.f32 0.0, %v1321
  %1323 = vmatprep.mubr.f32.mxu0 0.0
  %1324 = vmatmul.mubr.f32.gmra.mxu0 %v135
  %v1325 = vpop.f32.mrf.mxu0
  %v1326 = vadd.f32 0.0, %v1325
  %v1327 = vpop.f32.mrf.mxu0
  %v1328 = vadd.f32 0.0, %v1327
  %1329 = vmatprep.mubr.f32.mxu0 0.0
  %1330 = vmatmul.mubr.f32.gmra.mxu0 %v138
  %v1331 = vpop.f32.mrf.mxu0
  %v1332 = vadd.f32 0.0, %v1331
  %v1333 = vpop.f32.mrf.mxu0
  %v1334 = vadd.f32 0.0, %v1333
  %1335 = vmatprep.mubr.f32.mxu0 0.0
  %1336 = vmatmul.mubr.f32.gmra.mxu0 %v141
  %v1337 = vpop.f32.mrf.mxu0
  %v1338 = vadd.f32 0.0, %v1337
  %v1339 = vpop.f32.mrf.mxu0
  %v1340 = vadd.f32 0.0, %v1339
  %1341 = vmatprep.mubr.f32.mxu0 0.0
  %1342 = vmatmul.mubr.f32.gmra.mxu0 %v144
  %v1343 = vpop.f32.mrf.mxu0
  %v1344 = vadd.f32 0.0, %v1343
  %v1345 = vpop.f32.mrf.mxu0
  %v1346 = vadd.f32 0.0, %v1345
  %1347 = vmatprep.mubr.f32.mxu0 0.0
  %1348 = vmatmul.mubr.f32.gmra.mxu0 %v147
  %v1349 = vpop.f32.mrf.mxu0
  %v1350 = vadd.f32 0.0, %v1349
  %v1351 = vpop.f32.mrf.mxu0
  %v1352 = vadd.f32 0.0, %v1351
  %1353 = vmatprep.mubr.f32.mxu0 0.0
  %1354 = vmatmul.mubr.f32.gmra.mxu0 %v150
  %v1355 = vpop.f32.mrf.mxu0
  %v1356 = vadd.f32 0.0, %v1355
  %v1357 = vpop.f32.mrf.mxu0
  %v1358 = vadd.f32 0.0, %v1357
  %1359 = vmatprep.mubr.f32.mxu0 0.0
  %1360 = vmatmul.mubr.f32.gmra.mxu0 %v153
  %v1361 = vpop.f32.mrf.mxu0
  %v1362 = vadd.f32 0.0, %v1361
  %v1363 = vpop.f32.mrf.mxu0
  %v1364 = vadd.f32 0.0, %v1363
  %1365 = vmatprep.mubr.f32.mxu0 0.0
  %1366 = vmatmul.mubr.f32.gmra.mxu0 %v156
  %v1367 = vpop.f32.mrf.mxu0
  %v1368 = vadd.f32 0.0, %v1367
  %v1369 = vpop.f32.mrf.mxu0
  %v1370 = vadd.f32 0.0, %v1369
  %1371 = vmatprep.mubr.f32.mxu0 0.0
  %1372 = vmatmul.mubr.f32.gmra.mxu0 %v159
  %v1373 = vpop.f32.mrf.mxu0
  %v1374 = vadd.f32 0.0, %v1373
  %v1375 = vpop.f32.mrf.mxu0
  %v1376 = vadd.f32 0.0, %v1375
  %1377 = vmatprep.mubr.f32.mxu0 0.0
  %1378 = vmatmul.mubr.f32.gmra.mxu0 %v162
  %v1379 = vpop.f32.mrf.mxu0
  %v1380 = vadd.f32 0.0, %v1379
  %v1381 = vpop.f32.mrf.mxu0
  %v1382 = vadd.f32 0.0, %v1381
  %1383 = vmatprep.mubr.f32.mxu0 0.0
  %1384 = vmatmul.mubr.f32.gmra.mxu0 %v165
  %v1385 = vpop.f32.mrf.mxu0
  %v1386 = vadd.f32 0.0, %v1385
  %v1387 = vpop.f32.mrf.mxu0
  %v1388 = vadd.f32 0.0, %v1387
  %1389 = vmatprep.mubr.f32.mxu0 0.0
  %1390 = vmatmul.mubr.f32.gmra.mxu0 %v168
  %v1391 = vpop.f32.mrf.mxu0
  %v1392 = vadd.f32 0.0, %v1391
  %v1393 = vpop.f32.mrf.mxu0
  %v1394 = vadd.f32 0.0, %v1393
  %1395 = vmatprep.mubr.f32.mxu0 0.0
  %1396 = vmatmul.mubr.f32.gmra.mxu0 %v171
  %v1397 = vpop.f32.mrf.mxu0
  %v1398 = vadd.f32 0.0, %v1397
  %v1399 = vpop.f32.mrf.mxu0
  %v1400 = vadd.f32 0.0, %v1399
  %1401 = vmatprep.mubr.f32.mxu0 0.0
  %1402 = vmatmul.mubr.f32.gmra.mxu0 %v174
  %v1403 = vpop.f32.mrf.mxu0
  %v1404 = vadd.f32 0.0, %v1403
  %v1405 = vpop.f32.mrf.mxu0
  %v1406 = vadd.f32 0.0, %v1405
  %1407 = vmatprep.mubr.f32.mxu0 0.0
  %1408 = vmatmul.mubr.f32.gmra.mxu0 %v177
  %v1409 = vpop.f32.mrf.mxu0
  %v1410 = vadd.f32 0.0, %v1409
  %v1411 = vpop.f32.mrf.mxu0
  %v1412 = vadd.f32 0.0, %v1411
  %1413 = vmatprep.mubr.f32.mxu0 0.0
  %1414 = vmatmul.mubr.f32.gmra.mxu0 %v180
  %v1415 = vpop.f32.mrf.mxu0
  %v1416 = vadd.f32 0.0, %v1415
  %v1417 = vpop.f32.mrf.mxu0
  %v1418 = vadd.f32 0.0, %v1417
  %1419 = vdwg.mxu0
  %1420 = vmatprep.subr.mxu0 0.0
  %1421 = vmatpush1.msra.mxu0 0.0
  %1422 = vmatprep.subr.mxu0 0.0
  %1423 = vmatpush1.msra.mxu0 0.0
  %1424 = vmatprep.subr.mxu0 0.0
  %1425 = vmatpush1.msra.mxu0 0.0
  %1426 = vmatprep.subr.mxu0 0.0
  %1427 = vmatpush1.msra.mxu0 0.0
  %1428 = vmatprep.subr.mxu0 0.0
  %1429 = vmatpush1.msra.mxu0 0.0
  %1430 = vmatprep.subr.mxu0 0.0
  %1431 = vmatpush1.msra.mxu0 0.0
  %1432 = vmatprep.subr.mxu0 0.0
  %1433 = vmatpush1.msra.mxu0 0.0
  %1434 = vmatprep.subr.mxu0 0.0
  %1435 = vmatpush1.msra.mxu0 0.0
  %1436 = vmatprep.subr.mxu0 0.0
  %1437 = vmatpush1.msra.mxu0 0.0
  %1438 = vmatprep.subr.mxu0 0.0
  %1439 = vmatpush1.msra.mxu0 0.0
  %1440 = vmatprep.subr.mxu0 0.0
  %1441 = vmatpush1.msra.mxu0 0.0
  %1442 = vmatprep.subr.mxu0 0.0
  %1443 = vmatpush1.msra.mxu0 0.0
  %1444 = vmatprep.subr.mxu0 0.0
  %1445 = vmatpush1.msra.mxu0 0.0
  %1446 = vmatprep.subr.mxu0 0.0
  %1447 = vmatpush1.msra.mxu0 0.0
  %1448 = vmatprep.subr.mxu0 0.0
  %1449 = vmatpush1.msra.mxu0 %v1209
  %1450 = vmatprep.subr.mxu0 0.0
  %1451 = vmatpush1.msra.mxu0 %v1198
  %1452 = vmatprep.subr.mxu0 0.0
  %1453 = vmatpush2.msra.mxu0 0.0
  %1454 = vmatprep.subr.mxu0 0.0
  %1455 = vmatpush2.msra.mxu0 0.0
  %1456 = vmatprep.subr.mxu0 0.0
  %1457 = vmatpush2.msra.mxu0 0.0
  %1458 = vmatprep.subr.mxu0 0.0
  %1459 = vmatpush2.msra.mxu0 0.0
  %1460 = vmatprep.subr.mxu0 0.0
  %1461 = vmatpush2.msra.mxu0 0.0
  %1462 = vmatprep.subr.mxu0 0.0
  %1463 = vmatpush2.msra.mxu0 0.0
  %1464 = vmatprep.subr.mxu0 0.0
  %1465 = vmatpush2.msra.mxu0 0.0
  %1466 = vmatprep.subr.mxu0 0.0
  %1467 = vmatpush2.msra.mxu0 0.0
  %1468 = vmatprep.subr.mxu0 0.0
  %1469 = vmatpush2.msra.mxu0 0.0
  %1470 = vmatprep.subr.mxu0 0.0
  %1471 = vmatpush2.msra.mxu0 0.0
  %1472 = vmatprep.subr.mxu0 0.0
  %1473 = vmatpush2.msra.mxu0 0.0
  %1474 = vmatprep.subr.mxu0 0.0
  %1475 = vmatpush2.msra.mxu0 0.0
  %1476 = vmatprep.subr.mxu0 0.0
  %1477 = vmatpush2.msra.mxu0 0.0
  %1478 = vmatprep.subr.mxu0 0.0
  %1479 = vmatpush2.msra.mxu0 0.0
  %1480 = vmatprep.subr.mxu0 0.0
  %1481 = vmatpush2.msra.mxu0 0.0
  %1482 = vmatprep.subr.mxu0 0.0
  %1483 = vmatpush2.msra.mxu0 0.0
  %1484 = vmatprep.mubr.f32.mxu0 0.0
  %1485 = vmatmul.mubr.f32.gmra.mxu0 %v111
  %v1486 = vpop.f32.mrf.mxu0
  %v1487 = vadd.f32 0.0, %v1486
  %v1488 = vpop.f32.mrf.mxu0
  %1489 = vmatprep.mubr.f32.mxu0 0.0
  %1490 = vmatmul.mubr.f32.gmra.mxu0 %v114
  %v1491 = vpop.f32.mrf.mxu0
  %v1492 = vadd.f32 0.0, %v1491
  %v1493 = vpop.f32.mrf.mxu0
  %1494 = vmatprep.mubr.f32.mxu0 0.0
  %1495 = vmatmul.mubr.f32.gmra.mxu0 %v117
  %v1496 = vpop.f32.mrf.mxu0
  %v1497 = vadd.f32 0.0, %v1496
  %v1498 = vpop.f32.mrf.mxu0
  %1499 = vmatprep.mubr.f32.mxu0 0.0
  %1500 = vmatmul.mubr.f32.gmra.mxu0 %v120
  %v1501 = vpop.f32.mrf.mxu0
  %v1502 = vadd.f32 0.0, %v1501
  %v1503 = vpop.f32.mrf.mxu0
  %1504 = vmatprep.mubr.f32.mxu0 0.0
  %1505 = vmatmul.mubr.f32.gmra.mxu0 %v123
  %v1506 = vpop.f32.mrf.mxu0
  %v1507 = vadd.f32 0.0, %v1506
  %v1508 = vpop.f32.mrf.mxu0
  %1509 = vmatprep.mubr.f32.mxu0 0.0
  %1510 = vmatmul.mubr.f32.gmra.mxu0 %v126
  %v1511 = vpop.f32.mrf.mxu0
  %v1512 = vadd.f32 0.0, %v1511
  %v1513 = vpop.f32.mrf.mxu0
  %1514 = vmatprep.mubr.f32.mxu0 0.0
  %1515 = vmatmul.mubr.f32.gmra.mxu0 %v129
  %v1516 = vpop.f32.mrf.mxu0
  %v1517 = vadd.f32 0.0, %v1516
  %v1518 = vpop.f32.mrf.mxu0
  %1519 = vmatprep.mubr.f32.mxu0 0.0
  %1520 = vmatmul.mubr.f32.gmra.mxu0 %v132
  %v1521 = vpop.f32.mrf.mxu0
  %v1522 = vadd.f32 0.0, %v1521
  %v1523 = vpop.f32.mrf.mxu0
  %1524 = vmatprep.mubr.f32.mxu0 0.0
  %1525 = vmatmul.mubr.f32.gmra.mxu0 %v135
  %v1526 = vpop.f32.mrf.mxu0
  %v1527 = vadd.f32 0.0, %v1526
  %v1528 = vpop.f32.mrf.mxu0
  %1529 = vmatprep.mubr.f32.mxu0 0.0
  %1530 = vmatmul.mubr.f32.gmra.mxu0 %v138
  %v1531 = vpop.f32.mrf.mxu0
  %v1532 = vadd.f32 0.0, %v1531
  %v1533 = vpop.f32.mrf.mxu0
  %1534 = vmatprep.mubr.f32.mxu0 0.0
  %1535 = vmatmul.mubr.f32.gmra.mxu0 %v141
  %v1536 = vpop.f32.mrf.mxu0
  %v1537 = vadd.f32 0.0, %v1536
  %v1538 = vpop.f32.mrf.mxu0
  %1539 = vmatprep.mubr.f32.mxu0 0.0
  %1540 = vmatmul.mubr.f32.gmra.mxu0 %v144
  %v1541 = vpop.f32.mrf.mxu0
  %v1542 = vadd.f32 0.0, %v1541
  %v1543 = vpop.f32.mrf.mxu0
  %1544 = vmatprep.mubr.f32.mxu0 0.0
  %1545 = vmatmul.mubr.f32.gmra.mxu0 %v147
  %v1546 = vpop.f32.mrf.mxu0
  %v1547 = vadd.f32 0.0, %v1546
  %v1548 = vpop.f32.mrf.mxu0
  %1549 = vmatprep.mubr.f32.mxu0 0.0
  %1550 = vmatmul.mubr.f32.gmra.mxu0 %v150
  %v1551 = vpop.f32.mrf.mxu0
  %v1552 = vadd.f32 0.0, %v1551
  %v1553 = vpop.f32.mrf.mxu0
  %1554 = vmatprep.mubr.f32.mxu0 0.0
  %1555 = vmatmul.mubr.f32.gmra.mxu0 %v153
  %v1556 = vpop.f32.mrf.mxu0
  %v1557 = vadd.f32 0.0, %v1556
  %v1558 = vpop.f32.mrf.mxu0
  %1559 = vmatprep.mubr.f32.mxu0 0.0
  %1560 = vmatmul.mubr.f32.gmra.mxu0 %v156
  %v1561 = vpop.f32.mrf.mxu0
  %v1562 = vadd.f32 0.0, %v1561
  %v1563 = vpop.f32.mrf.mxu0
  %1564 = vmatprep.mubr.f32.mxu0 0.0
  %1565 = vmatmul.mubr.f32.gmra.mxu0 %v159
  %v1566 = vpop.f32.mrf.mxu0
  %v1567 = vadd.f32 0.0, %v1566
  %v1568 = vpop.f32.mrf.mxu0
  %1569 = vmatprep.mubr.f32.mxu0 0.0
  %1570 = vmatmul.mubr.f32.gmra.mxu0 %v162
  %v1571 = vpop.f32.mrf.mxu0
  %v1572 = vadd.f32 0.0, %v1571
  %v1573 = vpop.f32.mrf.mxu0
  %1574 = vmatprep.mubr.f32.mxu0 0.0
  %1575 = vmatmul.mubr.f32.gmra.mxu0 %v165
  %v1576 = vpop.f32.mrf.mxu0
  %v1577 = vadd.f32 0.0, %v1576
  %v1578 = vpop.f32.mrf.mxu0
  %1579 = vmatprep.mubr.f32.mxu0 0.0
  %1580 = vmatmul.mubr.f32.gmra.mxu0 %v168
  %v1581 = vpop.f32.mrf.mxu0
  %v1582 = vadd.f32 0.0, %v1581
  %v1583 = vpop.f32.mrf.mxu0
  %1584 = vmatprep.mubr.f32.mxu0 0.0
  %1585 = vmatmul.mubr.f32.gmra.mxu0 %v171
  %v1586 = vpop.f32.mrf.mxu0
  %v1587 = vadd.f32 0.0, %v1586
  %v1588 = vpop.f32.mrf.mxu0
  %1589 = vmatprep.mubr.f32.mxu0 0.0
  %1590 = vmatmul.mubr.f32.gmra.mxu0 %v174
  %v1591 = vpop.f32.mrf.mxu0
  %v1592 = vadd.f32 0.0, %v1591
  %v1593 = vpop.f32.mrf.mxu0
  %1594 = vmatprep.mubr.f32.mxu0 0.0
  %1595 = vmatmul.mubr.f32.gmra.mxu0 %v177
  %v1596 = vpop.f32.mrf.mxu0
  %v1597 = vadd.f32 0.0, %v1596
  %v1598 = vpop.f32.mrf.mxu0
  %1599 = vmatprep.mubr.f32.mxu0 0.0
  %1600 = vmatmul.mubr.f32.gmra.mxu0 %v180
  %v1601 = vpop.f32.mrf.mxu0
  %v1602 = vadd.f32 0.0, %v1601
  %v1603 = vpop.f32.mrf.mxu0
  %1604 = vdwg.mxu0
  %v1605 = vld [vmem:[%s1] sm:$0xff]
  %v1606 = vld [vmem:[%s1 + $0x8] sm:$0xff]
  %v1607 = vld [vmem:[%s1 + $0x10] sm:$0xff]
  %v1608 = vld [vmem:[%s1 + $0x18] sm:$0xff]
  %v1609 = vld [vmem:[%s1 + $0x20] sm:$0xff]
  %v1610 = vld [vmem:[%s1 + $0x28] sm:$0xff]
  %v1611 = vld [vmem:[%s1 + $0x30] sm:$0xff]
  %v1612 = vld [vmem:[%s1 + $0x38] sm:$0xff]
  %v1613 = vld [vmem:[%s1 + $0x40] sm:$0xff]
  %v1614 = vld [vmem:[%s1 + $0x48] sm:$0xff]
  %v1615 = vld [vmem:[%s1 + $0x50] sm:$0xff]
  %v1616 = vld [vmem:[%s1 + $0x58] sm:$0xff]
  %v1617 = vld [vmem:[%s1 + $0x60] sm:$0xff]
  %v1618 = vld [vmem:[%s1 + $0x68] sm:$0xff]
  %v1619 = vld [vmem:[%s1 + $0x70] sm:$0xff]
  %v1620 = vld [vmem:[%s1 + $0x78] sm:$0xff]
  %v1621 = vld [vmem:[%s1 + $0x80] sm:$0xff]
  %v1622 = vld [vmem:[%s1 + $0x88] sm:$0xff]
  %v1623 = vld [vmem:[%s1 + $0x90] sm:$0xff]
  %v1624 = vld [vmem:[%s1 + $0x98] sm:$0xff]
  %v1625 = vld [vmem:[%s1 + $0xa0] sm:$0xff]
  %v1626 = vld [vmem:[%s1 + $0xa8] sm:$0xff]
  %v1627 = vld [vmem:[%s1 + $0xb0] sm:$0xff]
  %v1628 = vld [vmem:[%s1 + $0xb8] sm:$0xff]
  %vm1629 = vcmp.ne.f32.partialorder %v1605, 0.0
  %vm1630 = vcmp.ne.f32.partialorder %v1606, 0.0
  %vm1631 = vcmp.ne.f32.partialorder %v1607, 0.0
  %vm1632 = vcmp.ne.f32.partialorder %v1608, 0.0
  %vm1633 = vcmp.ne.f32.partialorder %v1609, 0.0
  %vm1634 = vcmp.ne.f32.partialorder %v1610, 0.0
  %vm1635 = vcmp.ne.f32.partialorder %v1611, 0.0
  %vm1636 = vcmp.ne.f32.partialorder %v1612, 0.0
  %vm1637 = vcmp.ne.f32.partialorder %v1613, 0.0
  %vm1638 = vcmp.ne.f32.partialorder %v1614, 0.0
  %vm1639 = vcmp.ne.f32.partialorder %v1615, 0.0
  %vm1640 = vcmp.ne.f32.partialorder %v1616, 0.0
  %vm1641 = vcmp.ne.f32.partialorder %v1617, 0.0
  %vm1642 = vcmp.ne.f32.partialorder %v1618, 0.0
  %vm1643 = vcmp.ne.f32.partialorder %v1619, 0.0
  %vm1644 = vcmp.ne.f32.partialorder %v1620, 0.0
  %vm1645 = vcmp.ne.f32.partialorder %v1621, 0.0
  %vm1646 = vcmp.ne.f32.partialorder %v1622, 0.0
  %vm1647 = vcmp.ne.f32.partialorder %v1623, 0.0
  %vm1648 = vcmp.ne.f32.partialorder %v1624, 0.0
  %vm1649 = vcmp.ne.f32.partialorder %v1625, 0.0
  %vm1650 = vcmp.ne.f32.partialorder %v1626, 0.0
  %vm1651 = vcmp.ne.f32.partialorder %v1627, 0.0
  %vm1652 = vcmp.ne.f32.partialorder %v1628, 0.0
  %v1653 = vsel %vm1629, 1, 0
  %v1654 = vsel %vm1630, 1, 0
  %v1655 = vsel %vm1631, 1, 0
  %v1656 = vsel %vm1632, 1, 0
  %v1657 = vsel %vm1633, 1, 0
  %v1658 = vsel %vm1634, 1, 0
  %v1659 = vsel %vm1635, 1, 0
  %v1660 = vsel %vm1636, 1, 0
  %v1661 = vsel %vm1637, 1, 0
  %v1662 = vsel %vm1638, 1, 0
  %v1663 = vsel %vm1639, 1, 0
  %v1664 = vsel %vm1640, 1, 0
  %v1665 = vsel %vm1641, 1, 0
  %v1666 = vsel %vm1642, 1, 0
  %v1667 = vsel %vm1643, 1, 0
  %v1668 = vsel %vm1644, 1, 0
  %v1669 = vsel %vm1645, 1, 0
  %v1670 = vsel %vm1646, 1, 0
  %v1671 = vsel %vm1647, 1, 0
  %v1672 = vsel %vm1648, 1, 0
  %v1673 = vsel %vm1649, 1, 0
  %v1674 = vsel %vm1650, 1, 0
  %v1675 = vsel %vm1651, 1, 0
  %v1676 = vsel %vm1652, 1, 0
  %1677 = vset.pattern.permute.xlu0 0
  %1678 = vperm.xlu0 %1677, %v1653
  %v1679 = vpop.permute.xlu0 %1678
  %1680 = vset.pattern.permute.xlu0 0
  %1681 = vperm.xlu0 %1680, %v1654
  %v1682 = vpop.permute.xlu0 %1681
  %1683 = vset.pattern.permute.xlu0 0
  %1684 = vperm.xlu0 %1683, %v1655
  %v1685 = vpop.permute.xlu0 %1684
  %1686 = vset.pattern.permute.xlu0 0
  %1687 = vperm.xlu0 %1686, %v1656
  %v1688 = vpop.permute.xlu0 %1687
  %1689 = vset.pattern.permute.xlu0 0
  %1690 = vperm.xlu0 %1689, %v1657
  %v1691 = vpop.permute.xlu0 %1690
  %1692 = vset.pattern.permute.xlu0 0
  %1693 = vperm.xlu0 %1692, %v1658
  %v1694 = vpop.permute.xlu0 %1693
  %1695 = vset.pattern.permute.xlu0 0
  %1696 = vperm.xlu0 %1695, %v1659
  %v1697 = vpop.permute.xlu0 %1696
  %1698 = vset.pattern.permute.xlu0 0
  %1699 = vperm.xlu0 %1698, %v1660
  %v1700 = vpop.permute.xlu0 %1699
  %1701 = vset.pattern.permute.xlu0 0
  %1702 = vperm.xlu0 %1701, %v1661
  %v1703 = vpop.permute.xlu0 %1702
  %1704 = vset.pattern.permute.xlu0 0
  %1705 = vperm.xlu0 %1704, %v1662
  %v1706 = vpop.permute.xlu0 %1705
  %1707 = vset.pattern.permute.xlu0 0
  %1708 = vperm.xlu0 %1707, %v1663
  %v1709 = vpop.permute.xlu0 %1708
  %1710 = vset.pattern.permute.xlu0 0
  %1711 = vperm.xlu0 %1710, %v1664
  %v1712 = vpop.permute.xlu0 %1711
  %1713 = vset.pattern.permute.xlu0 0
  %1714 = vperm.xlu0 %1713, %v1665
  %v1715 = vpop.permute.xlu0 %1714
  %1716 = vset.pattern.permute.xlu0 0
  %1717 = vperm.xlu0 %1716, %v1666
  %v1718 = vpop.permute.xlu0 %1717
  %1719 = vset.pattern.permute.xlu0 0
  %1720 = vperm.xlu0 %1719, %v1667
  %v1721 = vpop.permute.xlu0 %1720
  %1722 = vset.pattern.permute.xlu0 0
  %1723 = vperm.xlu0 %1722, %v1668
  %v1724 = vpop.permute.xlu0 %1723
  %1725 = vset.pattern.permute.xlu0 0
  %1726 = vperm.xlu0 %1725, %v1669
  %v1727 = vpop.permute.xlu0 %1726
  %1728 = vset.pattern.permute.xlu0 0
  %1729 = vperm.xlu0 %1728, %v1670
  %v1730 = vpop.permute.xlu0 %1729
  %1731 = vset.pattern.permute.xlu0 0
  %1732 = vperm.xlu0 %1731, %v1671
  %v1733 = vpop.permute.xlu0 %1732
  %1734 = vset.pattern.permute.xlu0 0
  %1735 = vperm.xlu0 %1734, %v1672
  %v1736 = vpop.permute.xlu0 %1735
  %1737 = vset.pattern.permute.xlu0 0
  %1738 = vperm.xlu0 %1737, %v1673
  %v1739 = vpop.permute.xlu0 %1738
  %1740 = vset.pattern.permute.xlu0 0
  %1741 = vperm.xlu0 %1740, %v1674
  %v1742 = vpop.permute.xlu0 %1741
  %1743 = vset.pattern.permute.xlu0 0
  %1744 = vperm.xlu0 %1743, %v1675
  %v1745 = vpop.permute.xlu0 %1744
  %1746 = vset.pattern.permute.xlu0 0
  %1747 = vperm.xlu0 %1746, %v1676
  %v1748 = vpop.permute.xlu0 %1747
  %vm1749 = vcmp.eq.s32.totalorder %v1679, 1
  %vm1750 = vcmp.eq.s32.totalorder %v1682, 1
  %vm1751 = vcmp.eq.s32.totalorder %v1685, 1
  %vm1752 = vcmp.eq.s32.totalorder %v1688, 1
  %vm1753 = vcmp.eq.s32.totalorder %v1691, 1
  %vm1754 = vcmp.eq.s32.totalorder %v1694, 1
  %vm1755 = vcmp.eq.s32.totalorder %v1697, 1
  %vm1756 = vcmp.eq.s32.totalorder %v1700, 1
  %vm1757 = vcmp.eq.s32.totalorder %v1703, 1
  %vm1758 = vcmp.eq.s32.totalorder %v1706, 1
  %vm1759 = vcmp.eq.s32.totalorder %v1709, 1
  %vm1760 = vcmp.eq.s32.totalorder %v1712, 1
  %vm1761 = vcmp.eq.s32.totalorder %v1715, 1
  %vm1762 = vcmp.eq.s32.totalorder %v1718, 1
  %vm1763 = vcmp.eq.s32.totalorder %v1721, 1
  %vm1764 = vcmp.eq.s32.totalorder %v1724, 1
  %vm1765 = vcmp.eq.s32.totalorder %v1727, 1
  %vm1766 = vcmp.eq.s32.totalorder %v1730, 1
  %vm1767 = vcmp.eq.s32.totalorder %v1733, 1
  %vm1768 = vcmp.eq.s32.totalorder %v1736, 1
  %vm1769 = vcmp.eq.s32.totalorder %v1739, 1
  %vm1770 = vcmp.eq.s32.totalorder %v1742, 1
  %vm1771 = vcmp.eq.s32.totalorder %v1745, 1
  %vm1772 = vcmp.eq.s32.totalorder %v1748, 1
  %v1773 = vsel %vm1749, %v869, -1e+08
  %v1774 = vsel %vm1749, %v871, -1e+08
  %v1775 = vsel %vm1749, %v1078, -1e+08
  %v1776 = vsel %vm1750, %v875, -1e+08
  %v1777 = vsel %vm1750, %v877, -1e+08
  %v1778 = vsel %vm1750, %v1083, -1e+08
  %v1779 = vsel %vm1751, %v881, -1e+08
  %v1780 = vsel %vm1751, %v883, -1e+08
  %v1781 = vsel %vm1751, %v1088, -1e+08
  %v1782 = vsel %vm1752, %v887, -1e+08
  %v1783 = vsel %vm1752, %v889, -1e+08
  %v1784 = vsel %vm1752, %v1093, -1e+08
  %v1785 = vsel %vm1753, %v893, -1e+08
  %v1786 = vsel %vm1753, %v895, -1e+08
  %v1787 = vsel %vm1753, %v1098, -1e+08
  %v1788 = vsel %vm1754, %v899, -1e+08
  %v1789 = vsel %vm1754, %v901, -1e+08
  %v1790 = vsel %vm1754, %v1103, -1e+08
  %v1791 = vsel %vm1755, %v905, -1e+08
  %v1792 = vsel %vm1755, %v907, -1e+08
  %v1793 = vsel %vm1755, %v1108, -1e+08
  %v1794 = vsel %vm1756, %v911, -1e+08
  %v1795 = vsel %vm1756, %v913, -1e+08
  %v1796 = vsel %vm1756, %v1113, -1e+08
  %v1797 = vsel %vm1757, %v917, -1e+08
  %v1798 = vsel %vm1757, %v919, -1e+08
  %v1799 = vsel %vm1757, %v1118, -1e+08
  %v1800 = vsel %vm1758, %v923, -1e+08
  %v1801 = vsel %vm1758, %v925, -1e+08
  %v1802 = vsel %vm1758, %v1123, -1e+08
  %v1803 = vsel %vm1759, %v929, -1e+08
  %v1804 = vsel %vm1759, %v931, -1e+08
  %v1805 = vsel %vm1759, %v1128, -1e+08
  %v1806 = vsel %vm1760, %v935, -1e+08
  %v1807 = vsel %vm1760, %v937, -1e+08
  %v1808 = vsel %vm1760, %v1133, -1e+08
  %v1809 = vsel %vm1761, %v941, -1e+08
  %v1810 = vsel %vm1761, %v943, -1e+08
  %v1811 = vsel %vm1761, %v1138, -1e+08
  %v1812 = vsel %vm1762, %v947, -1e+08
  %v1813 = vsel %vm1762, %v949, -1e+08
  %v1814 = vsel %vm1762, %v1143, -1e+08
  %v1815 = vsel %vm1763, %v953, -1e+08
  %v1816 = vsel %vm1763, %v955, -1e+08
  %v1817 = vsel %vm1763, %v1148, -1e+08
  %v1818 = vsel %vm1764, %v959, -1e+08
  %v1819 = vsel %vm1764, %v961, -1e+08
  %v1820 = vsel %vm1764, %v1153, -1e+08
  %v1821 = vsel %vm1765, %v965, -1e+08
  %v1822 = vsel %vm1765, %v967, -1e+08
  %v1823 = vsel %vm1765, %v1158, -1e+08
  %v1824 = vsel %vm1766, %v971, -1e+08
  %v1825 = vsel %vm1766, %v973, -1e+08
  %v1826 = vsel %vm1766, %v1163, -1e+08
  %v1827 = vsel %vm1767, %v977, -1e+08
  %v1828 = vsel %vm1767, %v979, -1e+08
  %v1829 = vsel %vm1767, %v1168, -1e+08
  %v1830 = vsel %vm1768, %v983, -1e+08
  %v1831 = vsel %vm1768, %v985, -1e+08
  %v1832 = vsel %vm1768, %v1173, -1e+08
  %v1833 = vsel %vm1769, %v989, -1e+08
  %v1834 = vsel %vm1769, %v991, -1e+08
  %v1835 = vsel %vm1769, %v1178, -1e+08
  %v1836 = vsel %vm1770, %v995, -1e+08
  %v1837 = vsel %vm1770, %v997, -1e+08
  %v1838 = vsel %vm1770, %v1183, -1e+08
  %v1839 = vsel %vm1771, %v1001, -1e+08
  %v1840 = vsel %vm1771, %v1003, -1e+08
  %v1841 = vsel %vm1771, %v1188, -1e+08
  %v1842 = vsel %vm1772, %v1007, -1e+08
  %v1843 = vsel %vm1772, %v1009, -1e+08
  %v1844 = vsel %vm1772, %v1193, -1e+08
  %v1845 = vrot.slane %v1773, 4
  %v1846 = vmax.f32 %v1773, %v1845
  %v1847 = vrot.slane %v1846, 2
  %v1848 = vmax.f32 %v1846, %v1847
  %v1849 = vrot.slane %v1848, 1
  %v1850 = vmax.f32 %v1848, %v1849
  %v1851 = vrot.slane %v1774, 4
  %v1852 = vmax.f32 %v1774, %v1851
  %v1853 = vrot.slane %v1852, 2
  %v1854 = vmax.f32 %v1852, %v1853
  %v1855 = vrot.slane %v1854, 1
  %v1856 = vmax.f32 %v1854, %v1855
  %vm1857 = vcmask 187392
  %v1858 = vsel %vm1857, %v1775, -inf
  %v1859 = vrot.slane %v1858, 4
  %v1860 = vmax.f32 %v1858, %v1859
  %v1861 = vrot.slane %v1860, 2
  %v1862 = vmax.f32 %v1860, %v1861
  %v1863 = vrot.slane %v1862, 1
  %v1864 = vmax.f32 %v1862, %v1863
  %v1865 = vrot.slane %v1776, 4
  %v1866 = vmax.f32 %v1776, %v1865
  %v1867 = vrot.slane %v1866, 2
  %v1868 = vmax.f32 %v1866, %v1867
  %v1869 = vrot.slane %v1868, 1
  %v1870 = vmax.f32 %v1868, %v1869
  %v1871 = vrot.slane %v1777, 4
  %v1872 = vmax.f32 %v1777, %v1871
  %v1873 = vrot.slane %v1872, 2
  %v1874 = vmax.f32 %v1872, %v1873
  %v1875 = vrot.slane %v1874, 1
  %v1876 = vmax.f32 %v1874, %v1875
  %v1877 = vsel %vm1857, %v1778, -inf
  %v1878 = vrot.slane %v1877, 4
  %v1879 = vmax.f32 %v1877, %v1878
  %v1880 = vrot.slane %v1879, 2
  %v1881 = vmax.f32 %v1879, %v1880
  %v1882 = vrot.slane %v1881, 1
  %v1883 = vmax.f32 %v1881, %v1882
  %v1884 = vrot.slane %v1779, 4
  %v1885 = vmax.f32 %v1779, %v1884
  %v1886 = vrot.slane %v1885, 2
  %v1887 = vmax.f32 %v1885, %v1886
  %v1888 = vrot.slane %v1887, 1
  %v1889 = vmax.f32 %v1887, %v1888
  %v1890 = vrot.slane %v1780, 4
  %v1891 = vmax.f32 %v1780, %v1890
  %v1892 = vrot.slane %v1891, 2
  %v1893 = vmax.f32 %v1891, %v1892
  %v1894 = vrot.slane %v1893, 1
  %v1895 = vmax.f32 %v1893, %v1894
  %v1896 = vsel %vm1857, %v1781, -inf
  %v1897 = vrot.slane %v1896, 4
  %v1898 = vmax.f32 %v1896, %v1897
  %v1899 = vrot.slane %v1898, 2
  %v1900 = vmax.f32 %v1898, %v1899
  %v1901 = vrot.slane %v1900, 1
  %v1902 = vmax.f32 %v1900, %v1901
  %v1903 = vrot.slane %v1782, 4
  %v1904 = vmax.f32 %v1782, %v1903
  %v1905 = vrot.slane %v1904, 2
  %v1906 = vmax.f32 %v1904, %v1905
  %v1907 = vrot.slane %v1906, 1
  %v1908 = vmax.f32 %v1906, %v1907
  %v1909 = vrot.slane %v1783, 4
  %v1910 = vmax.f32 %v1783, %v1909
  %v1911 = vrot.slane %v1910, 2
  %v1912 = vmax.f32 %v1910, %v1911
  %v1913 = vrot.slane %v1912, 1
  %v1914 = vmax.f32 %v1912, %v1913
  %v1915 = vsel %vm1857, %v1784, -inf
  %v1916 = vrot.slane %v1915, 4
  %v1917 = vmax.f32 %v1915, %v1916
  %v1918 = vrot.slane %v1917, 2
  %v1919 = vmax.f32 %v1917, %v1918
  %v1920 = vrot.slane %v1919, 1
  %v1921 = vmax.f32 %v1919, %v1920
  %v1922 = vrot.slane %v1785, 4
  %v1923 = vmax.f32 %v1785, %v1922
  %v1924 = vrot.slane %v1923, 2
  %v1925 = vmax.f32 %v1923, %v1924
  %v1926 = vrot.slane %v1925, 1
  %v1927 = vmax.f32 %v1925, %v1926
  %v1928 = vrot.slane %v1786, 4
  %v1929 = vmax.f32 %v1786, %v1928
  %v1930 = vrot.slane %v1929, 2
  %v1931 = vmax.f32 %v1929, %v1930
  %v1932 = vrot.slane %v1931, 1
  %v1933 = vmax.f32 %v1931, %v1932
  %v1934 = vsel %vm1857, %v1787, -inf
  %v1935 = vrot.slane %v1934, 4
  %v1936 = vmax.f32 %v1934, %v1935
  %v1937 = vrot.slane %v1936, 2
  %v1938 = vmax.f32 %v1936, %v1937
  %v1939 = vrot.slane %v1938, 1
  %v1940 = vmax.f32 %v1938, %v1939
  %v1941 = vrot.slane %v1788, 4
  %v1942 = vmax.f32 %v1788, %v1941
  %v1943 = vrot.slane %v1942, 2
  %v1944 = vmax.f32 %v1942, %v1943
  %v1945 = vrot.slane %v1944, 1
  %v1946 = vmax.f32 %v1944, %v1945
  %v1947 = vrot.slane %v1789, 4
  %v1948 = vmax.f32 %v1789, %v1947
  %v1949 = vrot.slane %v1948, 2
  %v1950 = vmax.f32 %v1948, %v1949
  %v1951 = vrot.slane %v1950, 1
  %v1952 = vmax.f32 %v1950, %v1951
  %v1953 = vsel %vm1857, %v1790, -inf
  %v1954 = vrot.slane %v1953, 4
  %v1955 = vmax.f32 %v1953, %v1954
  %v1956 = vrot.slane %v1955, 2
  %v1957 = vmax.f32 %v1955, %v1956
  %v1958 = vrot.slane %v1957, 1
  %v1959 = vmax.f32 %v1957, %v1958
  %v1960 = vrot.slane %v1791, 4
  %v1961 = vmax.f32 %v1791, %v1960
  %v1962 = vrot.slane %v1961, 2
  %v1963 = vmax.f32 %v1961, %v1962
  %v1964 = vrot.slane %v1963, 1
  %v1965 = vmax.f32 %v1963, %v1964
  %v1966 = vrot.slane %v1792, 4
  %v1967 = vmax.f32 %v1792, %v1966
  %v1968 = vrot.slane %v1967, 2
  %v1969 = vmax.f32 %v1967, %v1968
  %v1970 = vrot.slane %v1969, 1
  %v1971 = vmax.f32 %v1969, %v1970
  %v1972 = vsel %vm1857, %v1793, -inf
  %v1973 = vrot.slane %v1972, 4
  %v1974 = vmax.f32 %v1972, %v1973
  %v1975 = vrot.slane %v1974, 2
  %v1976 = vmax.f32 %v1974, %v1975
  %v1977 = vrot.slane %v1976, 1
  %v1978 = vmax.f32 %v1976, %v1977
  %v1979 = vrot.slane %v1794, 4
  %v1980 = vmax.f32 %v1794, %v1979
  %v1981 = vrot.slane %v1980, 2
  %v1982 = vmax.f32 %v1980, %v1981
  %v1983 = vrot.slane %v1982, 1
  %v1984 = vmax.f32 %v1982, %v1983
  %v1985 = vrot.slane %v1795, 4
  %v1986 = vmax.f32 %v1795, %v1985
  %v1987 = vrot.slane %v1986, 2
  %v1988 = vmax.f32 %v1986, %v1987
  %v1989 = vrot.slane %v1988, 1
  %v1990 = vmax.f32 %v1988, %v1989
  %v1991 = vsel %vm1857, %v1796, -inf
  %v1992 = vrot.slane %v1991, 4
  %v1993 = vmax.f32 %v1991, %v1992
  %v1994 = vrot.slane %v1993, 2
  %v1995 = vmax.f32 %v1993, %v1994
  %v1996 = vrot.slane %v1995, 1
  %v1997 = vmax.f32 %v1995, %v1996
  %v1998 = vrot.slane %v1797, 4
  %v1999 = vmax.f32 %v1797, %v1998
  %v2000 = vrot.slane %v1999, 2
  %v2001 = vmax.f32 %v1999, %v2000
  %v2002 = vrot.slane %v2001, 1
  %v2003 = vmax.f32 %v2001, %v2002
  %v2004 = vrot.slane %v1798, 4
  %v2005 = vmax.f32 %v1798, %v2004
  %v2006 = vrot.slane %v2005, 2
  %v2007 = vmax.f32 %v2005, %v2006
  %v2008 = vrot.slane %v2007, 1
  %v2009 = vmax.f32 %v2007, %v2008
  %v2010 = vsel %vm1857, %v1799, -inf
  %v2011 = vrot.slane %v2010, 4
  %v2012 = vmax.f32 %v2010, %v2011
  %v2013 = vrot.slane %v2012, 2
  %v2014 = vmax.f32 %v2012, %v2013
  %v2015 = vrot.slane %v2014, 1
  %v2016 = vmax.f32 %v2014, %v2015
  %v2017 = vrot.slane %v1800, 4
  %v2018 = vmax.f32 %v1800, %v2017
  %v2019 = vrot.slane %v2018, 2
  %v2020 = vmax.f32 %v2018, %v2019
  %v2021 = vrot.slane %v2020, 1
  %v2022 = vmax.f32 %v2020, %v2021
  %v2023 = vrot.slane %v1801, 4
  %v2024 = vmax.f32 %v1801, %v2023
  %v2025 = vrot.slane %v2024, 2
  %v2026 = vmax.f32 %v2024, %v2025
  %v2027 = vrot.slane %v2026, 1
  %v2028 = vmax.f32 %v2026, %v2027
  %v2029 = vsel %vm1857, %v1802, -inf
  %v2030 = vrot.slane %v2029, 4
  %v2031 = vmax.f32 %v2029, %v2030
  %v2032 = vrot.slane %v2031, 2
  %v2033 = vmax.f32 %v2031, %v2032
  %v2034 = vrot.slane %v2033, 1
  %v2035 = vmax.f32 %v2033, %v2034
  %v2036 = vrot.slane %v1803, 4
  %v2037 = vmax.f32 %v1803, %v2036
  %v2038 = vrot.slane %v2037, 2
  %v2039 = vmax.f32 %v2037, %v2038
  %v2040 = vrot.slane %v2039, 1
  %v2041 = vmax.f32 %v2039, %v2040
  %v2042 = vrot.slane %v1804, 4
  %v2043 = vmax.f32 %v1804, %v2042
  %v2044 = vrot.slane %v2043, 2
  %v2045 = vmax.f32 %v2043, %v2044
  %v2046 = vrot.slane %v2045, 1
  %v2047 = vmax.f32 %v2045, %v2046
  %v2048 = vsel %vm1857, %v1805, -inf
  %v2049 = vrot.slane %v2048, 4
  %v2050 = vmax.f32 %v2048, %v2049
  %v2051 = vrot.slane %v2050, 2
  %v2052 = vmax.f32 %v2050, %v2051
  %v2053 = vrot.slane %v2052, 1
  %v2054 = vmax.f32 %v2052, %v2053
  %v2055 = vrot.slane %v1806, 4
  %v2056 = vmax.f32 %v1806, %v2055
  %v2057 = vrot.slane %v2056, 2
  %v2058 = vmax.f32 %v2056, %v2057
  %v2059 = vrot.slane %v2058, 1
  %v2060 = vmax.f32 %v2058, %v2059
  %v2061 = vrot.slane %v1807, 4
  %v2062 = vmax.f32 %v1807, %v2061
  %v2063 = vrot.slane %v2062, 2
  %v2064 = vmax.f32 %v2062, %v2063
  %v2065 = vrot.slane %v2064, 1
  %v2066 = vmax.f32 %v2064, %v2065
  %v2067 = vsel %vm1857, %v1808, -inf
  %v2068 = vrot.slane %v2067, 4
  %v2069 = vmax.f32 %v2067, %v2068
  %v2070 = vrot.slane %v2069, 2
  %v2071 = vmax.f32 %v2069, %v2070
  %v2072 = vrot.slane %v2071, 1
  %v2073 = vmax.f32 %v2071, %v2072
  %v2074 = vrot.slane %v1809, 4
  %v2075 = vmax.f32 %v1809, %v2074
  %v2076 = vrot.slane %v2075, 2
  %v2077 = vmax.f32 %v2075, %v2076
  %v2078 = vrot.slane %v2077, 1
  %v2079 = vmax.f32 %v2077, %v2078
  %v2080 = vrot.slane %v1810, 4
  %v2081 = vmax.f32 %v1810, %v2080
  %v2082 = vrot.slane %v2081, 2
  %v2083 = vmax.f32 %v2081, %v2082
  %v2084 = vrot.slane %v2083, 1
  %v2085 = vmax.f32 %v2083, %v2084
  %v2086 = vsel %vm1857, %v1811, -inf
  %v2087 = vrot.slane %v2086, 4
  %v2088 = vmax.f32 %v2086, %v2087
  %v2089 = vrot.slane %v2088, 2
  %v2090 = vmax.f32 %v2088, %v2089
  %v2091 = vrot.slane %v2090, 1
  %v2092 = vmax.f32 %v2090, %v2091
  %v2093 = vrot.slane %v1812, 4
  %v2094 = vmax.f32 %v1812, %v2093
  %v2095 = vrot.slane %v2094, 2
  %v2096 = vmax.f32 %v2094, %v2095
  %v2097 = vrot.slane %v2096, 1
  %v2098 = vmax.f32 %v2096, %v2097
  %v2099 = vrot.slane %v1813, 4
  %v2100 = vmax.f32 %v1813, %v2099
  %v2101 = vrot.slane %v2100, 2
  %v2102 = vmax.f32 %v2100, %v2101
  %v2103 = vrot.slane %v2102, 1
  %v2104 = vmax.f32 %v2102, %v2103
  %v2105 = vsel %vm1857, %v1814, -inf
  %v2106 = vrot.slane %v2105, 4
  %v2107 = vmax.f32 %v2105, %v2106
  %v2108 = vrot.slane %v2107, 2
  %v2109 = vmax.f32 %v2107, %v2108
  %v2110 = vrot.slane %v2109, 1
  %v2111 = vmax.f32 %v2109, %v2110
  %v2112 = vrot.slane %v1815, 4
  %v2113 = vmax.f32 %v1815, %v2112
  %v2114 = vrot.slane %v2113, 2
  %v2115 = vmax.f32 %v2113, %v2114
  %v2116 = vrot.slane %v2115, 1
  %v2117 = vmax.f32 %v2115, %v2116
  %v2118 = vrot.slane %v1816, 4
  %v2119 = vmax.f32 %v1816, %v2118
  %v2120 = vrot.slane %v2119, 2
  %v2121 = vmax.f32 %v2119, %v2120
  %v2122 = vrot.slane %v2121, 1
  %v2123 = vmax.f32 %v2121, %v2122
  %v2124 = vsel %vm1857, %v1817, -inf
  %v2125 = vrot.slane %v2124, 4
  %v2126 = vmax.f32 %v2124, %v2125
  %v2127 = vrot.slane %v2126, 2
  %v2128 = vmax.f32 %v2126, %v2127
  %v2129 = vrot.slane %v2128, 1
  %v2130 = vmax.f32 %v2128, %v2129
  %v2131 = vrot.slane %v1818, 4
  %v2132 = vmax.f32 %v1818, %v2131
  %v2133 = vrot.slane %v2132, 2
  %v2134 = vmax.f32 %v2132, %v2133
  %v2135 = vrot.slane %v2134, 1
  %v2136 = vmax.f32 %v2134, %v2135
  %v2137 = vrot.slane %v1819, 4
  %v2138 = vmax.f32 %v1819, %v2137
  %v2139 = vrot.slane %v2138, 2
  %v2140 = vmax.f32 %v2138, %v2139
  %v2141 = vrot.slane %v2140, 1
  %v2142 = vmax.f32 %v2140, %v2141
  %v2143 = vsel %vm1857, %v1820, -inf
  %v2144 = vrot.slane %v2143, 4
  %v2145 = vmax.f32 %v2143, %v2144
  %v2146 = vrot.slane %v2145, 2
  %v2147 = vmax.f32 %v2145, %v2146
  %v2148 = vrot.slane %v2147, 1
  %v2149 = vmax.f32 %v2147, %v2148
  %v2150 = vrot.slane %v1821, 4
  %v2151 = vmax.f32 %v1821, %v2150
  %v2152 = vrot.slane %v2151, 2
  %v2153 = vmax.f32 %v2151, %v2152
  %v2154 = vrot.slane %v2153, 1
  %v2155 = vmax.f32 %v2153, %v2154
  %v2156 = vrot.slane %v1822, 4
  %v2157 = vmax.f32 %v1822, %v2156
  %v2158 = vrot.slane %v2157, 2
  %v2159 = vmax.f32 %v2157, %v2158
  %v2160 = vrot.slane %v2159, 1
  %v2161 = vmax.f32 %v2159, %v2160
  %v2162 = vsel %vm1857, %v1823, -inf
  %v2163 = vrot.slane %v2162, 4
  %v2164 = vmax.f32 %v2162, %v2163
  %v2165 = vrot.slane %v2164, 2
  %v2166 = vmax.f32 %v2164, %v2165
  %v2167 = vrot.slane %v2166, 1
  %v2168 = vmax.f32 %v2166, %v2167
  %v2169 = vrot.slane %v1824, 4
  %v2170 = vmax.f32 %v1824, %v2169
  %v2171 = vrot.slane %v2170, 2
  %v2172 = vmax.f32 %v2170, %v2171
  %v2173 = vrot.slane %v2172, 1
  %v2174 = vmax.f32 %v2172, %v2173
  %v2175 = vrot.slane %v1825, 4
  %v2176 = vmax.f32 %v1825, %v2175
  %v2177 = vrot.slane %v2176, 2
  %v2178 = vmax.f32 %v2176, %v2177
  %v2179 = vrot.slane %v2178, 1
  %v2180 = vmax.f32 %v2178, %v2179
  %v2181 = vsel %vm1857, %v1826, -inf
  %v2182 = vrot.slane %v2181, 4
  %v2183 = vmax.f32 %v2181, %v2182
  %v2184 = vrot.slane %v2183, 2
  %v2185 = vmax.f32 %v2183, %v2184
  %v2186 = vrot.slane %v2185, 1
  %v2187 = vmax.f32 %v2185, %v2186
  %v2188 = vrot.slane %v1827, 4
  %v2189 = vmax.f32 %v1827, %v2188
  %v2190 = vrot.slane %v2189, 2
  %v2191 = vmax.f32 %v2189, %v2190
  %v2192 = vrot.slane %v2191, 1
  %v2193 = vmax.f32 %v2191, %v2192
  %v2194 = vrot.slane %v1828, 4
  %v2195 = vmax.f32 %v1828, %v2194
  %v2196 = vrot.slane %v2195, 2
  %v2197 = vmax.f32 %v2195, %v2196
  %v2198 = vrot.slane %v2197, 1
  %v2199 = vmax.f32 %v2197, %v2198
  %v2200 = vsel %vm1857, %v1829, -inf
  %v2201 = vrot.slane %v2200, 4
  %v2202 = vmax.f32 %v2200, %v2201
  %v2203 = vrot.slane %v2202, 2
  %v2204 = vmax.f32 %v2202, %v2203
  %v2205 = vrot.slane %v2204, 1
  %v2206 = vmax.f32 %v2204, %v2205
  %v2207 = vrot.slane %v1830, 4
  %v2208 = vmax.f32 %v1830, %v2207
  %v2209 = vrot.slane %v2208, 2
  %v2210 = vmax.f32 %v2208, %v2209
  %v2211 = vrot.slane %v2210, 1
  %v2212 = vmax.f32 %v2210, %v2211
  %v2213 = vrot.slane %v1831, 4
  %v2214 = vmax.f32 %v1831, %v2213
  %v2215 = vrot.slane %v2214, 2
  %v2216 = vmax.f32 %v2214, %v2215
  %v2217 = vrot.slane %v2216, 1
  %v2218 = vmax.f32 %v2216, %v2217
  %v2219 = vsel %vm1857, %v1832, -inf
  %v2220 = vrot.slane %v2219, 4
  %v2221 = vmax.f32 %v2219, %v2220
  %v2222 = vrot.slane %v2221, 2
  %v2223 = vmax.f32 %v2221, %v2222
  %v2224 = vrot.slane %v2223, 1
  %v2225 = vmax.f32 %v2223, %v2224
  %v2226 = vrot.slane %v1833, 4
  %v2227 = vmax.f32 %v1833, %v2226
  %v2228 = vrot.slane %v2227, 2
  %v2229 = vmax.f32 %v2227, %v2228
  %v2230 = vrot.slane %v2229, 1
  %v2231 = vmax.f32 %v2229, %v2230
  %v2232 = vrot.slane %v1834, 4
  %v2233 = vmax.f32 %v1834, %v2232
  %v2234 = vrot.slane %v2233, 2
  %v2235 = vmax.f32 %v2233, %v2234
  %v2236 = vrot.slane %v2235, 1
  %v2237 = vmax.f32 %v2235, %v2236
  %v2238 = vsel %vm1857, %v1835, -inf
  %v2239 = vrot.slane %v2238, 4
  %v2240 = vmax.f32 %v2238, %v2239
  %v2241 = vrot.slane %v2240, 2
  %v2242 = vmax.f32 %v2240, %v2241
  %v2243 = vrot.slane %v2242, 1
  %v2244 = vmax.f32 %v2242, %v2243
  %v2245 = vrot.slane %v1836, 4
  %v2246 = vmax.f32 %v1836, %v2245
  %v2247 = vrot.slane %v2246, 2
  %v2248 = vmax.f32 %v2246, %v2247
  %v2249 = vrot.slane %v2248, 1
  %v2250 = vmax.f32 %v2248, %v2249
  %v2251 = vrot.slane %v1837, 4
  %v2252 = vmax.f32 %v1837, %v2251
  %v2253 = vrot.slane %v2252, 2
  %v2254 = vmax.f32 %v2252, %v2253
  %v2255 = vrot.slane %v2254, 1
  %v2256 = vmax.f32 %v2254, %v2255
  %v2257 = vsel %vm1857, %v1838, -inf
  %v2258 = vrot.slane %v2257, 4
  %v2259 = vmax.f32 %v2257, %v2258
  %v2260 = vrot.slane %v2259, 2
  %v2261 = vmax.f32 %v2259, %v2260
  %v2262 = vrot.slane %v2261, 1
  %v2263 = vmax.f32 %v2261, %v2262
  %v2264 = vrot.slane %v1839, 4
  %v2265 = vmax.f32 %v1839, %v2264
  %v2266 = vrot.slane %v2265, 2
  %v2267 = vmax.f32 %v2265, %v2266
  %v2268 = vrot.slane %v2267, 1
  %v2269 = vmax.f32 %v2267, %v2268
  %v2270 = vrot.slane %v1840, 4
  %v2271 = vmax.f32 %v1840, %v2270
  %v2272 = vrot.slane %v2271, 2
  %v2273 = vmax.f32 %v2271, %v2272
  %v2274 = vrot.slane %v2273, 1
  %v2275 = vmax.f32 %v2273, %v2274
  %v2276 = vsel %vm1857, %v1841, -inf
  %v2277 = vrot.slane %v2276, 4
  %v2278 = vmax.f32 %v2276, %v2277
  %v2279 = vrot.slane %v2278, 2
  %v2280 = vmax.f32 %v2278, %v2279
  %v2281 = vrot.slane %v2280, 1
  %v2282 = vmax.f32 %v2280, %v2281
  %v2283 = vrot.slane %v1842, 4
  %v2284 = vmax.f32 %v1842, %v2283
  %v2285 = vrot.slane %v2284, 2
  %v2286 = vmax.f32 %v2284, %v2285
  %v2287 = vrot.slane %v2286, 1
  %v2288 = vmax.f32 %v2286, %v2287
  %v2289 = vrot.slane %v1843, 4
  %v2290 = vmax.f32 %v1843, %v2289
  %v2291 = vrot.slane %v2290, 2
  %v2292 = vmax.f32 %v2290, %v2291
  %v2293 = vrot.slane %v2292, 1
  %v2294 = vmax.f32 %v2292, %v2293
  %v2295 = vsel %vm1857, %v1844, -inf
  %v2296 = vrot.slane %v2295, 4
  %v2297 = vmax.f32 %v2295, %v2296
  %v2298 = vrot.slane %v2297, 2
  %v2299 = vmax.f32 %v2297, %v2298
  %v2300 = vrot.slane %v2299, 1
  %v2301 = vmax.f32 %v2299, %v2300
  %v2302 = vsub.f32 %v1773, %v1850
  %v2303 = vsub.f32 %v1774, %v1856
  %v2304 = vsub.f32 %v1775, %v1864
  %v2305 = vsub.f32 %v1776, %v1870
  %v2306 = vsub.f32 %v1777, %v1876
  %v2307 = vsub.f32 %v1778, %v1883
  %v2308 = vsub.f32 %v1779, %v1889
  %v2309 = vsub.f32 %v1780, %v1895
  %v2310 = vsub.f32 %v1781, %v1902
  %v2311 = vsub.f32 %v1782, %v1908
  %v2312 = vsub.f32 %v1783, %v1914
  %v2313 = vsub.f32 %v1784, %v1921
  %v2314 = vsub.f32 %v1785, %v1927
  %v2315 = vsub.f32 %v1786, %v1933
  %v2316 = vsub.f32 %v1787, %v1940
  %v2317 = vsub.f32 %v1788, %v1946
  %v2318 = vsub.f32 %v1789, %v1952
  %v2319 = vsub.f32 %v1790, %v1959
  %v2320 = vsub.f32 %v1791, %v1965
  %v2321 = vsub.f32 %v1792, %v1971
  %v2322 = vsub.f32 %v1793, %v1978
  %v2323 = vsub.f32 %v1794, %v1984
  %v2324 = vsub.f32 %v1795, %v1990
  %v2325 = vsub.f32 %v1796, %v1997
  %v2326 = vsub.f32 %v1797, %v2003
  %v2327 = vsub.f32 %v1798, %v2009
  %v2328 = vsub.f32 %v1799, %v2016
  %v2329 = vsub.f32 %v1800, %v2022
  %v2330 = vsub.f32 %v1801, %v2028
  %v2331 = vsub.f32 %v1802, %v2035
  %v2332 = vsub.f32 %v1803, %v2041
  %v2333 = vsub.f32 %v1804, %v2047
  %v2334 = vsub.f32 %v1805, %v2054
  %v2335 = vsub.f32 %v1806, %v2060
  %v2336 = vsub.f32 %v1807, %v2066
  %v2337 = vsub.f32 %v1808, %v2073
  %v2338 = vsub.f32 %v1809, %v2079
  %v2339 = vsub.f32 %v1810, %v2085
  %v2340 = vsub.f32 %v1811, %v2092
  %v2341 = vsub.f32 %v1812, %v2098
  %v2342 = vsub.f32 %v1813, %v2104
  %v2343 = vsub.f32 %v1814, %v2111
  %v2344 = vsub.f32 %v1815, %v2117
  %v2345 = vsub.f32 %v1816, %v2123
  %v2346 = vsub.f32 %v1817, %v2130
  %v2347 = vsub.f32 %v1818, %v2136
  %v2348 = vsub.f32 %v1819, %v2142
  %v2349 = vsub.f32 %v1820, %v2149
  %v2350 = vsub.f32 %v1821, %v2155
  %v2351 = vsub.f32 %v1822, %v2161
  %v2352 = vsub.f32 %v1823, %v2168
  %v2353 = vsub.f32 %v1824, %v2174
  %v2354 = vsub.f32 %v1825, %v2180
  %v2355 = vsub.f32 %v1826, %v2187
  %v2356 = vsub.f32 %v1827, %v2193
  %v2357 = vsub.f32 %v1828, %v2199
  %v2358 = vsub.f32 %v1829, %v2206
  %v2359 = vsub.f32 %v1830, %v2212
  %v2360 = vsub.f32 %v1831, %v2218
  %v2361 = vsub.f32 %v1832, %v2225
  %v2362 = vsub.f32 %v1833, %v2231
  %v2363 = vsub.f32 %v1834, %v2237
  %v2364 = vsub.f32 %v1835, %v2244
  %v2365 = vsub.f32 %v1836, %v2250
  %v2366 = vsub.f32 %v1837, %v2256
  %v2367 = vsub.f32 %v1838, %v2263
  %v2368 = vsub.f32 %v1839, %v2269
  %v2369 = vsub.f32 %v1840, %v2275
  %v2370 = vsub.f32 %v1841, %v2282
  %v2371 = vsub.f32 %v1842, %v2288
  %v2372 = vsub.f32 %v1843, %v2294
  %v2373 = vsub.f32 %v1844, %v2301
  %v2374 = vmul.f32 %v2302, 1.442695
  %v2375 = vpow.pop %v2374
  %v2376 = vmul.f32 %v2303, 1.442695
  %v2377 = vpow.pop %v2376
  %v2378 = vmul.f32 %v2304, 1.442695
  %v2379 = vpow.pop %v2378
  %v2380 = vmul.f32 %v2305, 1.442695
  %v2381 = vpow.pop %v2380
  %v2382 = vmul.f32 %v2306, 1.442695
  %v2383 = vpow.pop %v2382
  %v2384 = vmul.f32 %v2307, 1.442695
  %v2385 = vpow.pop %v2384
  %v2386 = vmul.f32 %v2308, 1.442695
  %v2387 = vpow.pop %v2386
  %v2388 = vmul.f32 %v2309, 1.442695
  %v2389 = vpow.pop %v2388
  %v2390 = vmul.f32 %v2310, 1.442695
  %v2391 = vpow.pop %v2390
  %v2392 = vmul.f32 %v2311, 1.442695
  %v2393 = vpow.pop %v2392
  %v2394 = vmul.f32 %v2312, 1.442695
  %v2395 = vpow.pop %v2394
  %v2396 = vmul.f32 %v2313, 1.442695
  %v2397 = vpow.pop %v2396
  %v2398 = vmul.f32 %v2314, 1.442695
  %v2399 = vpow.pop %v2398
  %v2400 = vmul.f32 %v2315, 1.442695
  %v2401 = vpow.pop %v2400
  %v2402 = vmul.f32 %v2316, 1.442695
  %v2403 = vpow.pop %v2402
  %v2404 = vmul.f32 %v2317, 1.442695
  %v2405 = vpow.pop %v2404
  %v2406 = vmul.f32 %v2318, 1.442695
  %v2407 = vpow.pop %v2406
  %v2408 = vmul.f32 %v2319, 1.442695
  %v2409 = vpow.pop %v2408
  %v2410 = vmul.f32 %v2320, 1.442695
  %v2411 = vpow.pop %v2410
  %v2412 = vmul.f32 %v2321, 1.442695
  %v2413 = vpow.pop %v2412
  %v2414 = vmul.f32 %v2322, 1.442695
  %v2415 = vpow.pop %v2414
  %v2416 = vmul.f32 %v2323, 1.442695
  %v2417 = vpow.pop %v2416
  %v2418 = vmul.f32 %v2324, 1.442695
  %v2419 = vpow.pop %v2418
  %v2420 = vmul.f32 %v2325, 1.442695
  %v2421 = vpow.pop %v2420
  %v2422 = vmul.f32 %v2326, 1.442695
  %v2423 = vpow.pop %v2422
  %v2424 = vmul.f32 %v2327, 1.442695
  %v2425 = vpow.pop %v2424
  %v2426 = vmul.f32 %v2328, 1.442695
  %v2427 = vpow.pop %v2426
  %v2428 = vmul.f32 %v2329, 1.442695
  %v2429 = vpow.pop %v2428
  %v2430 = vmul.f32 %v2330, 1.442695
  %v2431 = vpow.pop %v2430
  %v2432 = vmul.f32 %v2331, 1.442695
  %v2433 = vpow.pop %v2432
  %v2434 = vmul.f32 %v2332, 1.442695
  %v2435 = vpow.pop %v2434
  %v2436 = vmul.f32 %v2333, 1.442695
  %v2437 = vpow.pop %v2436
  %v2438 = vmul.f32 %v2334, 1.442695
  %v2439 = vpow.pop %v2438
  %v2440 = vmul.f32 %v2335, 1.442695
  %v2441 = vpow.pop %v2440
  %v2442 = vmul.f32 %v2336, 1.442695
  %v2443 = vpow.pop %v2442
  %v2444 = vmul.f32 %v2337, 1.442695
  %v2445 = vpow.pop %v2444
  %v2446 = vmul.f32 %v2338, 1.442695
  %v2447 = vpow.pop %v2446
  %v2448 = vmul.f32 %v2339, 1.442695
  %v2449 = vpow.pop %v2448
  %v2450 = vmul.f32 %v2340, 1.442695
  %v2451 = vpow.pop %v2450
  %v2452 = vmul.f32 %v2341, 1.442695
  %v2453 = vpow.pop %v2452
  %v2454 = vmul.f32 %v2342, 1.442695
  %v2455 = vpow.pop %v2454
  %v2456 = vmul.f32 %v2343, 1.442695
  %v2457 = vpow.pop %v2456
  %v2458 = vmul.f32 %v2344, 1.442695
  %v2459 = vpow.pop %v2458
  %v2460 = vmul.f32 %v2345, 1.442695
  %v2461 = vpow.pop %v2460
  %v2462 = vmul.f32 %v2346, 1.442695
  %v2463 = vpow.pop %v2462
  %v2464 = vmul.f32 %v2347, 1.442695
  %v2465 = vpow.pop %v2464
  %v2466 = vmul.f32 %v2348, 1.442695
  %v2467 = vpow.pop %v2466
  %v2468 = vmul.f32 %v2349, 1.442695
  %v2469 = vpow.pop %v2468
  %v2470 = vmul.f32 %v2350, 1.442695
  %v2471 = vpow.pop %v2470
  %v2472 = vmul.f32 %v2351, 1.442695
  %v2473 = vpow.pop %v2472
  %v2474 = vmul.f32 %v2352, 1.442695
  %v2475 = vpow.pop %v2474
  %v2476 = vmul.f32 %v2353, 1.442695
  %v2477 = vpow.pop %v2476
  %v2478 = vmul.f32 %v2354, 1.442695
  %v2479 = vpow.pop %v2478
  %v2480 = vmul.f32 %v2355, 1.442695
  %v2481 = vpow.pop %v2480
  %v2482 = vmul.f32 %v2356, 1.442695
  %v2483 = vpow.pop %v2482
  %v2484 = vmul.f32 %v2357, 1.442695
  %v2485 = vpow.pop %v2484
  %v2486 = vmul.f32 %v2358, 1.442695
  %v2487 = vpow.pop %v2486
  %v2488 = vmul.f32 %v2359, 1.442695
  %v2489 = vpow.pop %v2488
  %v2490 = vmul.f32 %v2360, 1.442695
  %v2491 = vpow.pop %v2490
  %v2492 = vmul.f32 %v2361, 1.442695
  %v2493 = vpow.pop %v2492
  %v2494 = vmul.f32 %v2362, 1.442695
  %v2495 = vpow.pop %v2494
  %v2496 = vmul.f32 %v2363, 1.442695
  %v2497 = vpow.pop %v2496
  %v2498 = vmul.f32 %v2364, 1.442695
  %v2499 = vpow.pop %v2498
  %v2500 = vmul.f32 %v2365, 1.442695
  %v2501 = vpow.pop %v2500
  %v2502 = vmul.f32 %v2366, 1.442695
  %v2503 = vpow.pop %v2502
  %v2504 = vmul.f32 %v2367, 1.442695
  %v2505 = vpow.pop %v2504
  %v2506 = vmul.f32 %v2368, 1.442695
  %v2507 = vpow.pop %v2506
  %v2508 = vmul.f32 %v2369, 1.442695
  %v2509 = vpow.pop %v2508
  %v2510 = vmul.f32 %v2370, 1.442695
  %v2511 = vpow.pop %v2510
  %v2512 = vmul.f32 %v2371, 1.442695
  %v2513 = vpow.pop %v2512
  %v2514 = vmul.f32 %v2372, 1.442695
  %v2515 = vpow.pop %v2514
  %v2516 = vmul.f32 %v2373, 1.442695
  %v2517 = vpow.pop %v2516
  %v2518 = vrot.slane %v2375, 4
  %v2519 = vadd.f32 %v2375, %v2518
  %v2520 = vrot.slane %v2519, 2
  %v2521 = vadd.f32 %v2519, %v2520
  %v2522 = vrot.slane %v2521, 1
  %v2523 = vadd.f32 %v2521, %v2522
  %v2524 = vrot.slane %v2377, 4
  %v2525 = vadd.f32 %v2377, %v2524
  %v2526 = vrot.slane %v2525, 2
  %v2527 = vadd.f32 %v2525, %v2526
  %v2528 = vrot.slane %v2527, 1
  %v2529 = vadd.f32 %v2527, %v2528
  %v2530 = vsel %vm1857, %v2379, 0.0
  %v2531 = vrot.slane %v2530, 4
  %v2532 = vadd.f32 %v2530, %v2531
  %v2533 = vrot.slane %v2532, 2
  %v2534 = vadd.f32 %v2532, %v2533
  %v2535 = vrot.slane %v2534, 1
  %v2536 = vadd.f32 %v2534, %v2535
  %v2537 = vrot.slane %v2381, 4
  %v2538 = vadd.f32 %v2381, %v2537
  %v2539 = vrot.slane %v2538, 2
  %v2540 = vadd.f32 %v2538, %v2539
  %v2541 = vrot.slane %v2540, 1
  %v2542 = vadd.f32 %v2540, %v2541
  %v2543 = vrot.slane %v2383, 4
  %v2544 = vadd.f32 %v2383, %v2543
  %v2545 = vrot.slane %v2544, 2
  %v2546 = vadd.f32 %v2544, %v2545
  %v2547 = vrot.slane %v2546, 1
  %v2548 = vadd.f32 %v2546, %v2547
  %v2549 = vsel %vm1857, %v2385, 0.0
  %v2550 = vrot.slane %v2549, 4
  %v2551 = vadd.f32 %v2549, %v2550
  %v2552 = vrot.slane %v2551, 2
  %v2553 = vadd.f32 %v2551, %v2552
  %v2554 = vrot.slane %v2553, 1
  %v2555 = vadd.f32 %v2553, %v2554
  %v2556 = vrot.slane %v2387, 4
  %v2557 = vadd.f32 %v2387, %v2556
  %v2558 = vrot.slane %v2557, 2
  %v2559 = vadd.f32 %v2557, %v2558
  %v2560 = vrot.slane %v2559, 1
  %v2561 = vadd.f32 %v2559, %v2560
  %v2562 = vrot.slane %v2389, 4
  %v2563 = vadd.f32 %v2389, %v2562
  %v2564 = vrot.slane %v2563, 2
  %v2565 = vadd.f32 %v2563, %v2564
  %v2566 = vrot.slane %v2565, 1
  %v2567 = vadd.f32 %v2565, %v2566
  %v2568 = vsel %vm1857, %v2391, 0.0
  %v2569 = vrot.slane %v2568, 4
  %v2570 = vadd.f32 %v2568, %v2569
  %v2571 = vrot.slane %v2570, 2
  %v2572 = vadd.f32 %v2570, %v2571
  %v2573 = vrot.slane %v2572, 1
  %v2574 = vadd.f32 %v2572, %v2573
  %v2575 = vrot.slane %v2393, 4
  %v2576 = vadd.f32 %v2393, %v2575
  %v2577 = vrot.slane %v2576, 2
  %v2578 = vadd.f32 %v2576, %v2577
  %v2579 = vrot.slane %v2578, 1
  %v2580 = vadd.f32 %v2578, %v2579
  %v2581 = vrot.slane %v2395, 4
  %v2582 = vadd.f32 %v2395, %v2581
  %v2583 = vrot.slane %v2582, 2
  %v2584 = vadd.f32 %v2582, %v2583
  %v2585 = vrot.slane %v2584, 1
  %v2586 = vadd.f32 %v2584, %v2585
  %v2587 = vsel %vm1857, %v2397, 0.0
  %v2588 = vrot.slane %v2587, 4
  %v2589 = vadd.f32 %v2587, %v2588
  %v2590 = vrot.slane %v2589, 2
  %v2591 = vadd.f32 %v2589, %v2590
  %v2592 = vrot.slane %v2591, 1
  %v2593 = vadd.f32 %v2591, %v2592
  %v2594 = vrot.slane %v2399, 4
  %v2595 = vadd.f32 %v2399, %v2594
  %v2596 = vrot.slane %v2595, 2
  %v2597 = vadd.f32 %v2595, %v2596
  %v2598 = vrot.slane %v2597, 1
  %v2599 = vadd.f32 %v2597, %v2598
  %v2600 = vrot.slane %v2401, 4
  %v2601 = vadd.f32 %v2401, %v2600
  %v2602 = vrot.slane %v2601, 2
  %v2603 = vadd.f32 %v2601, %v2602
  %v2604 = vrot.slane %v2603, 1
  %v2605 = vadd.f32 %v2603, %v2604
  %v2606 = vsel %vm1857, %v2403, 0.0
  %v2607 = vrot.slane %v2606, 4
  %v2608 = vadd.f32 %v2606, %v2607
  %v2609 = vrot.slane %v2608, 2
  %v2610 = vadd.f32 %v2608, %v2609
  %v2611 = vrot.slane %v2610, 1
  %v2612 = vadd.f32 %v2610, %v2611
  %v2613 = vrot.slane %v2405, 4
  %v2614 = vadd.f32 %v2405, %v2613
  %v2615 = vrot.slane %v2614, 2
  %v2616 = vadd.f32 %v2614, %v2615
  %v2617 = vrot.slane %v2616, 1
  %v2618 = vadd.f32 %v2616, %v2617
  %v2619 = vrot.slane %v2407, 4
  %v2620 = vadd.f32 %v2407, %v2619
  %v2621 = vrot.slane %v2620, 2
  %v2622 = vadd.f32 %v2620, %v2621
  %v2623 = vrot.slane %v2622, 1
  %v2624 = vadd.f32 %v2622, %v2623
  %v2625 = vsel %vm1857, %v2409, 0.0
  %v2626 = vrot.slane %v2625, 4
  %v2627 = vadd.f32 %v2625, %v2626
  %v2628 = vrot.slane %v2627, 2
  %v2629 = vadd.f32 %v2627, %v2628
  %v2630 = vrot.slane %v2629, 1
  %v2631 = vadd.f32 %v2629, %v2630
  %v2632 = vrot.slane %v2411, 4
  %v2633 = vadd.f32 %v2411, %v2632
  %v2634 = vrot.slane %v2633, 2
  %v2635 = vadd.f32 %v2633, %v2634
  %v2636 = vrot.slane %v2635, 1
  %v2637 = vadd.f32 %v2635, %v2636
  %v2638 = vrot.slane %v2413, 4
  %v2639 = vadd.f32 %v2413, %v2638
  %v2640 = vrot.slane %v2639, 2
  %v2641 = vadd.f32 %v2639, %v2640
  %v2642 = vrot.slane %v2641, 1
  %v2643 = vadd.f32 %v2641, %v2642
  %v2644 = vsel %vm1857, %v2415, 0.0
  %v2645 = vrot.slane %v2644, 4
  %v2646 = vadd.f32 %v2644, %v2645
  %v2647 = vrot.slane %v2646, 2
  %v2648 = vadd.f32 %v2646, %v2647
  %v2649 = vrot.slane %v2648, 1
  %v2650 = vadd.f32 %v2648, %v2649
  %v2651 = vrot.slane %v2417, 4
  %v2652 = vadd.f32 %v2417, %v2651
  %v2653 = vrot.slane %v2652, 2
  %v2654 = vadd.f32 %v2652, %v2653
  %v2655 = vrot.slane %v2654, 1
  %v2656 = vadd.f32 %v2654, %v2655
  %v2657 = vrot.slane %v2419, 4
  %v2658 = vadd.f32 %v2419, %v2657
  %v2659 = vrot.slane %v2658, 2
  %v2660 = vadd.f32 %v2658, %v2659
  %v2661 = vrot.slane %v2660, 1
  %v2662 = vadd.f32 %v2660, %v2661
  %v2663 = vsel %vm1857, %v2421, 0.0
  %v2664 = vrot.slane %v2663, 4
  %v2665 = vadd.f32 %v2663, %v2664
  %v2666 = vrot.slane %v2665, 2
  %v2667 = vadd.f32 %v2665, %v2666
  %v2668 = vrot.slane %v2667, 1
  %v2669 = vadd.f32 %v2667, %v2668
  %v2670 = vrot.slane %v2423, 4
  %v2671 = vadd.f32 %v2423, %v2670
  %v2672 = vrot.slane %v2671, 2
  %v2673 = vadd.f32 %v2671, %v2672
  %v2674 = vrot.slane %v2673, 1
  %v2675 = vadd.f32 %v2673, %v2674
  %v2676 = vrot.slane %v2425, 4
  %v2677 = vadd.f32 %v2425, %v2676
  %v2678 = vrot.slane %v2677, 2
  %v2679 = vadd.f32 %v2677, %v2678
  %v2680 = vrot.slane %v2679, 1
  %v2681 = vadd.f32 %v2679, %v2680
  %v2682 = vsel %vm1857, %v2427, 0.0
  %v2683 = vrot.slane %v2682, 4
  %v2684 = vadd.f32 %v2682, %v2683
  %v2685 = vrot.slane %v2684, 2
  %v2686 = vadd.f32 %v2684, %v2685
  %v2687 = vrot.slane %v2686, 1
  %v2688 = vadd.f32 %v2686, %v2687
  %v2689 = vrot.slane %v2429, 4
  %v2690 = vadd.f32 %v2429, %v2689
  %v2691 = vrot.slane %v2690, 2
  %v2692 = vadd.f32 %v2690, %v2691
  %v2693 = vrot.slane %v2692, 1
  %v2694 = vadd.f32 %v2692, %v2693
  %v2695 = vrot.slane %v2431, 4
  %v2696 = vadd.f32 %v2431, %v2695
  %v2697 = vrot.slane %v2696, 2
  %v2698 = vadd.f32 %v2696, %v2697
  %v2699 = vrot.slane %v2698, 1
  %v2700 = vadd.f32 %v2698, %v2699
  %v2701 = vsel %vm1857, %v2433, 0.0
  %v2702 = vrot.slane %v2701, 4
  %v2703 = vadd.f32 %v2701, %v2702
  %v2704 = vrot.slane %v2703, 2
  %v2705 = vadd.f32 %v2703, %v2704
  %v2706 = vrot.slane %v2705, 1
  %v2707 = vadd.f32 %v2705, %v2706
  %v2708 = vrot.slane %v2435, 4
  %v2709 = vadd.f32 %v2435, %v2708
  %v2710 = vrot.slane %v2709, 2
  %v2711 = vadd.f32 %v2709, %v2710
  %v2712 = vrot.slane %v2711, 1
  %v2713 = vadd.f32 %v2711, %v2712
  %v2714 = vrot.slane %v2437, 4
  %v2715 = vadd.f32 %v2437, %v2714
  %v2716 = vrot.slane %v2715, 2
  %v2717 = vadd.f32 %v2715, %v2716
  %v2718 = vrot.slane %v2717, 1
  %v2719 = vadd.f32 %v2717, %v2718
  %v2720 = vsel %vm1857, %v2439, 0.0
  %v2721 = vrot.slane %v2720, 4
  %v2722 = vadd.f32 %v2720, %v2721
  %v2723 = vrot.slane %v2722, 2
  %v2724 = vadd.f32 %v2722, %v2723
  %v2725 = vrot.slane %v2724, 1
  %v2726 = vadd.f32 %v2724, %v2725
  %v2727 = vrot.slane %v2441, 4
  %v2728 = vadd.f32 %v2441, %v2727
  %v2729 = vrot.slane %v2728, 2
  %v2730 = vadd.f32 %v2728, %v2729
  %v2731 = vrot.slane %v2730, 1
  %v2732 = vadd.f32 %v2730, %v2731
  %v2733 = vrot.slane %v2443, 4
  %v2734 = vadd.f32 %v2443, %v2733
  %v2735 = vrot.slane %v2734, 2
  %v2736 = vadd.f32 %v2734, %v2735
  %v2737 = vrot.slane %v2736, 1
  %v2738 = vadd.f32 %v2736, %v2737
  %v2739 = vsel %vm1857, %v2445, 0.0
  %v2740 = vrot.slane %v2739, 4
  %v2741 = vadd.f32 %v2739, %v2740
  %v2742 = vrot.slane %v2741, 2
  %v2743 = vadd.f32 %v2741, %v2742
  %v2744 = vrot.slane %v2743, 1
  %v2745 = vadd.f32 %v2743, %v2744
  %v2746 = vrot.slane %v2447, 4
  %v2747 = vadd.f32 %v2447, %v2746
  %v2748 = vrot.slane %v2747, 2
  %v2749 = vadd.f32 %v2747, %v2748
  %v2750 = vrot.slane %v2749, 1
  %v2751 = vadd.f32 %v2749, %v2750
  %v2752 = vrot.slane %v2449, 4
  %v2753 = vadd.f32 %v2449, %v2752
  %v2754 = vrot.slane %v2753, 2
  %v2755 = vadd.f32 %v2753, %v2754
  %v2756 = vrot.slane %v2755, 1
  %v2757 = vadd.f32 %v2755, %v2756
  %v2758 = vsel %vm1857, %v2451, 0.0
  %v2759 = vrot.slane %v2758, 4
  %v2760 = vadd.f32 %v2758, %v2759
  %v2761 = vrot.slane %v2760, 2
  %v2762 = vadd.f32 %v2760, %v2761
  %v2763 = vrot.slane %v2762, 1
  %v2764 = vadd.f32 %v2762, %v2763
  %v2765 = vrot.slane %v2453, 4
  %v2766 = vadd.f32 %v2453, %v2765
  %v2767 = vrot.slane %v2766, 2
  %v2768 = vadd.f32 %v2766, %v2767
  %v2769 = vrot.slane %v2768, 1
  %v2770 = vadd.f32 %v2768, %v2769
  %v2771 = vrot.slane %v2455, 4
  %v2772 = vadd.f32 %v2455, %v2771
  %v2773 = vrot.slane %v2772, 2
  %v2774 = vadd.f32 %v2772, %v2773
  %v2775 = vrot.slane %v2774, 1
  %v2776 = vadd.f32 %v2774, %v2775
  %v2777 = vsel %vm1857, %v2457, 0.0
  %v2778 = vrot.slane %v2777, 4
  %v2779 = vadd.f32 %v2777, %v2778
  %v2780 = vrot.slane %v2779, 2
  %v2781 = vadd.f32 %v2779, %v2780
  %v2782 = vrot.slane %v2781, 1
  %v2783 = vadd.f32 %v2781, %v2782
  %v2784 = vrot.slane %v2459, 4
  %v2785 = vadd.f32 %v2459, %v2784
  %v2786 = vrot.slane %v2785, 2
  %v2787 = vadd.f32 %v2785, %v2786
  %v2788 = vrot.slane %v2787, 1
  %v2789 = vadd.f32 %v2787, %v2788
  %v2790 = vrot.slane %v2461, 4
  %v2791 = vadd.f32 %v2461, %v2790
  %v2792 = vrot.slane %v2791, 2
  %v2793 = vadd.f32 %v2791, %v2792
  %v2794 = vrot.slane %v2793, 1
  %v2795 = vadd.f32 %v2793, %v2794
  %v2796 = vsel %vm1857, %v2463, 0.0
  %v2797 = vrot.slane %v2796, 4
  %v2798 = vadd.f32 %v2796, %v2797
  %v2799 = vrot.slane %v2798, 2
  %v2800 = vadd.f32 %v2798, %v2799
  %v2801 = vrot.slane %v2800, 1
  %v2802 = vadd.f32 %v2800, %v2801
  %v2803 = vrot.slane %v2465, 4
  %v2804 = vadd.f32 %v2465, %v2803
  %v2805 = vrot.slane %v2804, 2
  %v2806 = vadd.f32 %v2804, %v2805
  %v2807 = vrot.slane %v2806, 1
  %v2808 = vadd.f32 %v2806, %v2807
  %v2809 = vrot.slane %v2467, 4
  %v2810 = vadd.f32 %v2467, %v2809
  %v2811 = vrot.slane %v2810, 2
  %v2812 = vadd.f32 %v2810, %v2811
  %v2813 = vrot.slane %v2812, 1
  %v2814 = vadd.f32 %v2812, %v2813
  %v2815 = vsel %vm1857, %v2469, 0.0
  %v2816 = vrot.slane %v2815, 4
  %v2817 = vadd.f32 %v2815, %v2816
  %v2818 = vrot.slane %v2817, 2
  %v2819 = vadd.f32 %v2817, %v2818
  %v2820 = vrot.slane %v2819, 1
  %v2821 = vadd.f32 %v2819, %v2820
  %v2822 = vrot.slane %v2471, 4
  %v2823 = vadd.f32 %v2471, %v2822
  %v2824 = vrot.slane %v2823, 2
  %v2825 = vadd.f32 %v2823, %v2824
  %v2826 = vrot.slane %v2825, 1
  %v2827 = vadd.f32 %v2825, %v2826
  %v2828 = vrot.slane %v2473, 4
  %v2829 = vadd.f32 %v2473, %v2828
  %v2830 = vrot.slane %v2829, 2
  %v2831 = vadd.f32 %v2829, %v2830
  %v2832 = vrot.slane %v2831, 1
  %v2833 = vadd.f32 %v2831, %v2832
  %v2834 = vsel %vm1857, %v2475, 0.0
  %v2835 = vrot.slane %v2834, 4
  %v2836 = vadd.f32 %v2834, %v2835
  %v2837 = vrot.slane %v2836, 2
  %v2838 = vadd.f32 %v2836, %v2837
  %v2839 = vrot.slane %v2838, 1
  %v2840 = vadd.f32 %v2838, %v2839
  %v2841 = vrot.slane %v2477, 4
  %v2842 = vadd.f32 %v2477, %v2841
  %v2843 = vrot.slane %v2842, 2
  %v2844 = vadd.f32 %v2842, %v2843
  %v2845 = vrot.slane %v2844, 1
  %v2846 = vadd.f32 %v2844, %v2845
  %v2847 = vrot.slane %v2479, 4
  %v2848 = vadd.f32 %v2479, %v2847
  %v2849 = vrot.slane %v2848, 2
  %v2850 = vadd.f32 %v2848, %v2849
  %v2851 = vrot.slane %v2850, 1
  %v2852 = vadd.f32 %v2850, %v2851
  %v2853 = vsel %vm1857, %v2481, 0.0
  %v2854 = vrot.slane %v2853, 4
  %v2855 = vadd.f32 %v2853, %v2854
  %v2856 = vrot.slane %v2855, 2
  %v2857 = vadd.f32 %v2855, %v2856
  %v2858 = vrot.slane %v2857, 1
  %v2859 = vadd.f32 %v2857, %v2858
  %v2860 = vrot.slane %v2483, 4
  %v2861 = vadd.f32 %v2483, %v2860
  %v2862 = vrot.slane %v2861, 2
  %v2863 = vadd.f32 %v2861, %v2862
  %v2864 = vrot.slane %v2863, 1
  %v2865 = vadd.f32 %v2863, %v2864
  %v2866 = vrot.slane %v2485, 4
  %v2867 = vadd.f32 %v2485, %v2866
  %v2868 = vrot.slane %v2867, 2
  %v2869 = vadd.f32 %v2867, %v2868
  %v2870 = vrot.slane %v2869, 1
  %v2871 = vadd.f32 %v2869, %v2870
  %v2872 = vsel %vm1857, %v2487, 0.0
  %v2873 = vrot.slane %v2872, 4
  %v2874 = vadd.f32 %v2872, %v2873
  %v2875 = vrot.slane %v2874, 2
  %v2876 = vadd.f32 %v2874, %v2875
  %v2877 = vrot.slane %v2876, 1
  %v2878 = vadd.f32 %v2876, %v2877
  %v2879 = vrot.slane %v2489, 4
  %v2880 = vadd.f32 %v2489, %v2879
  %v2881 = vrot.slane %v2880, 2
  %v2882 = vadd.f32 %v2880, %v2881
  %v2883 = vrot.slane %v2882, 1
  %v2884 = vadd.f32 %v2882, %v2883
  %v2885 = vrot.slane %v2491, 4
  %v2886 = vadd.f32 %v2491, %v2885
  %v2887 = vrot.slane %v2886, 2
  %v2888 = vadd.f32 %v2886, %v2887
  %v2889 = vrot.slane %v2888, 1
  %v2890 = vadd.f32 %v2888, %v2889
  %v2891 = vsel %vm1857, %v2493, 0.0
  %v2892 = vrot.slane %v2891, 4
  %v2893 = vadd.f32 %v2891, %v2892
  %v2894 = vrot.slane %v2893, 2
  %v2895 = vadd.f32 %v2893, %v2894
  %v2896 = vrot.slane %v2895, 1
  %v2897 = vadd.f32 %v2895, %v2896
  %v2898 = vrot.slane %v2495, 4
  %v2899 = vadd.f32 %v2495, %v2898
  %v2900 = vrot.slane %v2899, 2
  %v2901 = vadd.f32 %v2899, %v2900
  %v2902 = vrot.slane %v2901, 1
  %v2903 = vadd.f32 %v2901, %v2902
  %v2904 = vrot.slane %v2497, 4
  %v2905 = vadd.f32 %v2497, %v2904
  %v2906 = vrot.slane %v2905, 2
  %v2907 = vadd.f32 %v2905, %v2906
  %v2908 = vrot.slane %v2907, 1
  %v2909 = vadd.f32 %v2907, %v2908
  %v2910 = vsel %vm1857, %v2499, 0.0
  %v2911 = vrot.slane %v2910, 4
  %v2912 = vadd.f32 %v2910, %v2911
  %v2913 = vrot.slane %v2912, 2
  %v2914 = vadd.f32 %v2912, %v2913
  %v2915 = vrot.slane %v2914, 1
  %v2916 = vadd.f32 %v2914, %v2915
  %v2917 = vrot.slane %v2501, 4
  %v2918 = vadd.f32 %v2501, %v2917
  %v2919 = vrot.slane %v2918, 2
  %v2920 = vadd.f32 %v2918, %v2919
  %v2921 = vrot.slane %v2920, 1
  %v2922 = vadd.f32 %v2920, %v2921
  %v2923 = vrot.slane %v2503, 4
  %v2924 = vadd.f32 %v2503, %v2923
  %v2925 = vrot.slane %v2924, 2
  %v2926 = vadd.f32 %v2924, %v2925
  %v2927 = vrot.slane %v2926, 1
  %v2928 = vadd.f32 %v2926, %v2927
  %v2929 = vsel %vm1857, %v2505, 0.0
  %v2930 = vrot.slane %v2929, 4
  %v2931 = vadd.f32 %v2929, %v2930
  %v2932 = vrot.slane %v2931, 2
  %v2933 = vadd.f32 %v2931, %v2932
  %v2934 = vrot.slane %v2933, 1
  %v2935 = vadd.f32 %v2933, %v2934
  %v2936 = vrot.slane %v2507, 4
  %v2937 = vadd.f32 %v2507, %v2936
  %v2938 = vrot.slane %v2937, 2
  %v2939 = vadd.f32 %v2937, %v2938
  %v2940 = vrot.slane %v2939, 1
  %v2941 = vadd.f32 %v2939, %v2940
  %v2942 = vrot.slane %v2509, 4
  %v2943 = vadd.f32 %v2509, %v2942
  %v2944 = vrot.slane %v2943, 2
  %v2945 = vadd.f32 %v2943, %v2944
  %v2946 = vrot.slane %v2945, 1
  %v2947 = vadd.f32 %v2945, %v2946
  %v2948 = vsel %vm1857, %v2511, 0.0
  %v2949 = vrot.slane %v2948, 4
  %v2950 = vadd.f32 %v2948, %v2949
  %v2951 = vrot.slane %v2950, 2
  %v2952 = vadd.f32 %v2950, %v2951
  %v2953 = vrot.slane %v2952, 1
  %v2954 = vadd.f32 %v2952, %v2953
  %v2955 = vrot.slane %v2513, 4
  %v2956 = vadd.f32 %v2513, %v2955
  %v2957 = vrot.slane %v2956, 2
  %v2958 = vadd.f32 %v2956, %v2957
  %v2959 = vrot.slane %v2958, 1
  %v2960 = vadd.f32 %v2958, %v2959
  %v2961 = vrot.slane %v2515, 4
  %v2962 = vadd.f32 %v2515, %v2961
  %v2963 = vrot.slane %v2962, 2
  %v2964 = vadd.f32 %v2962, %v2963
  %v2965 = vrot.slane %v2964, 1
  %v2966 = vadd.f32 %v2964, %v2965
  %v2967 = vsel %vm1857, %v2517, 0.0
  %v2968 = vrot.slane %v2967, 4
  %v2969 = vadd.f32 %v2967, %v2968
  %v2970 = vrot.slane %v2969, 2
  %v2971 = vadd.f32 %v2969, %v2970
  %v2972 = vrot.slane %v2971, 1
  %v2973 = vadd.f32 %v2971, %v2972
  %v2974 = vrcp.pop %v2523
  %v2975 = vrcp.pop %v2529
  %v2976 = vrcp.pop %v2536
  %v2977 = vrcp.pop %v2542
  %v2978 = vrcp.pop %v2548
  %v2979 = vrcp.pop %v2555
  %v2980 = vrcp.pop %v2561
  %v2981 = vrcp.pop %v2567
  %v2982 = vrcp.pop %v2574
  %v2983 = vrcp.pop %v2580
  %v2984 = vrcp.pop %v2586
  %v2985 = vrcp.pop %v2593
  %v2986 = vrcp.pop %v2599
  %v2987 = vrcp.pop %v2605
  %v2988 = vrcp.pop %v2612
  %v2989 = vrcp.pop %v2618
  %v2990 = vrcp.pop %v2624
  %v2991 = vrcp.pop %v2631
  %v2992 = vrcp.pop %v2637
  %v2993 = vrcp.pop %v2643
  %v2994 = vrcp.pop %v2650
  %v2995 = vrcp.pop %v2656
  %v2996 = vrcp.pop %v2662
  %v2997 = vrcp.pop %v2669
  %v2998 = vrcp.pop %v2675
  %v2999 = vrcp.pop %v2681
  %v3000 = vrcp.pop %v2688
  %v3001 = vrcp.pop %v2694
  %v3002 = vrcp.pop %v2700
  %v3003 = vrcp.pop %v2707
  %v3004 = vrcp.pop %v2713
  %v3005 = vrcp.pop %v2719
  %v3006 = vrcp.pop %v2726
  %v3007 = vrcp.pop %v2732
  %v3008 = vrcp.pop %v2738
  %v3009 = vrcp.pop %v2745
  %v3010 = vrcp.pop %v2751
  %v3011 = vrcp.pop %v2757
  %v3012 = vrcp.pop %v2764
  %v3013 = vrcp.pop %v2770
  %v3014 = vrcp.pop %v2776
  %v3015 = vrcp.pop %v2783
  %v3016 = vrcp.pop %v2789
  %v3017 = vrcp.pop %v2795
  %v3018 = vrcp.pop %v2802
  %v3019 = vrcp.pop %v2808
  %v3020 = vrcp.pop %v2814
  %v3021 = vrcp.pop %v2821
  %v3022 = vrcp.pop %v2827
  %v3023 = vrcp.pop %v2833
  %v3024 = vrcp.pop %v2840
  %v3025 = vrcp.pop %v2846
  %v3026 = vrcp.pop %v2852
  %v3027 = vrcp.pop %v2859
  %v3028 = vrcp.pop %v2865
  %v3029 = vrcp.pop %v2871
  %v3030 = vrcp.pop %v2878
  %v3031 = vrcp.pop %v2884
  %v3032 = vrcp.pop %v2890
  %v3033 = vrcp.pop %v2897
  %v3034 = vrcp.pop %v2903
  %v3035 = vrcp.pop %v2909
  %v3036 = vrcp.pop %v2916
  %v3037 = vrcp.pop %v2922
  %v3038 = vrcp.pop %v2928
  %v3039 = vrcp.pop %v2935
  %v3040 = vrcp.pop %v2941
  %v3041 = vrcp.pop %v2947
  %v3042 = vrcp.pop %v2954
  %v3043 = vrcp.pop %v2960
  %v3044 = vrcp.pop %v2966
  %v3045 = vrcp.pop %v2973
  %v3046 = vmul.f32 %v2375, %v2974
  %v3047 = vmul.f32 %v2377, %v2975
  %v3048 = vmul.f32 %v2379, %v2976
  %v3049 = vmul.f32 %v2381, %v2977
  %v3050 = vmul.f32 %v2383, %v2978
  %v3051 = vmul.f32 %v2385, %v2979
  %v3052 = vmul.f32 %v2387, %v2980
  %v3053 = vmul.f32 %v2389, %v2981
  %v3054 = vmul.f32 %v2391, %v2982
  %v3055 = vmul.f32 %v2393, %v2983
  %v3056 = vmul.f32 %v2395, %v2984
  %v3057 = vmul.f32 %v2397, %v2985
  %v3058 = vmul.f32 %v2399, %v2986
  %v3059 = vmul.f32 %v2401, %v2987
  %v3060 = vmul.f32 %v2403, %v2988
  %v3061 = vmul.f32 %v2405, %v2989
  %v3062 = vmul.f32 %v2407, %v2990
  %v3063 = vmul.f32 %v2409, %v2991
  %v3064 = vmul.f32 %v2411, %v2992
  %v3065 = vmul.f32 %v2413, %v2993
  %v3066 = vmul.f32 %v2415, %v2994
  %v3067 = vmul.f32 %v2417, %v2995
  %v3068 = vmul.f32 %v2419, %v2996
  %v3069 = vmul.f32 %v2421, %v2997
  %v3070 = vmul.f32 %v2423, %v2998
  %v3071 = vmul.f32 %v2425, %v2999
  %v3072 = vmul.f32 %v2427, %v3000
  %v3073 = vmul.f32 %v2429, %v3001
  %v3074 = vmul.f32 %v2431, %v3002
  %v3075 = vmul.f32 %v2433, %v3003
  %v3076 = vmul.f32 %v2435, %v3004
  %v3077 = vmul.f32 %v2437, %v3005
  %v3078 = vmul.f32 %v2439, %v3006
  %v3079 = vmul.f32 %v2441, %v3007
  %v3080 = vmul.f32 %v2443, %v3008
  %v3081 = vmul.f32 %v2445, %v3009
  %v3082 = vmul.f32 %v2447, %v3010
  %v3083 = vmul.f32 %v2449, %v3011
  %v3084 = vmul.f32 %v2451, %v3012
  %v3085 = vmul.f32 %v2453, %v3013
  %v3086 = vmul.f32 %v2455, %v3014
  %v3087 = vmul.f32 %v2457, %v3015
  %v3088 = vmul.f32 %v2459, %v3016
  %v3089 = vmul.f32 %v2461, %v3017
  %v3090 = vmul.f32 %v2463, %v3018
  %v3091 = vmul.f32 %v2465, %v3019
  %v3092 = vmul.f32 %v2467, %v3020
  %v3093 = vmul.f32 %v2469, %v3021
  %v3094 = vmul.f32 %v2471, %v3022
  %v3095 = vmul.f32 %v2473, %v3023
  %v3096 = vmul.f32 %v2475, %v3024
  %v3097 = vmul.f32 %v2477, %v3025
  %v3098 = vmul.f32 %v2479, %v3026
  %v3099 = vmul.f32 %v2481, %v3027
  %v3100 = vmul.f32 %v2483, %v3028
  %v3101 = vmul.f32 %v2485, %v3029
  %v3102 = vmul.f32 %v2487, %v3030
  %v3103 = vmul.f32 %v2489, %v3031
  %v3104 = vmul.f32 %v2491, %v3032
  %v3105 = vmul.f32 %v2493, %v3033
  %v3106 = vmul.f32 %v2495, %v3034
  %v3107 = vmul.f32 %v2497, %v3035
  %v3108 = vmul.f32 %v2499, %v3036
  %v3109 = vmul.f32 %v2501, %v3037
  %v3110 = vmul.f32 %v2503, %v3038
  %v3111 = vmul.f32 %v2505, %v3039
  %v3112 = vmul.f32 %v2507, %v3040
  %v3113 = vmul.f32 %v2509, %v3041
  %v3114 = vmul.f32 %v2511, %v3042
  %v3115 = vmul.f32 %v2513, %v3043
  %v3116 = vmul.f32 %v2515, %v3044
  %v3117 = vmul.f32 %v2517, %v3045
  %v3118 = vmul.f32 %v1278, %v3046
  %v3119 = vmul.f32 %v1280, %v3047
  %v3120 = vmul.f32 %v1487, %v3048
  %v3121 = vmul.f32 %v1284, %v3049
  %v3122 = vmul.f32 %v1286, %v3050
  %v3123 = vmul.f32 %v1492, %v3051
  %v3124 = vmul.f32 %v1290, %v3052
  %v3125 = vmul.f32 %v1292, %v3053
  %v3126 = vmul.f32 %v1497, %v3054
  %v3127 = vmul.f32 %v1296, %v3055
  %v3128 = vmul.f32 %v1298, %v3056
  %v3129 = vmul.f32 %v1502, %v3057
  %v3130 = vmul.f32 %v1302, %v3058
  %v3131 = vmul.f32 %v1304, %v3059
  %v3132 = vmul.f32 %v1507, %v3060
  %v3133 = vmul.f32 %v1308, %v3061
  %v3134 = vmul.f32 %v1310, %v3062
  %v3135 = vmul.f32 %v1512, %v3063
  %v3136 = vmul.f32 %v1314, %v3064
  %v3137 = vmul.f32 %v1316, %v3065
  %v3138 = vmul.f32 %v1517, %v3066
  %v3139 = vmul.f32 %v1320, %v3067
  %v3140 = vmul.f32 %v1322, %v3068
  %v3141 = vmul.f32 %v1522, %v3069
  %v3142 = vmul.f32 %v1326, %v3070
  %v3143 = vmul.f32 %v1328, %v3071
  %v3144 = vmul.f32 %v1527, %v3072
  %v3145 = vmul.f32 %v1332, %v3073
  %v3146 = vmul.f32 %v1334, %v3074
  %v3147 = vmul.f32 %v1532, %v3075
  %v3148 = vmul.f32 %v1338, %v3076
  %v3149 = vmul.f32 %v1340, %v3077
  %v3150 = vmul.f32 %v1537, %v3078
  %v3151 = vmul.f32 %v1344, %v3079
  %v3152 = vmul.f32 %v1346, %v3080
  %v3153 = vmul.f32 %v1542, %v3081
  %v3154 = vmul.f32 %v1350, %v3082
  %v3155 = vmul.f32 %v1352, %v3083
  %v3156 = vmul.f32 %v1547, %v3084
  %v3157 = vmul.f32 %v1356, %v3085
  %v3158 = vmul.f32 %v1358, %v3086
  %v3159 = vmul.f32 %v1552, %v3087
  %v3160 = vmul.f32 %v1362, %v3088
  %v3161 = vmul.f32 %v1364, %v3089
  %v3162 = vmul.f32 %v1557, %v3090
  %v3163 = vmul.f32 %v1368, %v3091
  %v3164 = vmul.f32 %v1370, %v3092
  %v3165 = vmul.f32 %v1562, %v3093
  %v3166 = vmul.f32 %v1374, %v3094
  %v3167 = vmul.f32 %v1376, %v3095
  %v3168 = vmul.f32 %v1567, %v3096
  %v3169 = vmul.f32 %v1380, %v3097
  %v3170 = vmul.f32 %v1382, %v3098
  %v3171 = vmul.f32 %v1572, %v3099
  %v3172 = vmul.f32 %v1386, %v3100
  %v3173 = vmul.f32 %v1388, %v3101
  %v3174 = vmul.f32 %v1577, %v3102
  %v3175 = vmul.f32 %v1392, %v3103
  %v3176 = vmul.f32 %v1394, %v3104
  %v3177 = vmul.f32 %v1582, %v3105
  %v3178 = vmul.f32 %v1398, %v3106
  %v3179 = vmul.f32 %v1400, %v3107
  %v3180 = vmul.f32 %v1587, %v3108
  %v3181 = vmul.f32 %v1404, %v3109
  %v3182 = vmul.f32 %v1406, %v3110
  %v3183 = vmul.f32 %v1592, %v3111
  %v3184 = vmul.f32 %v1410, %v3112
  %v3185 = vmul.f32 %v1412, %v3113
  %v3186 = vmul.f32 %v1597, %v3114
  %v3187 = vmul.f32 %v1416, %v3115
  %v3188 = vmul.f32 %v1418, %v3116
  %v3189 = vmul.f32 %v1602, %v3117
  %v3190 = vrot.slane %v3118, 4
  %v3191 = vadd.f32 %v3118, %v3190
  %v3192 = vrot.slane %v3191, 2
  %v3193 = vadd.f32 %v3191, %v3192
  %v3194 = vrot.slane %v3193, 1
  %v3195 = vadd.f32 %v3193, %v3194
  %v3196 = vrot.slane %v3119, 4
  %v3197 = vadd.f32 %v3119, %v3196
  %v3198 = vrot.slane %v3197, 2
  %v3199 = vadd.f32 %v3197, %v3198
  %v3200 = vrot.slane %v3199, 1
  %v3201 = vadd.f32 %v3199, %v3200
  %v3202 = vsel %vm1857, %v3120, 0.0
  %v3203 = vrot.slane %v3202, 4
  %v3204 = vadd.f32 %v3202, %v3203
  %v3205 = vrot.slane %v3204, 2
  %v3206 = vadd.f32 %v3204, %v3205
  %v3207 = vrot.slane %v3206, 1
  %v3208 = vadd.f32 %v3206, %v3207
  %v3209 = vrot.slane %v3121, 4
  %v3210 = vadd.f32 %v3121, %v3209
  %v3211 = vrot.slane %v3210, 2
  %v3212 = vadd.f32 %v3210, %v3211
  %v3213 = vrot.slane %v3212, 1
  %v3214 = vadd.f32 %v3212, %v3213
  %v3215 = vrot.slane %v3122, 4
  %v3216 = vadd.f32 %v3122, %v3215
  %v3217 = vrot.slane %v3216, 2
  %v3218 = vadd.f32 %v3216, %v3217
  %v3219 = vrot.slane %v3218, 1
  %v3220 = vadd.f32 %v3218, %v3219
  %v3221 = vsel %vm1857, %v3123, 0.0
  %v3222 = vrot.slane %v3221, 4
  %v3223 = vadd.f32 %v3221, %v3222
  %v3224 = vrot.slane %v3223, 2
  %v3225 = vadd.f32 %v3223, %v3224
  %v3226 = vrot.slane %v3225, 1
  %v3227 = vadd.f32 %v3225, %v3226
  %v3228 = vrot.slane %v3124, 4
  %v3229 = vadd.f32 %v3124, %v3228
  %v3230 = vrot.slane %v3229, 2
  %v3231 = vadd.f32 %v3229, %v3230
  %v3232 = vrot.slane %v3231, 1
  %v3233 = vadd.f32 %v3231, %v3232
  %v3234 = vrot.slane %v3125, 4
  %v3235 = vadd.f32 %v3125, %v3234
  %v3236 = vrot.slane %v3235, 2
  %v3237 = vadd.f32 %v3235, %v3236
  %v3238 = vrot.slane %v3237, 1
  %v3239 = vadd.f32 %v3237, %v3238
  %v3240 = vsel %vm1857, %v3126, 0.0
  %v3241 = vrot.slane %v3240, 4
  %v3242 = vadd.f32 %v3240, %v3241
  %v3243 = vrot.slane %v3242, 2
  %v3244 = vadd.f32 %v3242, %v3243
  %v3245 = vrot.slane %v3244, 1
  %v3246 = vadd.f32 %v3244, %v3245
  %v3247 = vrot.slane %v3127, 4
  %v3248 = vadd.f32 %v3127, %v3247
  %v3249 = vrot.slane %v3248, 2
  %v3250 = vadd.f32 %v3248, %v3249
  %v3251 = vrot.slane %v3250, 1
  %v3252 = vadd.f32 %v3250, %v3251
  %v3253 = vrot.slane %v3128, 4
  %v3254 = vadd.f32 %v3128, %v3253
  %v3255 = vrot.slane %v3254, 2
  %v3256 = vadd.f32 %v3254, %v3255
  %v3257 = vrot.slane %v3256, 1
  %v3258 = vadd.f32 %v3256, %v3257
  %v3259 = vsel %vm1857, %v3129, 0.0
  %v3260 = vrot.slane %v3259, 4
  %v3261 = vadd.f32 %v3259, %v3260
  %v3262 = vrot.slane %v3261, 2
  %v3263 = vadd.f32 %v3261, %v3262
  %v3264 = vrot.slane %v3263, 1
  %v3265 = vadd.f32 %v3263, %v3264
  %v3266 = vrot.slane %v3130, 4
  %v3267 = vadd.f32 %v3130, %v3266
  %v3268 = vrot.slane %v3267, 2
  %v3269 = vadd.f32 %v3267, %v3268
  %v3270 = vrot.slane %v3269, 1
  %v3271 = vadd.f32 %v3269, %v3270
  %v3272 = vrot.slane %v3131, 4
  %v3273 = vadd.f32 %v3131, %v3272
  %v3274 = vrot.slane %v3273, 2
  %v3275 = vadd.f32 %v3273, %v3274
  %v3276 = vrot.slane %v3275, 1
  %v3277 = vadd.f32 %v3275, %v3276
  %v3278 = vsel %vm1857, %v3132, 0.0
  %v3279 = vrot.slane %v3278, 4
  %v3280 = vadd.f32 %v3278, %v3279
  %v3281 = vrot.slane %v3280, 2
  %v3282 = vadd.f32 %v3280, %v3281
  %v3283 = vrot.slane %v3282, 1
  %v3284 = vadd.f32 %v3282, %v3283
  %v3285 = vrot.slane %v3133, 4
  %v3286 = vadd.f32 %v3133, %v3285
  %v3287 = vrot.slane %v3286, 2
  %v3288 = vadd.f32 %v3286, %v3287
  %v3289 = vrot.slane %v3288, 1
  %v3290 = vadd.f32 %v3288, %v3289
  %v3291 = vrot.slane %v3134, 4
  %v3292 = vadd.f32 %v3134, %v3291
  %v3293 = vrot.slane %v3292, 2
  %v3294 = vadd.f32 %v3292, %v3293
  %v3295 = vrot.slane %v3294, 1
  %v3296 = vadd.f32 %v3294, %v3295
  %v3297 = vsel %vm1857, %v3135, 0.0
  %v3298 = vrot.slane %v3297, 4
  %v3299 = vadd.f32 %v3297, %v3298
  %v3300 = vrot.slane %v3299, 2
  %v3301 = vadd.f32 %v3299, %v3300
  %v3302 = vrot.slane %v3301, 1
  %v3303 = vadd.f32 %v3301, %v3302
  %v3304 = vrot.slane %v3136, 4
  %v3305 = vadd.f32 %v3136, %v3304
  %v3306 = vrot.slane %v3305, 2
  %v3307 = vadd.f32 %v3305, %v3306
  %v3308 = vrot.slane %v3307, 1
  %v3309 = vadd.f32 %v3307, %v3308
  %v3310 = vrot.slane %v3137, 4
  %v3311 = vadd.f32 %v3137, %v3310
  %v3312 = vrot.slane %v3311, 2
  %v3313 = vadd.f32 %v3311, %v3312
  %v3314 = vrot.slane %v3313, 1
  %v3315 = vadd.f32 %v3313, %v3314
  %v3316 = vsel %vm1857, %v3138, 0.0
  %v3317 = vrot.slane %v3316, 4
  %v3318 = vadd.f32 %v3316, %v3317
  %v3319 = vrot.slane %v3318, 2
  %v3320 = vadd.f32 %v3318, %v3319
  %v3321 = vrot.slane %v3320, 1
  %v3322 = vadd.f32 %v3320, %v3321
  %v3323 = vrot.slane %v3139, 4
  %v3324 = vadd.f32 %v3139, %v3323
  %v3325 = vrot.slane %v3324, 2
  %v3326 = vadd.f32 %v3324, %v3325
  %v3327 = vrot.slane %v3326, 1
  %v3328 = vadd.f32 %v3326, %v3327
  %v3329 = vrot.slane %v3140, 4
  %v3330 = vadd.f32 %v3140, %v3329
  %v3331 = vrot.slane %v3330, 2
  %v3332 = vadd.f32 %v3330, %v3331
  %v3333 = vrot.slane %v3332, 1
  %v3334 = vadd.f32 %v3332, %v3333
  %v3335 = vsel %vm1857, %v3141, 0.0
  %v3336 = vrot.slane %v3335, 4
  %v3337 = vadd.f32 %v3335, %v3336
  %v3338 = vrot.slane %v3337, 2
  %v3339 = vadd.f32 %v3337, %v3338
  %v3340 = vrot.slane %v3339, 1
  %v3341 = vadd.f32 %v3339, %v3340
  %v3342 = vrot.slane %v3142, 4
  %v3343 = vadd.f32 %v3142, %v3342
  %v3344 = vrot.slane %v3343, 2
  %v3345 = vadd.f32 %v3343, %v3344
  %v3346 = vrot.slane %v3345, 1
  %v3347 = vadd.f32 %v3345, %v3346
  %v3348 = vrot.slane %v3143, 4
  %v3349 = vadd.f32 %v3143, %v3348
  %v3350 = vrot.slane %v3349, 2
  %v3351 = vadd.f32 %v3349, %v3350
  %v3352 = vrot.slane %v3351, 1
  %v3353 = vadd.f32 %v3351, %v3352
  %v3354 = vsel %vm1857, %v3144, 0.0
  %v3355 = vrot.slane %v3354, 4
  %v3356 = vadd.f32 %v3354, %v3355
  %v3357 = vrot.slane %v3356, 2
  %v3358 = vadd.f32 %v3356, %v3357
  %v3359 = vrot.slane %v3358, 1
  %v3360 = vadd.f32 %v3358, %v3359
  %v3361 = vrot.slane %v3145, 4
  %v3362 = vadd.f32 %v3145, %v3361
  %v3363 = vrot.slane %v3362, 2
  %v3364 = vadd.f32 %v3362, %v3363
  %v3365 = vrot.slane %v3364, 1
  %v3366 = vadd.f32 %v3364, %v3365
  %v3367 = vrot.slane %v3146, 4
  %v3368 = vadd.f32 %v3146, %v3367
  %v3369 = vrot.slane %v3368, 2
  %v3370 = vadd.f32 %v3368, %v3369
  %v3371 = vrot.slane %v3370, 1
  %v3372 = vadd.f32 %v3370, %v3371
  %v3373 = vsel %vm1857, %v3147, 0.0
  %v3374 = vrot.slane %v3373, 4
  %v3375 = vadd.f32 %v3373, %v3374
  %v3376 = vrot.slane %v3375, 2
  %v3377 = vadd.f32 %v3375, %v3376
  %v3378 = vrot.slane %v3377, 1
  %v3379 = vadd.f32 %v3377, %v3378
  %v3380 = vrot.slane %v3148, 4
  %v3381 = vadd.f32 %v3148, %v3380
  %v3382 = vrot.slane %v3381, 2
  %v3383 = vadd.f32 %v3381, %v3382
  %v3384 = vrot.slane %v3383, 1
  %v3385 = vadd.f32 %v3383, %v3384
  %v3386 = vrot.slane %v3149, 4
  %v3387 = vadd.f32 %v3149, %v3386
  %v3388 = vrot.slane %v3387, 2
  %v3389 = vadd.f32 %v3387, %v3388
  %v3390 = vrot.slane %v3389, 1
  %v3391 = vadd.f32 %v3389, %v3390
  %v3392 = vsel %vm1857, %v3150, 0.0
  %v3393 = vrot.slane %v3392, 4
  %v3394 = vadd.f32 %v3392, %v3393
  %v3395 = vrot.slane %v3394, 2
  %v3396 = vadd.f32 %v3394, %v3395
  %v3397 = vrot.slane %v3396, 1
  %v3398 = vadd.f32 %v3396, %v3397
  %v3399 = vrot.slane %v3151, 4
  %v3400 = vadd.f32 %v3151, %v3399
  %v3401 = vrot.slane %v3400, 2
  %v3402 = vadd.f32 %v3400, %v3401
  %v3403 = vrot.slane %v3402, 1
  %v3404 = vadd.f32 %v3402, %v3403
  %v3405 = vrot.slane %v3152, 4
  %v3406 = vadd.f32 %v3152, %v3405
  %v3407 = vrot.slane %v3406, 2
  %v3408 = vadd.f32 %v3406, %v3407
  %v3409 = vrot.slane %v3408, 1
  %v3410 = vadd.f32 %v3408, %v3409
  %v3411 = vsel %vm1857, %v3153, 0.0
  %v3412 = vrot.slane %v3411, 4
  %v3413 = vadd.f32 %v3411, %v3412
  %v3414 = vrot.slane %v3413, 2
  %v3415 = vadd.f32 %v3413, %v3414
  %v3416 = vrot.slane %v3415, 1
  %v3417 = vadd.f32 %v3415, %v3416
  %v3418 = vrot.slane %v3154, 4
  %v3419 = vadd.f32 %v3154, %v3418
  %v3420 = vrot.slane %v3419, 2
  %v3421 = vadd.f32 %v3419, %v3420
  %v3422 = vrot.slane %v3421, 1
  %v3423 = vadd.f32 %v3421, %v3422
  %v3424 = vrot.slane %v3155, 4
  %v3425 = vadd.f32 %v3155, %v3424
  %v3426 = vrot.slane %v3425, 2
  %v3427 = vadd.f32 %v3425, %v3426
  %v3428 = vrot.slane %v3427, 1
  %v3429 = vadd.f32 %v3427, %v3428
  %v3430 = vsel %vm1857, %v3156, 0.0
  %v3431 = vrot.slane %v3430, 4
  %v3432 = vadd.f32 %v3430, %v3431
  %v3433 = vrot.slane %v3432, 2
  %v3434 = vadd.f32 %v3432, %v3433
  %v3435 = vrot.slane %v3434, 1
  %v3436 = vadd.f32 %v3434, %v3435
  %v3437 = vrot.slane %v3157, 4
  %v3438 = vadd.f32 %v3157, %v3437
  %v3439 = vrot.slane %v3438, 2
  %v3440 = vadd.f32 %v3438, %v3439
  %v3441 = vrot.slane %v3440, 1
  %v3442 = vadd.f32 %v3440, %v3441
  %v3443 = vrot.slane %v3158, 4
  %v3444 = vadd.f32 %v3158, %v3443
  %v3445 = vrot.slane %v3444, 2
  %v3446 = vadd.f32 %v3444, %v3445
  %v3447 = vrot.slane %v3446, 1
  %v3448 = vadd.f32 %v3446, %v3447
  %v3449 = vsel %vm1857, %v3159, 0.0
  %v3450 = vrot.slane %v3449, 4
  %v3451 = vadd.f32 %v3449, %v3450
  %v3452 = vrot.slane %v3451, 2
  %v3453 = vadd.f32 %v3451, %v3452
  %v3454 = vrot.slane %v3453, 1
  %v3455 = vadd.f32 %v3453, %v3454
  %v3456 = vrot.slane %v3160, 4
  %v3457 = vadd.f32 %v3160, %v3456
  %v3458 = vrot.slane %v3457, 2
  %v3459 = vadd.f32 %v3457, %v3458
  %v3460 = vrot.slane %v3459, 1
  %v3461 = vadd.f32 %v3459, %v3460
  %v3462 = vrot.slane %v3161, 4
  %v3463 = vadd.f32 %v3161, %v3462
  %v3464 = vrot.slane %v3463, 2
  %v3465 = vadd.f32 %v3463, %v3464
  %v3466 = vrot.slane %v3465, 1
  %v3467 = vadd.f32 %v3465, %v3466
  %v3468 = vsel %vm1857, %v3162, 0.0
  %v3469 = vrot.slane %v3468, 4
  %v3470 = vadd.f32 %v3468, %v3469
  %v3471 = vrot.slane %v3470, 2
  %v3472 = vadd.f32 %v3470, %v3471
  %v3473 = vrot.slane %v3472, 1
  %v3474 = vadd.f32 %v3472, %v3473
  %v3475 = vrot.slane %v3163, 4
  %v3476 = vadd.f32 %v3163, %v3475
  %v3477 = vrot.slane %v3476, 2
  %v3478 = vadd.f32 %v3476, %v3477
  %v3479 = vrot.slane %v3478, 1
  %v3480 = vadd.f32 %v3478, %v3479
  %v3481 = vrot.slane %v3164, 4
  %v3482 = vadd.f32 %v3164, %v3481
  %v3483 = vrot.slane %v3482, 2
  %v3484 = vadd.f32 %v3482, %v3483
  %v3485 = vrot.slane %v3484, 1
  %v3486 = vadd.f32 %v3484, %v3485
  %v3487 = vsel %vm1857, %v3165, 0.0
  %v3488 = vrot.slane %v3487, 4
  %v3489 = vadd.f32 %v3487, %v3488
  %v3490 = vrot.slane %v3489, 2
  %v3491 = vadd.f32 %v3489, %v3490
  %v3492 = vrot.slane %v3491, 1
  %v3493 = vadd.f32 %v3491, %v3492
  %v3494 = vrot.slane %v3166, 4
  %v3495 = vadd.f32 %v3166, %v3494
  %v3496 = vrot.slane %v3495, 2
  %v3497 = vadd.f32 %v3495, %v3496
  %v3498 = vrot.slane %v3497, 1
  %v3499 = vadd.f32 %v3497, %v3498
  %v3500 = vrot.slane %v3167, 4
  %v3501 = vadd.f32 %v3167, %v3500
  %v3502 = vrot.slane %v3501, 2
  %v3503 = vadd.f32 %v3501, %v3502
  %v3504 = vrot.slane %v3503, 1
  %v3505 = vadd.f32 %v3503, %v3504
  %v3506 = vsel %vm1857, %v3168, 0.0
  %v3507 = vrot.slane %v3506, 4
  %v3508 = vadd.f32 %v3506, %v3507
  %v3509 = vrot.slane %v3508, 2
  %v3510 = vadd.f32 %v3508, %v3509
  %v3511 = vrot.slane %v3510, 1
  %v3512 = vadd.f32 %v3510, %v3511
  %v3513 = vrot.slane %v3169, 4
  %v3514 = vadd.f32 %v3169, %v3513
  %v3515 = vrot.slane %v3514, 2
  %v3516 = vadd.f32 %v3514, %v3515
  %v3517 = vrot.slane %v3516, 1
  %v3518 = vadd.f32 %v3516, %v3517
  %v3519 = vrot.slane %v3170, 4
  %v3520 = vadd.f32 %v3170, %v3519
  %v3521 = vrot.slane %v3520, 2
  %v3522 = vadd.f32 %v3520, %v3521
  %v3523 = vrot.slane %v3522, 1
  %v3524 = vadd.f32 %v3522, %v3523
  %v3525 = vsel %vm1857, %v3171, 0.0
  %v3526 = vrot.slane %v3525, 4
  %v3527 = vadd.f32 %v3525, %v3526
  %v3528 = vrot.slane %v3527, 2
  %v3529 = vadd.f32 %v3527, %v3528
  %v3530 = vrot.slane %v3529, 1
  %v3531 = vadd.f32 %v3529, %v3530
  %v3532 = vrot.slane %v3172, 4
  %v3533 = vadd.f32 %v3172, %v3532
  %v3534 = vrot.slane %v3533, 2
  %v3535 = vadd.f32 %v3533, %v3534
  %v3536 = vrot.slane %v3535, 1
  %v3537 = vadd.f32 %v3535, %v3536
  %v3538 = vrot.slane %v3173, 4
  %v3539 = vadd.f32 %v3173, %v3538
  %v3540 = vrot.slane %v3539, 2
  %v3541 = vadd.f32 %v3539, %v3540
  %v3542 = vrot.slane %v3541, 1
  %v3543 = vadd.f32 %v3541, %v3542
  %v3544 = vsel %vm1857, %v3174, 0.0
  %v3545 = vrot.slane %v3544, 4
  %v3546 = vadd.f32 %v3544, %v3545
  %v3547 = vrot.slane %v3546, 2
  %v3548 = vadd.f32 %v3546, %v3547
  %v3549 = vrot.slane %v3548, 1
  %v3550 = vadd.f32 %v3548, %v3549
  %v3551 = vrot.slane %v3175, 4
  %v3552 = vadd.f32 %v3175, %v3551
  %v3553 = vrot.slane %v3552, 2
  %v3554 = vadd.f32 %v3552, %v3553
  %v3555 = vrot.slane %v3554, 1
  %v3556 = vadd.f32 %v3554, %v3555
  %v3557 = vrot.slane %v3176, 4
  %v3558 = vadd.f32 %v3176, %v3557
  %v3559 = vrot.slane %v3558, 2
  %v3560 = vadd.f32 %v3558, %v3559
  %v3561 = vrot.slane %v3560, 1
  %v3562 = vadd.f32 %v3560, %v3561
  %v3563 = vsel %vm1857, %v3177, 0.0
  %v3564 = vrot.slane %v3563, 4
  %v3565 = vadd.f32 %v3563, %v3564
  %v3566 = vrot.slane %v3565, 2
  %v3567 = vadd.f32 %v3565, %v3566
  %v3568 = vrot.slane %v3567, 1
  %v3569 = vadd.f32 %v3567, %v3568
  %v3570 = vrot.slane %v3178, 4
  %v3571 = vadd.f32 %v3178, %v3570
  %v3572 = vrot.slane %v3571, 2
  %v3573 = vadd.f32 %v3571, %v3572
  %v3574 = vrot.slane %v3573, 1
  %v3575 = vadd.f32 %v3573, %v3574
  %v3576 = vrot.slane %v3179, 4
  %v3577 = vadd.f32 %v3179, %v3576
  %v3578 = vrot.slane %v3577, 2
  %v3579 = vadd.f32 %v3577, %v3578
  %v3580 = vrot.slane %v3579, 1
  %v3581 = vadd.f32 %v3579, %v3580
  %v3582 = vsel %vm1857, %v3180, 0.0
  %v3583 = vrot.slane %v3582, 4
  %v3584 = vadd.f32 %v3582, %v3583
  %v3585 = vrot.slane %v3584, 2
  %v3586 = vadd.f32 %v3584, %v3585
  %v3587 = vrot.slane %v3586, 1
  %v3588 = vadd.f32 %v3586, %v3587
  %v3589 = vrot.slane %v3181, 4
  %v3590 = vadd.f32 %v3181, %v3589
  %v3591 = vrot.slane %v3590, 2
  %v3592 = vadd.f32 %v3590, %v3591
  %v3593 = vrot.slane %v3592, 1
  %v3594 = vadd.f32 %v3592, %v3593
  %v3595 = vrot.slane %v3182, 4
  %v3596 = vadd.f32 %v3182, %v3595
  %v3597 = vrot.slane %v3596, 2
  %v3598 = vadd.f32 %v3596, %v3597
  %v3599 = vrot.slane %v3598, 1
  %v3600 = vadd.f32 %v3598, %v3599
  %v3601 = vsel %vm1857, %v3183, 0.0
  %v3602 = vrot.slane %v3601, 4
  %v3603 = vadd.f32 %v3601, %v3602
  %v3604 = vrot.slane %v3603, 2
  %v3605 = vadd.f32 %v3603, %v3604
  %v3606 = vrot.slane %v3605, 1
  %v3607 = vadd.f32 %v3605, %v3606
  %v3608 = vrot.slane %v3184, 4
  %v3609 = vadd.f32 %v3184, %v3608
  %v3610 = vrot.slane %v3609, 2
  %v3611 = vadd.f32 %v3609, %v3610
  %v3612 = vrot.slane %v3611, 1
  %v3613 = vadd.f32 %v3611, %v3612
  %v3614 = vrot.slane %v3185, 4
  %v3615 = vadd.f32 %v3185, %v3614
  %v3616 = vrot.slane %v3615, 2
  %v3617 = vadd.f32 %v3615, %v3616
  %v3618 = vrot.slane %v3617, 1
  %v3619 = vadd.f32 %v3617, %v3618
  %v3620 = vsel %vm1857, %v3186, 0.0
  %v3621 = vrot.slane %v3620, 4
  %v3622 = vadd.f32 %v3620, %v3621
  %v3623 = vrot.slane %v3622, 2
  %v3624 = vadd.f32 %v3622, %v3623
  %v3625 = vrot.slane %v3624, 1
  %v3626 = vadd.f32 %v3624, %v3625
  %v3627 = vrot.slane %v3187, 4
  %v3628 = vadd.f32 %v3187, %v3627
  %v3629 = vrot.slane %v3628, 2
  %v3630 = vadd.f32 %v3628, %v3629
  %v3631 = vrot.slane %v3630, 1
  %v3632 = vadd.f32 %v3630, %v3631
  %v3633 = vrot.slane %v3188, 4
  %v3634 = vadd.f32 %v3188, %v3633
  %v3635 = vrot.slane %v3634, 2
  %v3636 = vadd.f32 %v3634, %v3635
  %v3637 = vrot.slane %v3636, 1
  %v3638 = vadd.f32 %v3636, %v3637
  %v3639 = vsel %vm1857, %v3189, 0.0
  %v3640 = vrot.slane %v3639, 4
  %v3641 = vadd.f32 %v3639, %v3640
  %v3642 = vrot.slane %v3641, 2
  %v3643 = vadd.f32 %v3641, %v3642
  %v3644 = vrot.slane %v3643, 1
  %v3645 = vadd.f32 %v3643, %v3644
  %v3646 = vld [vmem:[%s12] sm:$0xff]
  %v3647 = vld [vmem:[%s12 + $0x8] sm:$0xff]
  %v3648 = vld [vmem:[%s12 + $0x10] sm:$0xff]
  %v3649 = vld [vmem:[%s12 + $0x18] sm:$0xff]
  %v3650 = vld [vmem:[%s12 + $0x20] sm:$0xff]
  %v3651 = vld [vmem:[%s12 + $0x28] sm:$0xff]
  %v3652 = vld [vmem:[%s12 + $0x30] sm:$0xff]
  %v3653 = vld [vmem:[%s12 + $0x38] sm:$0xff]
  %v3654 = vld [vmem:[%s12 + $0x40] sm:$0xff]
  %v3655 = vld [vmem:[%s12 + $0x48] sm:$0xff]
  %v3656 = vld [vmem:[%s12 + $0x50] sm:$0xff]
  %v3657 = vld [vmem:[%s12 + $0x58] sm:$0xff]
  %v3658 = vld [vmem:[%s12 + $0x60] sm:$0xff]
  %v3659 = vld [vmem:[%s12 + $0x68] sm:$0xff]
  %v3660 = vld [vmem:[%s12 + $0x70] sm:$0xff]
  %v3661 = vld [vmem:[%s12 + $0x78] sm:$0xff]
  %v3662 = vld [vmem:[%s12 + $0x80] sm:$0xff]
  %v3663 = vld [vmem:[%s12 + $0x88] sm:$0xff]
  %v3664 = vld [vmem:[%s12 + $0x90] sm:$0xff]
  %v3665 = vld [vmem:[%s12 + $0x98] sm:$0xff]
  %v3666 = vld [vmem:[%s12 + $0xa0] sm:$0xff]
  %v3667 = vld [vmem:[%s12 + $0xa8] sm:$0xff]
  %v3668 = vld [vmem:[%s12 + $0xb0] sm:$0xff]
  %v3669 = vld [vmem:[%s12 + $0xb8] sm:$0xff]
  %v3670 = vld [vmem:[%s12 + $0xc0] sm:$0xff]
  %v3671 = vld [vmem:[%s12 + $0xc8] sm:$0xff]
  %v3672 = vld [vmem:[%s12 + $0xd0] sm:$0xff]
  %v3673 = vld [vmem:[%s12 + $0xd8] sm:$0xff]
  %v3674 = vld [vmem:[%s12 + $0xe0] sm:$0xff]
  %v3675 = vld [vmem:[%s12 + $0xe8] sm:$0xff]
  %v3676 = vld [vmem:[%s12 + $0xf0] sm:$0xff]
  %v3677 = vld [vmem:[%s12 + $0xf8] sm:$0xff]
  %v3678 = vld [vmem:[%s12 + $0x100] sm:$0xff]
  %v3679 = vld [vmem:[%s12 + $0x108] sm:$0xff]
  %v3680 = vld [vmem:[%s12 + $0x110] sm:$0x7f]
  %v3681 = vld [vmem:[%s13] sm:$0x1]
  %v3683 = vlaneseq
  %v3684 = vshrl.u32 %v3683, 7
  %v3685 = vsub.s32 0, %v3684
  %v3686 = vrot.slane %v3681, %v3685
  %vm3760 = vcmask 1041409
  %v3761 = vsel %vm3760, %v3214, %v3195
  %vm3762 = vcmask 1042434
  %v3763 = vsel %vm3762, %v3233, %v3761
  %vm3764 = vcmask 1043459
  %v3765 = vsel %vm3764, %v3252, %v3763
  %vm3766 = vcmask 1044484
  %v3767 = vsel %vm3766, %v3271, %v3765
  %vm3768 = vcmask 1045509
  %v3769 = vsel %vm3768, %v3290, %v3767
  %vm3770 = vcmask 1046534
  %v3771 = vsel %vm3770, %v3309, %v3769
  %vm3772 = vcmask 1047559
  %v3773 = vsel %vm3772, %v3328, %v3771
  %v3774 = vsel %vm3760, %v3220, %v3201
  %v3775 = vsel %vm3762, %v3239, %v3774
  %v3776 = vsel %vm3764, %v3258, %v3775
  %v3777 = vsel %vm3766, %v3277, %v3776
  %v3778 = vsel %vm3768, %v3296, %v3777
  %v3779 = vsel %vm3770, %v3315, %v3778
  %v3780 = vsel %vm3772, %v3334, %v3779
  %v3781 = vsel %vm3760, %v3227, %v3208
  %v3782 = vsel %vm3762, %v3246, %v3781
  %v3783 = vsel %vm3764, %v3265, %v3782
  %v3784 = vsel %vm3766, %v3284, %v3783
  %v3785 = vsel %vm3768, %v3303, %v3784
  %v3786 = vsel %vm3770, %v3322, %v3785
  %v3787 = vsel %vm3772, %v3341, %v3786
  %v3788 = vsel %vm3760, %v3366, %v3347
  %v3789 = vsel %vm3762, %v3385, %v3788
  %v3790 = vsel %vm3764, %v3404, %v3789
  %v3791 = vsel %vm3766, %v3423, %v3790
  %v3792 = vsel %vm3768, %v3442, %v3791
  %v3793 = vsel %vm3770, %v3461, %v3792
  %v3794 = vsel %vm3772, %v3480, %v3793
  %v3795 = vsel %vm3760, %v3372, %v3353
  %v3796 = vsel %vm3762, %v3391, %v3795
  %v3797 = vsel %vm3764, %v3410, %v3796
  %v3798 = vsel %vm3766, %v3429, %v3797
  %v3799 = vsel %vm3768, %v3448, %v3798
  %v3800 = vsel %vm3770, %v3467, %v3799
  %v3801 = vsel %vm3772, %v3486, %v3800
  %v3802 = vsel %vm3760, %v3379, %v3360
  %v3803 = vsel %vm3762, %v3398, %v3802
  %v3804 = vsel %vm3764, %v3417, %v3803
  %v3805 = vsel %vm3766, %v3436, %v3804
  %v3806 = vsel %vm3768, %v3455, %v3805
  %v3807 = vsel %vm3770, %v3474, %v3806
  %v3808 = vsel %vm3772, %v3493, %v3807
  %v3809 = vsel %vm3760, %v3518, %v3499
  %v3810 = vsel %vm3762, %v3537, %v3809
  %v3811 = vsel %vm3764, %v3556, %v3810
  %v3812 = vsel %vm3766, %v3575, %v3811
  %v3813 = vsel %vm3768, %v3594, %v3812
  %v3814 = vsel %vm3770, %v3613, %v3813
  %v3815 = vsel %vm3772, %v3632, %v3814
  %v3816 = vsel %vm3760, %v3524, %v3505
  %v3817 = vsel %vm3762, %v3543, %v3816
  %v3818 = vsel %vm3764, %v3562, %v3817
  %v3819 = vsel %vm3766, %v3581, %v3818
  %v3820 = vsel %vm3768, %v3600, %v3819
  %v3821 = vsel %vm3770, %v3619, %v3820
  %v3822 = vsel %vm3772, %v3638, %v3821
  %v3823 = vsel %vm3760, %v3531, %v3512
  %v3824 = vsel %vm3762, %v3550, %v3823
  %v3825 = vsel %vm3764, %v3569, %v3824
  %v3826 = vsel %vm3766, %v3588, %v3825
  %v3827 = vsel %vm3768, %v3607, %v3826
  %v3828 = vsel %vm3770, %v3626, %v3827
  %v3829 = vsel %vm3772, %v3645, %v3828
  %v3836 = vsel %vm1857, %v3787, 0
  %v3838 = vsel %vm1857, %v3808, 0
  %v3840 = vsel %vm1857, %v3829, 0
  %v3843 = vsel %vm479, %v3680, 0
  %3845 = vmatprep.subr.mxu0 0.0
  %3846 = vmatpush1.msra.mxu0 %v3661
  %3847 = vmatprep.subr.mxu0 0.0
  %3848 = vmatpush1.msra.mxu0 %v3660
  %3849 = vmatprep.subr.mxu0 0.0
  %3850 = vmatpush1.msra.mxu0 %v3659
  %3851 = vmatprep.subr.mxu0 0.0
  %3852 = vmatpush1.msra.mxu0 %v3658
  %3853 = vmatprep.subr.mxu0 0.0
  %3854 = vmatpush1.msra.mxu0 %v3657
  %3855 = vmatprep.subr.mxu0 0.0
  %3856 = vmatpush1.msra.mxu0 %v3656
  %3857 = vmatprep.subr.mxu0 0.0
  %3858 = vmatpush1.msra.mxu0 %v3655
  %3859 = vmatprep.subr.mxu0 0.0
  %3860 = vmatpush1.msra.mxu0 %v3654
  %3861 = vmatprep.subr.mxu0 0.0
  %3862 = vmatpush1.msra.mxu0 %v3653
  %3863 = vmatprep.subr.mxu0 0.0
  %3864 = vmatpush1.msra.mxu0 %v3652
  %3865 = vmatprep.subr.mxu0 0.0
  %3866 = vmatpush1.msra.mxu0 %v3651
  %3867 = vmatprep.subr.mxu0 0.0
  %3868 = vmatpush1.msra.mxu0 %v3650
  %3869 = vmatprep.subr.mxu0 0.0
  %3870 = vmatpush1.msra.mxu0 %v3649
  %3871 = vmatprep.subr.mxu0 0.0
  %3872 = vmatpush1.msra.mxu0 %v3648
  %3873 = vmatprep.subr.mxu0 0.0
  %3874 = vmatpush1.msra.mxu0 %v3647
  %3875 = vmatprep.subr.mxu0 0.0
  %3876 = vmatpush1.msra.mxu0 %v3646
  %3877 = vmatprep.subr.mxu0 0.0
  %3878 = vmatpush2.msra.mxu0 %v3677
  %3879 = vmatprep.subr.mxu0 0.0
  %3880 = vmatpush2.msra.mxu0 %v3676
  %3881 = vmatprep.subr.mxu0 0.0
  %3882 = vmatpush2.msra.mxu0 %v3675
  %3883 = vmatprep.subr.mxu0 0.0
  %3884 = vmatpush2.msra.mxu0 %v3674
  %3885 = vmatprep.subr.mxu0 0.0
  %3886 = vmatpush2.msra.mxu0 %v3673
  %3887 = vmatprep.subr.mxu0 0.0
  %3888 = vmatpush2.msra.mxu0 %v3672
  %3889 = vmatprep.subr.mxu0 0.0
  %3890 = vmatpush2.msra.mxu0 %v3671
  %3891 = vmatprep.subr.mxu0 0.0
  %3892 = vmatpush2.msra.mxu0 %v3670
  %3893 = vmatprep.subr.mxu0 0.0
  %3894 = vmatpush2.msra.mxu0 %v3669
  %3895 = vmatprep.subr.mxu0 0.0
  %3896 = vmatpush2.msra.mxu0 %v3668
  %3897 = vmatprep.subr.mxu0 0.0
  %3898 = vmatpush2.msra.mxu0 %v3667
  %3899 = vmatprep.subr.mxu0 0.0
  %3900 = vmatpush2.msra.mxu0 %v3666
  %3901 = vmatprep.subr.mxu0 0.0
  %3902 = vmatpush2.msra.mxu0 %v3665
  %3903 = vmatprep.subr.mxu0 0.0
  %3904 = vmatpush2.msra.mxu0 %v3664
  %3905 = vmatprep.subr.mxu0 0.0
  %3906 = vmatpush2.msra.mxu0 %v3663
  %3907 = vmatprep.subr.mxu0 0.0
  %3908 = vmatpush2.msra.mxu0 %v3662
  %3909 = vmatprep.mubr.f32.mxu0 %v3780
  %3910 = vmatmul.mubr.f32.gmra.mxu0 %v3773
  %v3911 = vpop.f32.mrf.mxu0
  %v3912 = vadd.f32 %v3686, %v3911
  %v3913 = vpop.f32.mrf.mxu0
  %3914 = vmatprep.mubr.f32.mxu0 %v3801
  %3915 = vmatmul.mubr.f32.gmra.mxu0 %v3794
  %v3916 = vpop.f32.mrf.mxu0
  %v3917 = vadd.f32 %v3686, %v3916
  %v3918 = vpop.f32.mrf.mxu0
  %3919 = vmatprep.mubr.f32.mxu0 %v3822
  %3920 = vmatmul.mubr.f32.gmra.mxu0 %v3815
  %v3921 = vpop.f32.mrf.mxu0
  %v3922 = vadd.f32 %v3686, %v3921
  %v3923 = vpop.f32.mrf.mxu0
  %3924 = vdwg.mxu0
  %3925 = vmatprep.subr.mxu0 0.0
  %3926 = vmatpush1.msra.mxu0 0.0
  %3927 = vmatprep.subr.mxu0 0.0
  %3928 = vmatpush1.msra.mxu0 0.0
  %3929 = vmatprep.subr.mxu0 0.0
  %3930 = vmatpush1.msra.mxu0 0.0
  %3931 = vmatprep.subr.mxu0 0.0
  %3932 = vmatpush1.msra.mxu0 0.0
  %3933 = vmatprep.subr.mxu0 0.0
  %3934 = vmatpush1.msra.mxu0 0.0
  %3935 = vmatprep.subr.mxu0 0.0
  %3936 = vmatpush1.msra.mxu0 0.0
  %3937 = vmatprep.subr.mxu0 0.0
  %3938 = vmatpush1.msra.mxu0 0.0
  %3939 = vmatprep.subr.mxu0 0.0
  %3940 = vmatpush1.msra.mxu0 0.0
  %3941 = vmatprep.subr.mxu0 0.0
  %3942 = vmatpush1.msra.mxu0 0.0
  %3943 = vmatprep.subr.mxu0 0.0
  %3944 = vmatpush1.msra.mxu0 0.0
  %3945 = vmatprep.subr.mxu0 0.0
  %3946 = vmatpush1.msra.mxu0 0.0
  %3947 = vmatprep.subr.mxu0 0.0
  %3948 = vmatpush1.msra.mxu0 0.0
  %3949 = vmatprep.subr.mxu0 0.0
  %3950 = vmatpush1.msra.mxu0 0.0
  %3951 = vmatprep.subr.mxu0 0.0
  %3952 = vmatpush1.msra.mxu0 %v3843
  %3953 = vmatprep.subr.mxu0 0.0
  %3954 = vmatpush1.msra.mxu0 %v3679
  %3955 = vmatprep.subr.mxu0 0.0
  %3956 = vmatpush1.msra.mxu0 %v3678
  %3957 = vmatprep.subr.mxu0 0.0
  %3958 = vmatpush2.msra.mxu0 0.0
  %3959 = vmatprep.subr.mxu0 0.0
  %3960 = vmatpush2.msra.mxu0 0.0
  %3961 = vmatprep.subr.mxu0 0.0
  %3962 = vmatpush2.msra.mxu0 0.0
  %3963 = vmatprep.subr.mxu0 0.0
  %3964 = vmatpush2.msra.mxu0 0.0
  %3965 = vmatprep.subr.mxu0 0.0
  %3966 = vmatpush2.msra.mxu0 0.0
  %3967 = vmatprep.subr.mxu0 0.0
  %3968 = vmatpush2.msra.mxu0 0.0
  %3969 = vmatprep.subr.mxu0 0.0
  %3970 = vmatpush2.msra.mxu0 0.0
  %3971 = vmatprep.subr.mxu0 0.0
  %3972 = vmatpush2.msra.mxu0 0.0
  %3973 = vmatprep.subr.mxu0 0.0
  %3974 = vmatpush2.msra.mxu0 0.0
  %3975 = vmatprep.subr.mxu0 0.0
  %3976 = vmatpush2.msra.mxu0 0.0
  %3977 = vmatprep.subr.mxu0 0.0
  %3978 = vmatpush2.msra.mxu0 0.0
  %3979 = vmatprep.subr.mxu0 0.0
  %3980 = vmatpush2.msra.mxu0 0.0
  %3981 = vmatprep.subr.mxu0 0.0
  %3982 = vmatpush2.msra.mxu0 0.0
  %3983 = vmatprep.subr.mxu0 0.0
  %3984 = vmatpush2.msra.mxu0 0.0
  %3985 = vmatprep.subr.mxu0 0.0
  %3986 = vmatpush2.msra.mxu0 0.0
  %3987 = vmatprep.subr.mxu0 0.0
  %3988 = vmatpush2.msra.mxu0 0.0
  %3989 = vmatprep.mubr.f32.mxu0 0.0
  %3990 = vmatmul.mubr.f32.gmra.mxu0 %v3836
  %v3991 = vpop.f32.mrf.mxu0
  %v3992 = vadd.f32 %v3912, %v3991
  %v3993 = vpop.f32.mrf.mxu0
  %3994 = vmatprep.mubr.f32.mxu0 0.0
  %3995 = vmatmul.mubr.f32.gmra.mxu0 %v3838
  %v3996 = vpop.f32.mrf.mxu0
  %v3997 = vadd.f32 %v3917, %v3996
  %v3998 = vpop.f32.mrf.mxu0
  %3999 = vmatprep.mubr.f32.mxu0 0.0
  %4000 = vmatmul.mubr.f32.gmra.mxu0 %v3840
  %v4001 = vpop.f32.mrf.mxu0
  %v4002 = vadd.f32 %v3922, %v4001
  %v4003 = vpop.f32.mrf.mxu0
  %4004 = vdwg.mxu0
  %v4005 = vmax.f32 %v3992, 0.0
  %v4006 = vmax.f32 %v3997, 0.0
  %v4007 = vmax.f32 %v4002, 0.0
  %v4008 = vld [vmem:[%s2] sm:$0xff]
  %v4009 = vld [vmem:[%s2 + $0x8] sm:$0xff]
  %v4010 = vld [vmem:[%s2 + $0x10] sm:$0xff]
  %v4011 = vadd.f32 %v4005, %v4008
  %v4012 = vadd.f32 %v4006, %v4009
  %v4013 = vadd.f32 %v4007, %v4010
  %vm4014 = vcmask 7168
  %v4015 = vsel %vm4014, %v1605, 0.0
  %v4016 = vrot.slane %v4015, 4
  %v4017 = vadd.f32 %v4015, %v4016
  %v4018 = vrot.slane %v4017, 2
  %v4019 = vadd.f32 %v4017, %v4018
  %v4020 = vrot.slane %v4019, 1
  %v4021 = vadd.f32 %v4019, %v4020
  %v4022 = vsel %vm4014, %v1606, 0.0
  %v4023 = vrot.slane %v4022, 4
  %v4024 = vadd.f32 %v4022, %v4023
  %v4025 = vrot.slane %v4024, 2
  %v4026 = vadd.f32 %v4024, %v4025
  %v4027 = vrot.slane %v4026, 1
  %v4028 = vadd.f32 %v4026, %v4027
  %v4029 = vsel %vm4014, %v1607, 0.0
  %v4030 = vrot.slane %v4029, 4
  %v4031 = vadd.f32 %v4029, %v4030
  %v4032 = vrot.slane %v4031, 2
  %v4033 = vadd.f32 %v4031, %v4032
  %v4034 = vrot.slane %v4033, 1
  %v4035 = vadd.f32 %v4033, %v4034
  %v4036 = vsel %vm4014, %v1608, 0.0
  %v4037 = vrot.slane %v4036, 4
  %v4038 = vadd.f32 %v4036, %v4037
  %v4039 = vrot.slane %v4038, 2
  %v4040 = vadd.f32 %v4038, %v4039
  %v4041 = vrot.slane %v4040, 1
  %v4042 = vadd.f32 %v4040, %v4041
  %v4043 = vsel %vm4014, %v1609, 0.0
  %v4044 = vrot.slane %v4043, 4
  %v4045 = vadd.f32 %v4043, %v4044
  %v4046 = vrot.slane %v4045, 2
  %v4047 = vadd.f32 %v4045, %v4046
  %v4048 = vrot.slane %v4047, 1
  %v4049 = vadd.f32 %v4047, %v4048
  %v4050 = vsel %vm4014, %v1610, 0.0
  %v4051 = vrot.slane %v4050, 4
  %v4052 = vadd.f32 %v4050, %v4051
  %v4053 = vrot.slane %v4052, 2
  %v4054 = vadd.f32 %v4052, %v4053
  %v4055 = vrot.slane %v4054, 1
  %v4056 = vadd.f32 %v4054, %v4055
  %v4057 = vsel %vm4014, %v1611, 0.0
  %v4058 = vrot.slane %v4057, 4
  %v4059 = vadd.f32 %v4057, %v4058
  %v4060 = vrot.slane %v4059, 2
  %v4061 = vadd.f32 %v4059, %v4060
  %v4062 = vrot.slane %v4061, 1
  %v4063 = vadd.f32 %v4061, %v4062
  %v4064 = vsel %vm4014, %v1612, 0.0
  %v4065 = vrot.slane %v4064, 4
  %v4066 = vadd.f32 %v4064, %v4065
  %v4067 = vrot.slane %v4066, 2
  %v4068 = vadd.f32 %v4066, %v4067
  %v4069 = vrot.slane %v4068, 1
  %v4070 = vadd.f32 %v4068, %v4069
  %v4071 = vsel %vm4014, %v1613, 0.0
  %v4072 = vrot.slane %v4071, 4
  %v4073 = vadd.f32 %v4071, %v4072
  %v4074 = vrot.slane %v4073, 2
  %v4075 = vadd.f32 %v4073, %v4074
  %v4076 = vrot.slane %v4075, 1
  %v4077 = vadd.f32 %v4075, %v4076
  %v4078 = vsel %vm4014, %v1614, 0.0
  %v4079 = vrot.slane %v4078, 4
  %v4080 = vadd.f32 %v4078, %v4079
  %v4081 = vrot.slane %v4080, 2
  %v4082 = vadd.f32 %v4080, %v4081
  %v4083 = vrot.slane %v4082, 1
  %v4084 = vadd.f32 %v4082, %v4083
  %v4085 = vsel %vm4014, %v1615, 0.0
  %v4086 = vrot.slane %v4085, 4
  %v4087 = vadd.f32 %v4085, %v4086
  %v4088 = vrot.slane %v4087, 2
  %v4089 = vadd.f32 %v4087, %v4088
  %v4090 = vrot.slane %v4089, 1
  %v4091 = vadd.f32 %v4089, %v4090
  %v4092 = vsel %vm4014, %v1616, 0.0
  %v4093 = vrot.slane %v4092, 4
  %v4094 = vadd.f32 %v4092, %v4093
  %v4095 = vrot.slane %v4094, 2
  %v4096 = vadd.f32 %v4094, %v4095
  %v4097 = vrot.slane %v4096, 1
  %v4098 = vadd.f32 %v4096, %v4097
  %v4099 = vsel %vm4014, %v1617, 0.0
  %v4100 = vrot.slane %v4099, 4
  %v4101 = vadd.f32 %v4099, %v4100
  %v4102 = vrot.slane %v4101, 2
  %v4103 = vadd.f32 %v4101, %v4102
  %v4104 = vrot.slane %v4103, 1
  %v4105 = vadd.f32 %v4103, %v4104
  %v4106 = vsel %vm4014, %v1618, 0.0
  %v4107 = vrot.slane %v4106, 4
  %v4108 = vadd.f32 %v4106, %v4107
  %v4109 = vrot.slane %v4108, 2
  %v4110 = vadd.f32 %v4108, %v4109
  %v4111 = vrot.slane %v4110, 1
  %v4112 = vadd.f32 %v4110, %v4111
  %v4113 = vsel %vm4014, %v1619, 0.0
  %v4114 = vrot.slane %v4113, 4
  %v4115 = vadd.f32 %v4113, %v4114
  %v4116 = vrot.slane %v4115, 2
  %v4117 = vadd.f32 %v4115, %v4116
  %v4118 = vrot.slane %v4117, 1
  %v4119 = vadd.f32 %v4117, %v4118
  %v4120 = vsel %vm4014, %v1620, 0.0
  %v4121 = vrot.slane %v4120, 4
  %v4122 = vadd.f32 %v4120, %v4121
  %v4123 = vrot.slane %v4122, 2
  %v4124 = vadd.f32 %v4122, %v4123
  %v4125 = vrot.slane %v4124, 1
  %v4126 = vadd.f32 %v4124, %v4125
  %v4127 = vsel %vm4014, %v1621, 0.0
  %v4128 = vrot.slane %v4127, 4
  %v4129 = vadd.f32 %v4127, %v4128
  %v4130 = vrot.slane %v4129, 2
  %v4131 = vadd.f32 %v4129, %v4130
  %v4132 = vrot.slane %v4131, 1
  %v4133 = vadd.f32 %v4131, %v4132
  %v4134 = vsel %vm4014, %v1622, 0.0
  %v4135 = vrot.slane %v4134, 4
  %v4136 = vadd.f32 %v4134, %v4135
  %v4137 = vrot.slane %v4136, 2
  %v4138 = vadd.f32 %v4136, %v4137
  %v4139 = vrot.slane %v4138, 1
  %v4140 = vadd.f32 %v4138, %v4139
  %v4141 = vsel %vm4014, %v1623, 0.0
  %v4142 = vrot.slane %v4141, 4
  %v4143 = vadd.f32 %v4141, %v4142
  %v4144 = vrot.slane %v4143, 2
  %v4145 = vadd.f32 %v4143, %v4144
  %v4146 = vrot.slane %v4145, 1
  %v4147 = vadd.f32 %v4145, %v4146
  %v4148 = vsel %vm4014, %v1624, 0.0
  %v4149 = vrot.slane %v4148, 4
  %v4150 = vadd.f32 %v4148, %v4149
  %v4151 = vrot.slane %v4150, 2
  %v4152 = vadd.f32 %v4150, %v4151
  %v4153 = vrot.slane %v4152, 1
  %v4154 = vadd.f32 %v4152, %v4153
  %v4155 = vsel %vm4014, %v1625, 0.0
  %v4156 = vrot.slane %v4155, 4
  %v4157 = vadd.f32 %v4155, %v4156
  %v4158 = vrot.slane %v4157, 2
  %v4159 = vadd.f32 %v4157, %v4158
  %v4160 = vrot.slane %v4159, 1
  %v4161 = vadd.f32 %v4159, %v4160
  %v4162 = vsel %vm4014, %v1626, 0.0
  %v4163 = vrot.slane %v4162, 4
  %v4164 = vadd.f32 %v4162, %v4163
  %v4165 = vrot.slane %v4164, 2
  %v4166 = vadd.f32 %v4164, %v4165
  %v4167 = vrot.slane %v4166, 1
  %v4168 = vadd.f32 %v4166, %v4167
  %v4169 = vsel %vm4014, %v1627, 0.0
  %v4170 = vrot.slane %v4169, 4
  %v4171 = vadd.f32 %v4169, %v4170
  %v4172 = vrot.slane %v4171, 2
  %v4173 = vadd.f32 %v4171, %v4172
  %v4174 = vrot.slane %v4173, 1
  %v4175 = vadd.f32 %v4173, %v4174
  %v4176 = vsel %vm4014, %v1628, 0.0
  %v4177 = vrot.slane %v4176, 4
  %v4178 = vadd.f32 %v4176, %v4177
  %v4179 = vrot.slane %v4178, 2
  %v4180 = vadd.f32 %v4178, %v4179
  %v4181 = vrot.slane %v4180, 1
  %v4182 = vadd.f32 %v4180, %v4181
  %vm4183 = vcmp.gt.f32.partialorder %v4021, 0.0
  %vm4184 = vcmp.gt.f32.partialorder %v4028, 0.0
  %vm4185 = vcmp.gt.f32.partialorder %v4035, 0.0
  %vm4186 = vcmp.gt.f32.partialorder %v4042, 0.0
  %vm4187 = vcmp.gt.f32.partialorder %v4049, 0.0
  %vm4188 = vcmp.gt.f32.partialorder %v4056, 0.0
  %vm4189 = vcmp.gt.f32.partialorder %v4063, 0.0
  %vm4190 = vcmp.gt.f32.partialorder %v4070, 0.0
  %vm4191 = vcmp.gt.f32.partialorder %v4077, 0.0
  %vm4192 = vcmp.gt.f32.partialorder %v4084, 0.0
  %vm4193 = vcmp.gt.f32.partialorder %v4091, 0.0
  %vm4194 = vcmp.gt.f32.partialorder %v4098, 0.0
  %vm4195 = vcmp.gt.f32.partialorder %v4105, 0.0
  %vm4196 = vcmp.gt.f32.partialorder %v4112, 0.0
  %vm4197 = vcmp.gt.f32.partialorder %v4119, 0.0
  %vm4198 = vcmp.gt.f32.partialorder %v4126, 0.0
  %vm4199 = vcmp.gt.f32.partialorder %v4133, 0.0
  %vm4200 = vcmp.gt.f32.partialorder %v4140, 0.0
  %vm4201 = vcmp.gt.f32.partialorder %v4147, 0.0
  %vm4202 = vcmp.gt.f32.partialorder %v4154, 0.0
  %vm4203 = vcmp.gt.f32.partialorder %v4161, 0.0
  %vm4204 = vcmp.gt.f32.partialorder %v4168, 0.0
  %vm4205 = vcmp.gt.f32.partialorder %v4175, 0.0
  %vm4206 = vcmp.gt.f32.partialorder %v4182, 0.0
  %v4207 = vsel %vm4183, 1, 0
  %v4208 = vsel %vm4184, 1, 0
  %v4209 = vsel %vm4185, 1, 0
  %v4210 = vsel %vm4186, 1, 0
  %v4211 = vsel %vm4187, 1, 0
  %v4212 = vsel %vm4188, 1, 0
  %v4213 = vsel %vm4189, 1, 0
  %v4214 = vsel %vm4190, 1, 0
  %v4215 = vsel %vm4191, 1, 0
  %v4216 = vsel %vm4192, 1, 0
  %v4217 = vsel %vm4193, 1, 0
  %v4218 = vsel %vm4194, 1, 0
  %v4219 = vsel %vm4195, 1, 0
  %v4220 = vsel %vm4196, 1, 0
  %v4221 = vsel %vm4197, 1, 0
  %v4222 = vsel %vm4198, 1, 0
  %v4223 = vsel %vm4199, 1, 0
  %v4224 = vsel %vm4200, 1, 0
  %v4225 = vsel %vm4201, 1, 0
  %v4226 = vsel %vm4202, 1, 0
  %v4227 = vsel %vm4203, 1, 0
  %v4228 = vsel %vm4204, 1, 0
  %v4229 = vsel %vm4205, 1, 0
  %v4230 = vsel %vm4206, 1, 0
  %v4231 = vcvt.s32.f32 %v4207
  %v4232 = vcvt.s32.f32 %v4208
  %v4233 = vcvt.s32.f32 %v4209
  %v4234 = vcvt.s32.f32 %v4210
  %v4235 = vcvt.s32.f32 %v4211
  %v4236 = vcvt.s32.f32 %v4212
  %v4237 = vcvt.s32.f32 %v4213
  %v4238 = vcvt.s32.f32 %v4214
  %v4239 = vcvt.s32.f32 %v4215
  %v4240 = vcvt.s32.f32 %v4216
  %v4241 = vcvt.s32.f32 %v4217
  %v4242 = vcvt.s32.f32 %v4218
  %v4243 = vcvt.s32.f32 %v4219
  %v4244 = vcvt.s32.f32 %v4220
  %v4245 = vcvt.s32.f32 %v4221
  %v4246 = vcvt.s32.f32 %v4222
  %v4247 = vcvt.s32.f32 %v4223
  %v4248 = vcvt.s32.f32 %v4224
  %v4249 = vcvt.s32.f32 %v4225
  %v4250 = vcvt.s32.f32 %v4226
  %v4251 = vcvt.s32.f32 %v4227
  %v4252 = vcvt.s32.f32 %v4228
  %v4253 = vcvt.s32.f32 %v4229
  %v4254 = vcvt.s32.f32 %v4230
  %v4255 = vld [vmem:[%s14] sm:$0xff]
  %v4256 = vld [vmem:[%s14 + $0x8] sm:$0xff]
  %v4257 = vld [vmem:[%s14 + $0x10] sm:$0xff]
  %v4258 = vld [vmem:[%s14 + $0x18] sm:$0x7f]
  %v4259 = vld [vmem:[%s15] sm:$0x1]
  %4261 = vset.pattern.permute.xlu0 0
  %4262 = vperm.xlu0 %4261, %v4231
  %v4263 = vpop.permute.xlu0 %4262
  %4266 = vset.pattern.permute.xlu0 0
  %4267 = vperm.xlu0 %4266, %v4232
  %v4268 = vpop.permute.xlu0 %4267
  %4271 = vset.pattern.permute.xlu0 0
  %4272 = vperm.xlu0 %4271, %v4233
  %v4273 = vpop.permute.xlu0 %4272
  %4276 = vset.pattern.permute.xlu0 0
  %4277 = vperm.xlu0 %4276, %v4234
  %v4278 = vpop.permute.xlu0 %4277
  %4281 = vset.pattern.permute.xlu0 0
  %4282 = vperm.xlu0 %4281, %v4235
  %v4283 = vpop.permute.xlu0 %4282
  %4286 = vset.pattern.permute.xlu0 0
  %4287 = vperm.xlu0 %4286, %v4236
  %v4288 = vpop.permute.xlu0 %4287
  %4291 = vset.pattern.permute.xlu0 0
  %4292 = vperm.xlu0 %4291, %v4237
  %v4293 = vpop.permute.xlu0 %4292
  %4296 = vset.pattern.permute.xlu0 0
  %4297 = vperm.xlu0 %4296, %v4238
  %v4298 = vpop.permute.xlu0 %4297
  %4301 = vset.pattern.permute.xlu0 0
  %4302 = vperm.xlu0 %4301, %v4239
  %v4303 = vpop.permute.xlu0 %4302
  %4306 = vset.pattern.permute.xlu0 0
  %4307 = vperm.xlu0 %4306, %v4240
  %v4308 = vpop.permute.xlu0 %4307
  %4311 = vset.pattern.permute.xlu0 0
  %4312 = vperm.xlu0 %4311, %v4241
  %v4313 = vpop.permute.xlu0 %4312
  %4316 = vset.pattern.permute.xlu0 0
  %4317 = vperm.xlu0 %4316, %v4242
  %v4318 = vpop.permute.xlu0 %4317
  %4321 = vset.pattern.permute.xlu0 0
  %4322 = vperm.xlu0 %4321, %v4243
  %v4323 = vpop.permute.xlu0 %4322
  %4326 = vset.pattern.permute.xlu0 0
  %4327 = vperm.xlu0 %4326, %v4244
  %v4328 = vpop.permute.xlu0 %4327
  %4331 = vset.pattern.permute.xlu0 0
  %4332 = vperm.xlu0 %4331, %v4245
  %v4333 = vpop.permute.xlu0 %4332
  %4336 = vset.pattern.permute.xlu0 0
  %4337 = vperm.xlu0 %4336, %v4246
  %v4338 = vpop.permute.xlu0 %4337
  %4341 = vset.pattern.permute.xlu0 0
  %4342 = vperm.xlu0 %4341, %v4247
  %v4343 = vpop.permute.xlu0 %4342
  %4346 = vset.pattern.permute.xlu0 0
  %4347 = vperm.xlu0 %4346, %v4248
  %v4348 = vpop.permute.xlu0 %4347
  %4351 = vset.pattern.permute.xlu0 0
  %4352 = vperm.xlu0 %4351, %v4249
  %v4353 = vpop.permute.xlu0 %4352
  %4356 = vset.pattern.permute.xlu0 0
  %4357 = vperm.xlu0 %4356, %v4250
  %v4358 = vpop.permute.xlu0 %4357
  %4361 = vset.pattern.permute.xlu0 0
  %4362 = vperm.xlu0 %4361, %v4251
  %v4363 = vpop.permute.xlu0 %4362
  %4366 = vset.pattern.permute.xlu0 0
  %4367 = vperm.xlu0 %4366, %v4252
  %v4368 = vpop.permute.xlu0 %4367
  %4371 = vset.pattern.permute.xlu0 0
  %4372 = vperm.xlu0 %4371, %v4253
  %v4373 = vpop.permute.xlu0 %4372
  %4376 = vset.pattern.permute.xlu0 0
  %4377 = vperm.xlu0 %4376, %v4254
  %v4378 = vpop.permute.xlu0 %4377
  %v4381 = vlaneseq
  %v4382 = vshrl.u32 %v4381, 7
  %v4383 = vsub.s32 0, %v4382
  %v4384 = vrot.slane %v4259, %v4383
  %v4386 = vmul.f32 %v4263, %v4384
  %v4387 = vmul.f32 %v4268, %v4384
  %v4388 = vmul.f32 %v4273, %v4384
  %v4389 = vmul.f32 %v4278, %v4384
  %v4390 = vmul.f32 %v4283, %v4384
  %v4391 = vmul.f32 %v4288, %v4384
  %v4392 = vmul.f32 %v4293, %v4384
  %v4393 = vmul.f32 %v4298, %v4384
  %v4394 = vmul.f32 %v4303, %v4384
  %v4395 = vmul.f32 %v4308, %v4384
  %v4396 = vmul.f32 %v4313, %v4384
  %v4397 = vmul.f32 %v4318, %v4384
  %v4398 = vmul.f32 %v4323, %v4384
  %v4399 = vmul.f32 %v4328, %v4384
  %v4400 = vmul.f32 %v4333, %v4384
  %v4401 = vmul.f32 %v4338, %v4384
  %v4402 = vmul.f32 %v4343, %v4384
  %v4403 = vmul.f32 %v4348, %v4384
  %v4404 = vmul.f32 %v4353, %v4384
  %v4405 = vmul.f32 %v4358, %v4384
  %v4406 = vmul.f32 %v4363, %v4384
  %v4407 = vmul.f32 %v4368, %v4384
  %v4408 = vmul.f32 %v4373, %v4384
  %v4409 = vmul.f32 %v4378, %v4384
  %v4434 = vrot.slane %v4387, 7
  %v4435 = vsel %vm3760, %v4434, %v4386
  %v4436 = vrot.slane %v4388, 6
  %v4437 = vsel %vm3762, %v4436, %v4435
  %v4438 = vrot.slane %v4389, 5
  %v4439 = vsel %vm3764, %v4438, %v4437
  %v4440 = vrot.slane %v4390, 4
  %v4441 = vsel %vm3766, %v4440, %v4439
  %v4442 = vrot.slane %v4391, 3
  %v4443 = vsel %vm3768, %v4442, %v4441
  %v4444 = vrot.slane %v4392, 2
  %v4445 = vsel %vm3770, %v4444, %v4443
  %v4446 = vrot.slane %v4393, 1
  %v4447 = vsel %vm3772, %v4446, %v4445
  %v4448 = vrot.slane %v4395, 7
  %v4449 = vsel %vm3760, %v4448, %v4394
  %v4450 = vrot.slane %v4396, 6
  %v4451 = vsel %vm3762, %v4450, %v4449
  %v4452 = vrot.slane %v4397, 5
  %v4453 = vsel %vm3764, %v4452, %v4451
  %v4454 = vrot.slane %v4398, 4
  %v4455 = vsel %vm3766, %v4454, %v4453
  %v4456 = vrot.slane %v4399, 3
  %v4457 = vsel %vm3768, %v4456, %v4455
  %v4458 = vrot.slane %v4400, 2
  %v4459 = vsel %vm3770, %v4458, %v4457
  %v4460 = vrot.slane %v4401, 1
  %v4461 = vsel %vm3772, %v4460, %v4459
  %v4462 = vrot.slane %v4403, 7
  %v4463 = vsel %vm3760, %v4462, %v4402
  %v4464 = vrot.slane %v4404, 6
  %v4465 = vsel %vm3762, %v4464, %v4463
  %v4466 = vrot.slane %v4405, 5
  %v4467 = vsel %vm3764, %v4466, %v4465
  %v4468 = vrot.slane %v4406, 4
  %v4469 = vsel %vm3766, %v4468, %v4467
  %v4470 = vrot.slane %v4407, 3
  %v4471 = vsel %vm3768, %v4470, %v4469
  %v4472 = vrot.slane %v4408, 2
  %v4473 = vsel %vm3770, %v4472, %v4471
  %v4474 = vrot.slane %v4409, 1
  %v4475 = vsel %vm3772, %v4474, %v4473
  %v4480 = vsel %vm406, %v4011, 0
  %v4483 = vsel %vm406, %v4012, 0
  %v4486 = vsel %vm406, %v4013, 0
  %v4489 = vsel %vm479, %v4258, 0
  %4491 = vmatprep.subr.mxu0 0.0
  %4492 = vmatpush1.msra.mxu0 0.0
  %4493 = vmatprep.subr.mxu0 0.0
  %4494 = vmatpush1.msra.mxu0 0.0
  %4495 = vmatprep.subr.mxu0 0.0
  %4496 = vmatpush1.msra.mxu0 0.0
  %4497 = vmatprep.subr.mxu0 0.0
  %4498 = vmatpush1.msra.mxu0 0.0
  %4499 = vmatprep.subr.mxu0 0.0
  %4500 = vmatpush1.msra.mxu0 0.0
  %4501 = vmatprep.subr.mxu0 0.0
  %4502 = vmatpush1.msra.mxu0 0.0
  %4503 = vmatprep.subr.mxu0 0.0
  %4504 = vmatpush1.msra.mxu0 0.0
  %4505 = vmatprep.subr.mxu0 0.0
  %4506 = vmatpush1.msra.mxu0 0.0
  %4507 = vmatprep.subr.mxu0 0.0
  %4508 = vmatpush1.msra.mxu0 0.0
  %4509 = vmatprep.subr.mxu0 0.0
  %4510 = vmatpush1.msra.mxu0 0.0
  %4511 = vmatprep.subr.mxu0 0.0
  %4512 = vmatpush1.msra.mxu0 0.0
  %4513 = vmatprep.subr.mxu0 0.0
  %4514 = vmatpush1.msra.mxu0 0.0
  %4515 = vmatprep.subr.mxu0 0.0
  %4516 = vmatpush1.msra.mxu0 %v4489
  %4517 = vmatprep.subr.mxu0 0.0
  %4518 = vmatpush1.msra.mxu0 %v4257
  %4519 = vmatprep.subr.mxu0 0.0
  %4520 = vmatpush1.msra.mxu0 %v4256
  %4521 = vmatprep.subr.mxu0 0.0
  %4522 = vmatpush1.msra.mxu0 %v4255
  %4523 = vmatprep.subr.mxu0 0.0
  %4524 = vmatpush2.msra.mxu0 0.0
  %4525 = vmatprep.subr.mxu0 0.0
  %4526 = vmatpush2.msra.mxu0 0.0
  %4527 = vmatprep.subr.mxu0 0.0
  %4528 = vmatpush2.msra.mxu0 0.0
  %4529 = vmatprep.subr.mxu0 0.0
  %4530 = vmatpush2.msra.mxu0 0.0
  %4531 = vmatprep.subr.mxu0 0.0
  %4532 = vmatpush2.msra.mxu0 0.0
  %4533 = vmatprep.subr.mxu0 0.0
  %4534 = vmatpush2.msra.mxu0 0.0
  %4535 = vmatprep.subr.mxu0 0.0
  %4536 = vmatpush2.msra.mxu0 0.0
  %4537 = vmatprep.subr.mxu0 0.0
  %4538 = vmatpush2.msra.mxu0 0.0
  %4539 = vmatprep.subr.mxu0 0.0
  %4540 = vmatpush2.msra.mxu0 0.0
  %4541 = vmatprep.subr.mxu0 0.0
  %4542 = vmatpush2.msra.mxu0 0.0
  %4543 = vmatprep.subr.mxu0 0.0
  %4544 = vmatpush2.msra.mxu0 0.0
  %4545 = vmatprep.subr.mxu0 0.0
  %4546 = vmatpush2.msra.mxu0 0.0
  %4547 = vmatprep.subr.mxu0 0.0
  %4548 = vmatpush2.msra.mxu0 0.0
  %4549 = vmatprep.subr.mxu0 0.0
  %4550 = vmatpush2.msra.mxu0 0.0
  %4551 = vmatprep.subr.mxu0 0.0
  %4552 = vmatpush2.msra.mxu0 0.0
  %4553 = vmatprep.subr.mxu0 0.0
  %4554 = vmatpush2.msra.mxu0 0.0
  %4555 = vmatprep.mubr.f32.mxu0 0.0
  %4556 = vmatmul.mubr.f32.gmra.mxu0 %v4480
  %v4557 = vpop.f32.mrf.mxu0
  %v4558 = vadd.f32 %v4447, %v4557
  %v4559 = vpop.f32.mrf.mxu0
  %4560 = vmatprep.mubr.f32.mxu0 0.0
  %4561 = vmatmul.mubr.f32.gmra.mxu0 %v4483
  %v4562 = vpop.f32.mrf.mxu0
  %v4563 = vadd.f32 %v4461, %v4562
  %v4564 = vpop.f32.mrf.mxu0
  %4565 = vmatprep.mubr.f32.mxu0 0.0
  %4566 = vmatmul.mubr.f32.gmra.mxu0 %v4486
  %v4567 = vpop.f32.mrf.mxu0
  %v4568 = vadd.f32 %v4475, %v4567
  %v4569 = vpop.f32.mrf.mxu0
  %4570 = vdwg.mxu0
  %v4571 = vld [vmem:[%s16] sm:$0x1]
  %v4573 = vlaneseq
  %v4574 = vshrl.u32 %v4573, 7
  %v4575 = vsub.s32 0, %v4574
  %v4576 = vrot.slane %v4571, %v4575
  %v4578 = vadd.f32 %v4558, %v4576
  %v4579 = vadd.f32 %v4563, %v4576
  %v4580 = vadd.f32 %v4568, %v4576
  %v4581 = vld [vmem:[%s4] sm:$0xff]
  %v4582 = vld [vmem:[%s4 + $0x8] sm:$0xff]
  %v4583 = vld [vmem:[%s4 + $0x10] sm:$0xff]
  %v4584 = vld [vmem:[%s4 + $0x18] sm:$0xff]
  %v4585 = vld [vmem:[%s4 + $0x20] sm:$0xff]
  %v4586 = vld [vmem:[%s4 + $0x28] sm:$0xff]
  %v4587 = vld [vmem:[%s4 + $0x30] sm:$0xff]
  %v4588 = vld [vmem:[%s4 + $0x38] sm:$0xff]
  %vm4589 = vcmask 195584
  %v4591 = vsel %vm4589, %v4581, 0
  %v4594 = vsel %vm4589, %v4582, 0
  %v4597 = vsel %vm4589, %v4583, 0
  %v4600 = vsel %vm4589, %v4584, 0
  %v4603 = vsel %vm4589, %v4585, 0
  %v4606 = vsel %vm4589, %v4586, 0
  %v4609 = vsel %vm4589, %v4587, 0
  %v4612 = vsel %vm4589, %v4588, 0
  %4614 = vmatprep.subr.mxu0 0.0
  %4615 = vmatpush1.msra.mxu0 0.0
  %4616 = vmatprep.subr.mxu0 0.0
  %4617 = vmatpush1.msra.mxu0 0.0
  %4618 = vmatprep.subr.mxu0 0.0
  %4619 = vmatpush1.msra.mxu0 0.0
  %4620 = vmatprep.subr.mxu0 0.0
  %4621 = vmatpush1.msra.mxu0 0.0
  %4622 = vmatprep.subr.mxu0 0.0
  %4623 = vmatpush1.msra.mxu0 0.0
  %4624 = vmatprep.subr.mxu0 0.0
  %4625 = vmatpush1.msra.mxu0 0.0
  %4626 = vmatprep.subr.mxu0 0.0
  %4627 = vmatpush1.msra.mxu0 0.0
  %4628 = vmatprep.subr.mxu0 0.0
  %4629 = vmatpush1.msra.mxu0 0.0
  %4630 = vmatprep.subr.mxu0 0.0
  %4631 = vmatpush1.msra.mxu0 0.0
  %4632 = vmatprep.subr.mxu0 0.0
  %4633 = vmatpush1.msra.mxu0 0.0
  %4634 = vmatprep.subr.mxu0 0.0
  %4635 = vmatpush1.msra.mxu0 0.0
  %4636 = vmatprep.subr.mxu0 0.0
  %4637 = vmatpush1.msra.mxu0 0.0
  %4638 = vmatprep.subr.mxu0 0.0
  %4639 = vmatpush1.msra.mxu0 0.0
  %4640 = vmatprep.subr.mxu0 0.0
  %4641 = vmatpush1.msra.mxu0 %v4580
  %4642 = vmatprep.subr.mxu0 0.0
  %4643 = vmatpush1.msra.mxu0 %v4579
  %4644 = vmatprep.subr.mxu0 0.0
  %4645 = vmatpush1.msra.mxu0 %v4578
  %4646 = vmatprep.subr.mxu0 0.0
  %4647 = vmatpush2.msra.mxu0 0.0
  %4648 = vmatprep.subr.mxu0 0.0
  %4649 = vmatpush2.msra.mxu0 0.0
  %4650 = vmatprep.subr.mxu0 0.0
  %4651 = vmatpush2.msra.mxu0 0.0
  %4652 = vmatprep.subr.mxu0 0.0
  %4653 = vmatpush2.msra.mxu0 0.0
  %4654 = vmatprep.subr.mxu0 0.0
  %4655 = vmatpush2.msra.mxu0 0.0
  %4656 = vmatprep.subr.mxu0 0.0
  %4657 = vmatpush2.msra.mxu0 0.0
  %4658 = vmatprep.subr.mxu0 0.0
  %4659 = vmatpush2.msra.mxu0 0.0
  %4660 = vmatprep.subr.mxu0 0.0
  %4661 = vmatpush2.msra.mxu0 0.0
  %4662 = vmatprep.subr.mxu0 0.0
  %4663 = vmatpush2.msra.mxu0 0.0
  %4664 = vmatprep.subr.mxu0 0.0
  %4665 = vmatpush2.msra.mxu0 0.0
  %4666 = vmatprep.subr.mxu0 0.0
  %4667 = vmatpush2.msra.mxu0 0.0
  %4668 = vmatprep.subr.mxu0 0.0
  %4669 = vmatpush2.msra.mxu0 0.0
  %4670 = vmatprep.subr.mxu0 0.0
  %4671 = vmatpush2.msra.mxu0 0.0
  %4672 = vmatprep.subr.mxu0 0.0
  %4673 = vmatpush2.msra.mxu0 0.0
  %4674 = vmatprep.subr.mxu0 0.0
  %4675 = vmatpush2.msra.mxu0 0.0
  %4676 = vmatprep.subr.mxu0 0.0
  %4677 = vmatpush2.msra.mxu0 0.0
  %4678 = vmatprep.mubr.f32.mxu0 0.0
  %4679 = vmatmul.mubr.f32.gmra.mxu0 %v4591
  %v4680 = vpop.f32.mrf.mxu0
  %v4681 = vadd.f32 0.0, %v4680
  %v4682 = vpop.f32.mrf.mxu0
  %4683 = vmatprep.mubr.f32.mxu0 0.0
  %4684 = vmatmul.mubr.f32.gmra.mxu0 %v4594
  %v4685 = vpop.f32.mrf.mxu0
  %v4686 = vadd.f32 0.0, %v4685
  %v4687 = vpop.f32.mrf.mxu0
  %4688 = vmatprep.mubr.f32.mxu0 0.0
  %4689 = vmatmul.mubr.f32.gmra.mxu0 %v4597
  %v4690 = vpop.f32.mrf.mxu0
  %v4691 = vadd.f32 0.0, %v4690
  %v4692 = vpop.f32.mrf.mxu0
  %4693 = vmatprep.mubr.f32.mxu0 0.0
  %4694 = vmatmul.mubr.f32.gmra.mxu0 %v4600
  %v4695 = vpop.f32.mrf.mxu0
  %v4696 = vadd.f32 0.0, %v4695
  %v4697 = vpop.f32.mrf.mxu0
  %4698 = vmatprep.mubr.f32.mxu0 0.0
  %4699 = vmatmul.mubr.f32.gmra.mxu0 %v4603
  %v4700 = vpop.f32.mrf.mxu0
  %v4701 = vadd.f32 0.0, %v4700
  %v4702 = vpop.f32.mrf.mxu0
  %4703 = vmatprep.mubr.f32.mxu0 0.0
  %4704 = vmatmul.mubr.f32.gmra.mxu0 %v4606
  %v4705 = vpop.f32.mrf.mxu0
  %v4706 = vadd.f32 0.0, %v4705
  %v4707 = vpop.f32.mrf.mxu0
  %4708 = vmatprep.mubr.f32.mxu0 0.0
  %4709 = vmatmul.mubr.f32.gmra.mxu0 %v4609
  %v4710 = vpop.f32.mrf.mxu0
  %v4711 = vadd.f32 0.0, %v4710
  %v4712 = vpop.f32.mrf.mxu0
  %4713 = vmatprep.mubr.f32.mxu0 0.0
  %4714 = vmatmul.mubr.f32.gmra.mxu0 %v4612
  %v4715 = vpop.f32.mrf.mxu0
  %v4716 = vadd.f32 0.0, %v4715
  %v4717 = vpop.f32.mrf.mxu0
  %4718 = vdwg.mxu0
  %v4719 = vld [vmem:[%s3] sm:$0xff]
  %v4720 = vld [vmem:[%s3 + $0x8] sm:$0xff]
  %v4721 = vld [vmem:[%s3 + $0x10] sm:$0xff]
  %v4722 = vld [vmem:[%s3 + $0x18] sm:$0xff]
  %v4723 = vld [vmem:[%s3 + $0x20] sm:$0xff]
  %v4724 = vld [vmem:[%s3 + $0x28] sm:$0xff]
  %v4725 = vld [vmem:[%s3 + $0x30] sm:$0xff]
  %v4726 = vld [vmem:[%s3 + $0x38] sm:$0xff]
  %v4727 = vld [vmem:[%s17] sm:$0xff]
  %v4728 = vld [vmem:[%s18] sm:$0xff]
  %v4729 = vld [vmem:[%s18 + $0x8] sm:$0xff]
  %v4730 = vld [vmem:[%s18 + $0x10] sm:$0xff]
  %v4732 = vsel %vm4589, %v4681, 0
  %v4735 = vsel %vm4589, %v4686, 0
  %v4738 = vsel %vm4589, %v4691, 0
  %v4741 = vsel %vm4589, %v4696, 0
  %v4744 = vsel %vm4589, %v4701, 0
  %v4747 = vsel %vm4589, %v4706, 0
  %v4750 = vsel %vm4589, %v4711, 0
  %v4753 = vsel %vm4589, %v4716, 0
  %4755 = vmatprep.subr.mxu0 0.0
  %4756 = vmatpush1.msra.mxu0 0.0
  %4757 = vmatprep.subr.mxu0 0.0
  %4758 = vmatpush1.msra.mxu0 0.0
  %4759 = vmatprep.subr.mxu0 0.0
  %4760 = vmatpush1.msra.mxu0 0.0
  %4761 = vmatprep.subr.mxu0 0.0
  %4762 = vmatpush1.msra.mxu0 0.0
  %4763 = vmatprep.subr.mxu0 0.0
  %4764 = vmatpush1.msra.mxu0 0.0
  %4765 = vmatprep.subr.mxu0 0.0
  %4766 = vmatpush1.msra.mxu0 0.0
  %4767 = vmatprep.subr.mxu0 0.0
  %4768 = vmatpush1.msra.mxu0 0.0
  %4769 = vmatprep.subr.mxu0 0.0
  %4770 = vmatpush1.msra.mxu0 0.0
  %4771 = vmatprep.subr.mxu0 0.0
  %4772 = vmatpush1.msra.mxu0 0.0
  %4773 = vmatprep.subr.mxu0 0.0
  %4774 = vmatpush1.msra.mxu0 0.0
  %4775 = vmatprep.subr.mxu0 0.0
  %4776 = vmatpush1.msra.mxu0 0.0
  %4777 = vmatprep.subr.mxu0 0.0
  %4778 = vmatpush1.msra.mxu0 0.0
  %4779 = vmatprep.subr.mxu0 0.0
  %4780 = vmatpush1.msra.mxu0 0.0
  %4781 = vmatprep.subr.mxu0 0.0
  %4782 = vmatpush1.msra.mxu0 %v4730
  %4783 = vmatprep.subr.mxu0 0.0
  %4784 = vmatpush1.msra.mxu0 %v4729
  %4785 = vmatprep.subr.mxu0 0.0
  %4786 = vmatpush1.msra.mxu0 %v4728
  %4787 = vmatprep.subr.mxu0 0.0
  %4788 = vmatpush2.msra.mxu0 0.0
  %4789 = vmatprep.subr.mxu0 0.0
  %4790 = vmatpush2.msra.mxu0 0.0
  %4791 = vmatprep.subr.mxu0 0.0
  %4792 = vmatpush2.msra.mxu0 0.0
  %4793 = vmatprep.subr.mxu0 0.0
  %4794 = vmatpush2.msra.mxu0 0.0
  %4795 = vmatprep.subr.mxu0 0.0
  %4796 = vmatpush2.msra.mxu0 0.0
  %4797 = vmatprep.subr.mxu0 0.0
  %4798 = vmatpush2.msra.mxu0 0.0
  %4799 = vmatprep.subr.mxu0 0.0
  %4800 = vmatpush2.msra.mxu0 0.0
  %4801 = vmatprep.subr.mxu0 0.0
  %4802 = vmatpush2.msra.mxu0 0.0
  %4803 = vmatprep.subr.mxu0 0.0
  %4804 = vmatpush2.msra.mxu0 0.0
  %4805 = vmatprep.subr.mxu0 0.0
  %4806 = vmatpush2.msra.mxu0 0.0
  %4807 = vmatprep.subr.mxu0 0.0
  %4808 = vmatpush2.msra.mxu0 0.0
  %4809 = vmatprep.subr.mxu0 0.0
  %4810 = vmatpush2.msra.mxu0 0.0
  %4811 = vmatprep.subr.mxu0 0.0
  %4812 = vmatpush2.msra.mxu0 0.0
  %4813 = vmatprep.subr.mxu0 0.0
  %4814 = vmatpush2.msra.mxu0 0.0
  %4815 = vmatprep.subr.mxu0 0.0
  %4816 = vmatpush2.msra.mxu0 0.0
  %4817 = vmatprep.subr.mxu0 0.0
  %4818 = vmatpush2.msra.mxu0 0.0
  %4819 = vmatprep.mubr.f32.mxu0 0.0
  %4820 = vmatmul.mubr.f32.gmra.mxu0 %v4732
  %v4821 = vpop.f32.mrf.mxu0
  %v4822 = vadd.f32 0.0, %v4821
  %v4823 = vpop.f32.mrf.mxu0
  %4824 = vmatprep.mubr.f32.mxu0 0.0
  %4825 = vmatmul.mubr.f32.gmra.mxu0 %v4735
  %v4826 = vpop.f32.mrf.mxu0
  %v4827 = vadd.f32 0.0, %v4826
  %v4828 = vpop.f32.mrf.mxu0
  %4829 = vmatprep.mubr.f32.mxu0 0.0
  %4830 = vmatmul.mubr.f32.gmra.mxu0 %v4738
  %v4831 = vpop.f32.mrf.mxu0
  %v4832 = vadd.f32 0.0, %v4831
  %v4833 = vpop.f32.mrf.mxu0
  %4834 = vmatprep.mubr.f32.mxu0 0.0
  %4835 = vmatmul.mubr.f32.gmra.mxu0 %v4741
  %v4836 = vpop.f32.mrf.mxu0
  %v4837 = vadd.f32 0.0, %v4836
  %v4838 = vpop.f32.mrf.mxu0
  %4839 = vmatprep.mubr.f32.mxu0 0.0
  %4840 = vmatmul.mubr.f32.gmra.mxu0 %v4744
  %v4841 = vpop.f32.mrf.mxu0
  %v4842 = vadd.f32 0.0, %v4841
  %v4843 = vpop.f32.mrf.mxu0
  %4844 = vmatprep.mubr.f32.mxu0 0.0
  %4845 = vmatmul.mubr.f32.gmra.mxu0 %v4747
  %v4846 = vpop.f32.mrf.mxu0
  %v4847 = vadd.f32 0.0, %v4846
  %v4848 = vpop.f32.mrf.mxu0
  %4849 = vmatprep.mubr.f32.mxu0 0.0
  %4850 = vmatmul.mubr.f32.gmra.mxu0 %v4750
  %v4851 = vpop.f32.mrf.mxu0
  %v4852 = vadd.f32 0.0, %v4851
  %v4853 = vpop.f32.mrf.mxu0
  %4854 = vmatprep.mubr.f32.mxu0 0.0
  %4855 = vmatmul.mubr.f32.gmra.mxu0 %v4753
  %v4856 = vpop.f32.mrf.mxu0
  %v4857 = vadd.f32 0.0, %v4856
  %v4858 = vpop.f32.mrf.mxu0
  %4859 = vdwg.mxu0
  %vm4860 = vcmask 64512
  %v4862 = vsel %vm4860, %v4719, 0
  %v4865 = vsel %vm4860, %v4720, 0
  %v4868 = vsel %vm4860, %v4721, 0
  %v4871 = vsel %vm4860, %v4722, 0
  %v4874 = vsel %vm4860, %v4723, 0
  %v4877 = vsel %vm4860, %v4724, 0
  %v4880 = vsel %vm4860, %v4725, 0
  %v4883 = vsel %vm4860, %v4726, 0
  %4885 = vmatprep.subr.mxu0 0.0
  %4886 = vmatpush1.msra.mxu0 0.0
  %4887 = vmatprep.subr.mxu0 0.0
  %4888 = vmatpush1.msra.mxu0 0.0
  %4889 = vmatprep.subr.mxu0 0.0
  %4890 = vmatpush1.msra.mxu0 0.0
  %4891 = vmatprep.subr.mxu0 0.0
  %4892 = vmatpush1.msra.mxu0 0.0
  %4893 = vmatprep.subr.mxu0 0.0
  %4894 = vmatpush1.msra.mxu0 0.0
  %4895 = vmatprep.subr.mxu0 0.0
  %4896 = vmatpush1.msra.mxu0 0.0
  %4897 = vmatprep.subr.mxu0 0.0
  %4898 = vmatpush1.msra.mxu0 0.0
  %4899 = vmatprep.subr.mxu0 0.0
  %4900 = vmatpush1.msra.mxu0 0.0
  %4901 = vmatprep.subr.mxu0 0.0
  %4902 = vmatpush1.msra.mxu0 0.0
  %4903 = vmatprep.subr.mxu0 0.0
  %4904 = vmatpush1.msra.mxu0 0.0
  %4905 = vmatprep.subr.mxu0 0.0
  %4906 = vmatpush1.msra.mxu0 0.0
  %4907 = vmatprep.subr.mxu0 0.0
  %4908 = vmatpush1.msra.mxu0 0.0
  %4909 = vmatprep.subr.mxu0 0.0
  %4910 = vmatpush1.msra.mxu0 0.0
  %4911 = vmatprep.subr.mxu0 0.0
  %4912 = vmatpush1.msra.mxu0 0.0
  %4913 = vmatprep.subr.mxu0 0.0
  %4914 = vmatpush1.msra.mxu0 0.0
  %4915 = vmatprep.subr.mxu0 0.0
  %4916 = vmatpush1.msra.mxu0 %v4727
  %4917 = vmatprep.subr.mxu0 0.0
  %4918 = vmatpush2.msra.mxu0 0.0
  %4919 = vmatprep.subr.mxu0 0.0
  %4920 = vmatpush2.msra.mxu0 0.0
  %4921 = vmatprep.subr.mxu0 0.0
  %4922 = vmatpush2.msra.mxu0 0.0
  %4923 = vmatprep.subr.mxu0 0.0
  %4924 = vmatpush2.msra.mxu0 0.0
  %4925 = vmatprep.subr.mxu0 0.0
  %4926 = vmatpush2.msra.mxu0 0.0
  %4927 = vmatprep.subr.mxu0 0.0
  %4928 = vmatpush2.msra.mxu0 0.0
  %4929 = vmatprep.subr.mxu0 0.0
  %4930 = vmatpush2.msra.mxu0 0.0
  %4931 = vmatprep.subr.mxu0 0.0
  %4932 = vmatpush2.msra.mxu0 0.0
  %4933 = vmatprep.subr.mxu0 0.0
  %4934 = vmatpush2.msra.mxu0 0.0
  %4935 = vmatprep.subr.mxu0 0.0
  %4936 = vmatpush2.msra.mxu0 0.0
  %4937 = vmatprep.subr.mxu0 0.0
  %4938 = vmatpush2.msra.mxu0 0.0
  %4939 = vmatprep.subr.mxu0 0.0
  %4940 = vmatpush2.msra.mxu0 0.0
  %4941 = vmatprep.subr.mxu0 0.0
  %4942 = vmatpush2.msra.mxu0 0.0
  %4943 = vmatprep.subr.mxu0 0.0
  %4944 = vmatpush2.msra.mxu0 0.0
  %4945 = vmatprep.subr.mxu0 0.0
  %4946 = vmatpush2.msra.mxu0 0.0
  %4947 = vmatprep.subr.mxu0 0.0
  %4948 = vmatpush2.msra.mxu0 0.0
  %4949 = vmatprep.mubr.f32.mxu0 0.0
  %4950 = vmatmul.mubr.f32.gmra.mxu0 %v4862
  %v4951 = vpop.f32.mrf.mxu0
  %v4952 = vadd.f32 %v4822, %v4951
  %v4953 = vpop.f32.mrf.mxu0
  %4954 = vmatprep.mubr.f32.mxu0 0.0
  %4955 = vmatmul.mubr.f32.gmra.mxu0 %v4865
  %v4956 = vpop.f32.mrf.mxu0
  %v4957 = vadd.f32 %v4827, %v4956
  %v4958 = vpop.f32.mrf.mxu0
  %4959 = vmatprep.mubr.f32.mxu0 0.0
  %4960 = vmatmul.mubr.f32.gmra.mxu0 %v4868
  %v4961 = vpop.f32.mrf.mxu0
  %v4962 = vadd.f32 %v4832, %v4961
  %v4963 = vpop.f32.mrf.mxu0
  %4964 = vmatprep.mubr.f32.mxu0 0.0
  %4965 = vmatmul.mubr.f32.gmra.mxu0 %v4871
  %v4966 = vpop.f32.mrf.mxu0
  %v4967 = vadd.f32 %v4837, %v4966
  %v4968 = vpop.f32.mrf.mxu0
  %4969 = vmatprep.mubr.f32.mxu0 0.0
  %4970 = vmatmul.mubr.f32.gmra.mxu0 %v4874
  %v4971 = vpop.f32.mrf.mxu0
  %v4972 = vadd.f32 %v4842, %v4971
  %v4973 = vpop.f32.mrf.mxu0
  %4974 = vmatprep.mubr.f32.mxu0 0.0
  %4975 = vmatmul.mubr.f32.gmra.mxu0 %v4877
  %v4976 = vpop.f32.mrf.mxu0
  %v4977 = vadd.f32 %v4847, %v4976
  %v4978 = vpop.f32.mrf.mxu0
  %4979 = vmatprep.mubr.f32.mxu0 0.0
  %4980 = vmatmul.mubr.f32.gmra.mxu0 %v4880
  %v4981 = vpop.f32.mrf.mxu0
  %v4982 = vadd.f32 %v4852, %v4981
  %v4983 = vpop.f32.mrf.mxu0
  %4984 = vmatprep.mubr.f32.mxu0 0.0
  %4985 = vmatmul.mubr.f32.gmra.mxu0 %v4883
  %v4986 = vpop.f32.mrf.mxu0
  %v4987 = vadd.f32 %v4857, %v4986
  %v4988 = vpop.f32.mrf.mxu0
  %4989 = vdwg.mxu0
  %v4990 = vld [vmem:[%s19] sm:$0x1]
  %v4992 = vlaneseq
  %v4993 = vshrl.u32 %v4992, 7
  %v4994 = vsub.s32 0, %v4993
  %v4995 = vrot.slane %v4990, %v4994
  %v4997 = vadd.f32 %v4952, %v4995
  %v4998 = vadd.f32 %v4957, %v4995
  %v4999 = vadd.f32 %v4962, %v4995
  %v5000 = vadd.f32 %v4967, %v4995
  %v5001 = vadd.f32 %v4972, %v4995
  %v5002 = vadd.f32 %v4977, %v4995
  %v5003 = vadd.f32 %v4982, %v4995
  %v5004 = vadd.f32 %v4987, %v4995
  %v5005 = vmax.f32 %v4997, 0.0
  %v5006 = vmax.f32 %v4998, 0.0
  %v5007 = vmax.f32 %v4999, 0.0
  %v5008 = vmax.f32 %v5000, 0.0
  %v5009 = vmax.f32 %v5001, 0.0
  %v5010 = vmax.f32 %v5002, 0.0
  %v5011 = vmax.f32 %v5003, 0.0
  %v5012 = vmax.f32 %v5004, 0.0
  %v5013 = vld [vmem:[%s20] sm:$0xff]
  %v5014 = vld [vmem:[%s20 + $0x8] sm:$0xff]
  %v5015 = vld [vmem:[%s20 + $0x10] sm:$0xff]
  %v5016 = vld [vmem:[%s20 + $0x18] sm:$0xff]
  %v5017 = vld [vmem:[#allocation2] sm:$0x1]
  %v5019 = vlaneseq
  %v5020 = vshrl.u32 %v5019, 7
  %v5021 = vsub.s32 0, %v5020
  %v5022 = vrot.slane %v5017, %v5021
  %vm5024 = vcmask 261120
  %v5026 = vsel %vm5024, %v5005, 0
  %v5029 = vsel %vm5024, %v5006, 0
  %v5032 = vsel %vm5024, %v5007, 0
  %v5035 = vsel %vm5024, %v5008, 0
  %v5038 = vsel %vm5024, %v5009, 0
  %v5041 = vsel %vm5024, %v5010, 0
  %v5044 = vsel %vm5024, %v5011, 0
  %v5047 = vsel %vm5024, %v5012, 0
  %5049 = vmatprep.subr.mxu0 0.0
  %5050 = vmatpush1.msra.mxu0 0.0
  %5051 = vmatprep.subr.mxu0 0.0
  %5052 = vmatpush1.msra.mxu0 0.0
  %5053 = vmatprep.subr.mxu0 0.0
  %5054 = vmatpush1.msra.mxu0 0.0
  %5055 = vmatprep.subr.mxu0 0.0
  %5056 = vmatpush1.msra.mxu0 0.0
  %5057 = vmatprep.subr.mxu0 0.0
  %5058 = vmatpush1.msra.mxu0 0.0
  %5059 = vmatprep.subr.mxu0 0.0
  %5060 = vmatpush1.msra.mxu0 0.0
  %5061 = vmatprep.subr.mxu0 0.0
  %5062 = vmatpush1.msra.mxu0 0.0
  %5063 = vmatprep.subr.mxu0 0.0
  %5064 = vmatpush1.msra.mxu0 0.0
  %5065 = vmatprep.subr.mxu0 0.0
  %5066 = vmatpush1.msra.mxu0 0.0
  %5067 = vmatprep.subr.mxu0 0.0
  %5068 = vmatpush1.msra.mxu0 0.0
  %5069 = vmatprep.subr.mxu0 0.0
  %5070 = vmatpush1.msra.mxu0 0.0
  %5071 = vmatprep.subr.mxu0 0.0
  %5072 = vmatpush1.msra.mxu0 0.0
  %5073 = vmatprep.subr.mxu0 0.0
  %5074 = vmatpush1.msra.mxu0 %v5016
  %5075 = vmatprep.subr.mxu0 0.0
  %5076 = vmatpush1.msra.mxu0 %v5015
  %5077 = vmatprep.subr.mxu0 0.0
  %5078 = vmatpush1.msra.mxu0 %v5014
  %5079 = vmatprep.subr.mxu0 0.0
  %5080 = vmatpush1.msra.mxu0 %v5013
  %5081 = vmatprep.subr.mxu0 0.0
  %5082 = vmatpush2.msra.mxu0 0.0
  %5083 = vmatprep.subr.mxu0 0.0
  %5084 = vmatpush2.msra.mxu0 0.0
  %5085 = vmatprep.subr.mxu0 0.0
  %5086 = vmatpush2.msra.mxu0 0.0
  %5087 = vmatprep.subr.mxu0 0.0
  %5088 = vmatpush2.msra.mxu0 0.0
  %5089 = vmatprep.subr.mxu0 0.0
  %5090 = vmatpush2.msra.mxu0 0.0
  %5091 = vmatprep.subr.mxu0 0.0
  %5092 = vmatpush2.msra.mxu0 0.0
  %5093 = vmatprep.subr.mxu0 0.0
  %5094 = vmatpush2.msra.mxu0 0.0
  %5095 = vmatprep.subr.mxu0 0.0
  %5096 = vmatpush2.msra.mxu0 0.0
  %5097 = vmatprep.subr.mxu0 0.0
  %5098 = vmatpush2.msra.mxu0 0.0
  %5099 = vmatprep.subr.mxu0 0.0
  %5100 = vmatpush2.msra.mxu0 0.0
  %5101 = vmatprep.subr.mxu0 0.0
  %5102 = vmatpush2.msra.mxu0 0.0
  %5103 = vmatprep.subr.mxu0 0.0
  %5104 = vmatpush2.msra.mxu0 0.0
  %5105 = vmatprep.subr.mxu0 0.0
  %5106 = vmatpush2.msra.mxu0 0.0
  %5107 = vmatprep.subr.mxu0 0.0
  %5108 = vmatpush2.msra.mxu0 0.0
  %5109 = vmatprep.subr.mxu0 0.0
  %5110 = vmatpush2.msra.mxu0 0.0
  %5111 = vmatprep.subr.mxu0 0.0
  %5112 = vmatpush2.msra.mxu0 0.0
  %5113 = vmatprep.mubr.f32.mxu0 0.0
  %5114 = vmatmul.mubr.f32.gmra.mxu0 %v5026
  %v5115 = vpop.f32.mrf.mxu0
  %v5116 = vadd.f32 %v5022, %v5115
  %v5117 = vpop.f32.mrf.mxu0
  %5118 = vmatprep.mubr.f32.mxu0 0.0
  %5119 = vmatmul.mubr.f32.gmra.mxu0 %v5029
  %v5120 = vpop.f32.mrf.mxu0
  %v5121 = vadd.f32 %v5022, %v5120
  %v5122 = vpop.f32.mrf.mxu0
  %5123 = vmatprep.mubr.f32.mxu0 0.0
  %5124 = vmatmul.mubr.f32.gmra.mxu0 %v5032
  %v5125 = vpop.f32.mrf.mxu0
  %v5126 = vadd.f32 %v5022, %v5125
  %v5127 = vpop.f32.mrf.mxu0
  %5128 = vmatprep.mubr.f32.mxu0 0.0
  %5129 = vmatmul.mubr.f32.gmra.mxu0 %v5035
  %v5130 = vpop.f32.mrf.mxu0
  %v5131 = vadd.f32 %v5022, %v5130
  %v5132 = vpop.f32.mrf.mxu0
  %5133 = vmatprep.mubr.f32.mxu0 0.0
  %5134 = vmatmul.mubr.f32.gmra.mxu0 %v5038
  %v5135 = vpop.f32.mrf.mxu0
  %v5136 = vadd.f32 %v5022, %v5135
  %v5137 = vpop.f32.mrf.mxu0
  %5138 = vmatprep.mubr.f32.mxu0 0.0
  %5139 = vmatmul.mubr.f32.gmra.mxu0 %v5041
  %v5140 = vpop.f32.mrf.mxu0
  %v5141 = vadd.f32 %v5022, %v5140
  %v5142 = vpop.f32.mrf.mxu0
  %5143 = vmatprep.mubr.f32.mxu0 0.0
  %5144 = vmatmul.mubr.f32.gmra.mxu0 %v5044
  %v5145 = vpop.f32.mrf.mxu0
  %v5146 = vadd.f32 %v5022, %v5145
  %v5147 = vpop.f32.mrf.mxu0
  %5148 = vmatprep.mubr.f32.mxu0 0.0
  %5149 = vmatmul.mubr.f32.gmra.mxu0 %v5047
  %v5150 = vpop.f32.mrf.mxu0
  %v5151 = vadd.f32 %v5022, %v5150
  %v5152 = vpop.f32.mrf.mxu0
  %5153 = vdwg.mxu0
  %v5154 = vld [vmem:[%s22] sm:$0xff]
  %v5155 = vld [vmem:[%s22 + $0x8] sm:$0xff]
  %v5156 = vld [vmem:[%s22 + $0x10] sm:$0xff]
  %v5157 = vld [vmem:[%s22 + $0x18] sm:$0xff]
  %v5158 = vld [vmem:[%s22 + $0x20] sm:$0xff]
  %v5159 = vld [vmem:[%s22 + $0x28] sm:$0xff]
  %v5160 = vld [vmem:[%s22 + $0x30] sm:$0xff]
  %v5161 = vld [vmem:[%s22 + $0x38] sm:$0xff]
  %5163 = vset.pattern.permute.xlu0 0
  %5164 = vperm.xlu0 %5163, %v5116
  %v5165 = vpop.permute.xlu0 %5164
  %5168 = vset.pattern.permute.xlu0 0
  %5169 = vperm.xlu0 %5168, %v5121
  %v5170 = vpop.permute.xlu0 %5169
  %5173 = vset.pattern.permute.xlu0 0
  %5174 = vperm.xlu0 %5173, %v5126
  %v5175 = vpop.permute.xlu0 %5174
  %5178 = vset.pattern.permute.xlu0 0
  %5179 = vperm.xlu0 %5178, %v5131
  %v5180 = vpop.permute.xlu0 %5179
  %5183 = vset.pattern.permute.xlu0 0
  %5184 = vperm.xlu0 %5183, %v5136
  %v5185 = vpop.permute.xlu0 %5184
  %5188 = vset.pattern.permute.xlu0 0
  %5189 = vperm.xlu0 %5188, %v5141
  %v5190 = vpop.permute.xlu0 %5189
  %5193 = vset.pattern.permute.xlu0 0
  %5194 = vperm.xlu0 %5193, %v5146
  %v5195 = vpop.permute.xlu0 %5194
  %5198 = vset.pattern.permute.xlu0 0
  %5199 = vperm.xlu0 %5198, %v5151
  %v5200 = vpop.permute.xlu0 %5199
  %v5202 = vmul.f32 %v5165, %v5154
  %v5203 = vmul.f32 %v5170, %v5155
  %v5204 = vmul.f32 %v5175, %v5156
  %v5205 = vmul.f32 %v5180, %v5157
  %v5206 = vmul.f32 %v5185, %v5158
  %v5207 = vmul.f32 %v5190, %v5159
  %v5208 = vmul.f32 %v5195, %v5160
  %v5209 = vmul.f32 %v5200, %v5161
  %vm5210 = vcmask 523264
  %v5211 = vsel %vm5210, %v5202, 0.0
  %v5212 = vsel %vm5210, %v5203, 0.0
  %v5213 = vadd.f32 %v5211, %v5212
  %v5214 = vsel %vm5210, %v5204, 0.0
  %v5215 = vadd.f32 %v5213, %v5214
  %v5216 = vsel %vm5210, %v5205, 0.0
  %v5217 = vadd.f32 %v5215, %v5216
  %v5218 = vsel %vm5210, %v5206, 0.0
  %v5219 = vadd.f32 %v5217, %v5218
  %v5220 = vsel %vm5210, %v5207, 0.0
  %v5221 = vadd.f32 %v5219, %v5220
  %v5222 = vsel %vm5210, %v5208, 0.0
  %v5223 = vadd.f32 %v5221, %v5222
  %v5224 = vsel %vm5210, %v5209, 0.0
  %v5225 = vadd.f32 %v5223, %v5224
  %v5226 = vrot.slane %v5225, 4
  %v5227 = vadd.f32 %v5225, %v5226
  %v5228 = vrot.slane %v5227, 2
  %v5229 = vadd.f32 %v5227, %v5228
  %v5230 = vrot.slane %v5229, 1
  %v5231 = vadd.f32 %v5229, %v5230
  %vm5232 = vcmask 516096
  %5233 = vst.msk [vmem:[%s23] sm:$0x1] %vm5232, %v5231
  // Predicated region
  $region94: #{visionts_forward.1} parent=0 // pred_check
    _
  $region95: #{visionts_forward.1} parent=0 // pred_check_branch
    %5235 = sbr.rel (0) target = $region97
  $region96: #{visionts_forward.1} parent=0 // pred_region
    _
  $region97: #{visionts_forward.1} parent=0 // pred_fallthru
    _
  // Predicated region
  $region98: #{visionts_forward.1} parent=0 // pred_check
    _
  $region99: #{visionts_forward.1} parent=0 // pred_check_branch
    %5237 = sbr.rel (0) target = $region101
  $region100: #{visionts_forward.1} parent=0 // pred_region
    _
  $region101: #{visionts_forward.1} parent=0 // pred_fallthru
    _

</llo_original>
